<compile_context>
chip_gen: v6e
topology: v6e:2x2x1
jax: 0.10.0
libtpu: 0.0.40
codegen_flags: <defaults>
</compile_context>

<pallas_src>
import jax
import jax.numpy as jnp
from jax.experimental import pallas as pl
from jax.experimental.pallas import tpu as pltpu

DIM = 4                      # model dim (x features)
FACTOR = 5                   # MultilevelNet default
LEVELS = 4                   # MultilevelNet default
DIM_IN = DIM + 1             # t concatenated with x
DIM_EMBED = FACTOR * DIM_IN  # hidden width of every level (25)
K_PAD = 32                   # contraction-dim padding (>= DIM_EMBED, multiple of bf16 tile 16)
PAD = 128                    # lane (out-feature) padding -> lane-dense output stores
TILE_B = 128                 # batch rows per grid block (fills v5e MXU; fine on v6e/v7x)

# level L has 2**L + 1 dense layers: (dim_in->embed), (embed->embed)*(2**L - 1), (embed->dim)
N_LAYERS = sum(2 ** L + 1 for L in range(LEVELS))
LEVEL_OFFSETS = []
_off = 0
for _L in range(LEVELS):
    LEVEL_OFFSETS.append(_off)
    _off += 2 ** _L + 1


def _layer_shapes():
    shapes = []
    for level in range(LEVELS):
        lvl = [(DIM_IN, DIM_EMBED)]
        lvl += [(DIM_EMBED, DIM_EMBED)] * (2 ** level - 1)
        lvl += [(DIM_EMBED, DIM)]
        shapes.append(lvl)
    return shapes


def init_params(key):
    """Deterministic torch-Linear-style uniform(-1/sqrt(fan_in), 1/sqrt(fan_in)) init."""
    params = []
    for lvl_shapes in _layer_shapes():
        lvl_params = []
        for (fi, fo) in lvl_shapes:
            key, kw, kb = jax.random.split(key, 3)
            bound = 1.0 / float(fi) ** 0.5
            W = jax.random.uniform(kw, (fi, fo), jnp.float32, -bound, bound)  # (in, out)
            b = jax.random.uniform(kb, (fo,), jnp.float32, -bound, bound)
            lvl_params.append((W, b))
        params.append(lvl_params)
    return params


def pack_params(params):
    """Zero-pad W to (K_PAD, PAD) bf16 and b to (PAD,) f32; stack levels 0..LEVELS-1 in order."""
    Ws, bs = [], []
    for lvl in params:
        for (W, b) in lvl:
            Wp = jnp.zeros((K_PAD, PAD), jnp.float32).at[: W.shape[0], : W.shape[1]].set(W)
            bp = jnp.zeros((PAD,), jnp.float32).at[: b.shape[0]].set(b)
            Ws.append(Wp.astype(jnp.bfloat16))
            bs.append(bp)
    # (N_LAYERS, K_PAD, PAD) bf16, (N_LAYERS, PAD) f32
    return jnp.stack(Ws), jnp.stack(bs)


def multilevel_kernel(tx_ref, w_ref, b_ref, o_ref):
    """One batch tile of the full MultilevelNet forward (all levels + cross-level residuals)."""
    tx = tx_ref[...]  # (TILE_B, PAD) f32; lanes >= DIM_IN are zero

    def linear(layer, h):
        # Only the first K_PAD lanes of h can be non-zero (DIM_IN=5, DIM_EMBED=25 <= 32),
        # and weight rows beyond the true fan-in are zero, so contracting over K_PAD is exact.
        lhs = h[:, :K_PAD]                                     # (TILE_B, K_PAD) f32
        w = w_ref[layer].astype(jnp.float32)                   # bf16 slab -> f32 in-register
        acc = jnp.dot(lhs, w, preferred_element_type=jnp.float32)   # (TILE_B, PAD)
        return acc + b_ref[pl.ds(layer, 1), :]                 # bias broadcast (1, PAD)

    res = None
    # MultilevelNet.forward iterates nets[::-1]: coarsest level first, level 0 last.
    for level in reversed(range(LEVELS)):                      # static Python unroll
        base = LEVEL_OFFSETS[level]
        n_dense = 2 ** level + 1
        h = linear(base, tx)                                   # dense_layers[0]
        outs = []
        for i in range(n_dense - 1):                           # dense_layers[1:]
            h = jnp.tanh(h)                                    # self.act
            h = linear(base + 1 + i, h)
            if res is not None:
                h = h + res[i]                                 # residual from coarser level
            if (i % 2 == 1) or (level == 0):
                outs.append(h)
        res = outs
    o_ref[...] = res[-1]                                       # MultilevelNet returns res_tensors[-1]


def multilevel_net(t, x, w_stack, b_stack, *, tile_b=TILE_B):
    """Wrapper: Model.flatten glue, lane/batch padding, batch-parallel grid launch."""
    B = x.shape[0]
    t = jnp.asarray(t, jnp.float32)
    t2 = jnp.broadcast_to(jnp.reshape(t, (-1, 1)), (B, 1))              # Model.flatten
    tx = jnp.concatenate([t2, x.astype(jnp.float32)], axis=1)           # (B, DIM_IN)

    nb = pl.cdiv(B, tile_b)
    b_pad = nb * tile_b
    tx_p = jnp.zeros((b_pad, PAD), jnp.float32).at[:B, :DIM_IN].set(tx)  # lane+batch pad

    # NOTE: if this net is called once per SDE timestep, hoist this pallas_call so a
    # single launch covers many timesteps/samples (weights on a constant index_map).
    out_p = pl.pallas_call(
        multilevel_kernel,
        out_shape=jax.ShapeDtypeStruct((b_pad, PAD), jnp.float32),
        grid=(nb,),
        in_specs=[
            pl.BlockSpec((tile_b, PAD), lambda b: (b, 0)),               # activations: tiled batch
            pl.BlockSpec((N_LAYERS, K_PAD, PAD), lambda b: (0, 0, 0)),   # weights: constant block (VMEM-resident)
            pl.BlockSpec((N_LAYERS, PAD), lambda b: (0, 0)),             # biases: constant block
        ],
        out_specs=pl.BlockSpec((tile_b, PAD), lambda b: (b, 0)),
        compiler_params=pltpu.CompilerParams(dimension_semantics=("parallel",)),
    )(tx_p, w_stack, b_stack)
    return out_p[:B, :DIM]                                               # strip padding


def reference_forward(t, x, params):
    """Pure-JAX f32 reference mirroring the PyTorch forward (unpadded)."""
    B = x.shape[0]
    tx = jnp.concatenate([jnp.broadcast_to(jnp.reshape(t, (-1, 1)), (B, 1)), x], axis=1)
    res = None
    for level in reversed(range(LEVELS)):
        lvl = params[level]
        W0, b0 = lvl[0]
        h = tx @ W0 + b0
        outs = []
        for i, (W, b) in enumerate(lvl[1:]):
            h = jnp.tanh(h)
            h = h @ W + b
            if res is not None:
                h = h + res[i]
            if (i % 2 == 1) or (level == 0):
                outs.append(h)
        res = outs
    return res[-1]


if __name__ == "__main__":
    key = jax.random.PRNGKey(0)
    kp, kt, kx = jax.random.split(key, 3)

    params = init_params(kp)
    w_stack, b_stack = pack_params(params)

    # Small-shape check (batch=8, dim=4), matching the module defaults.
    t = jax.random.uniform(kt, (8,), jnp.float32)
    x = jax.random.normal(kx, (8, DIM), jnp.float32)
    out = jax.block_until_ready(multilevel_net(t, x, w_stack, b_stack))
    ref = reference_forward(t, x, params)
    assert out.shape == (8, DIM)
    assert jnp.allclose(out, ref, atol=2e-2, rtol=2e-2)

    # Multi-block batch check: exercises the "parallel" batch grid with VMEM-resident weights.
    kt2, kx2 = jax.random.split(kx)
    t2 = jax.random.uniform(kt2, (300,), jnp.float32)
    x2 = jax.random.normal(kx2, (300, DIM), jnp.float32)
    out2 = jax.block_until_ready(multilevel_net(t2, x2, w_stack, b_stack))
    ref2 = reference_forward(t2, x2, params)
    assert out2.shape == (300, DIM)
    assert jnp.allclose(out2, ref2, atol=2e-2, rtol=2e-2)

    print("KERNEL_OK")
</pallas_src>

<mosaic_0001>
module attributes {stable_mosaic.version = 11 : i64} {
  func.func @multilevel_kernel(%arg0: i32, %arg1: memref<128x128xf32, #tpu.memory_space<vmem>>, %arg2: memref<19x32x128xbf16, #tpu.memory_space<vmem>>, %arg3: memref<19x128xf32, #tpu.memory_space<vmem>>, %arg4: memref<128x128xf32, #tpu.memory_space<vmem>>) attributes {dimension_semantics = [#tpu.dimension_semantics<parallel>], iteration_bounds = array<i64: 1>, scalar_prefetch = 0 : i64, scratch_operands = 0 : i64, tpu.core_type = #tpu.core_type<tc>, window_params = [{transform_indices = @transform_0, window_bounds = array<i64: 128, 128>}, {pipeline_mode = #tpu.pipeline_mode<synchronous>, transform_indices = @transform_1, window_bounds = array<i64: 19, 32, 128>}, {pipeline_mode = #tpu.pipeline_mode<synchronous>, transform_indices = @transform_2, window_bounds = array<i64: 19, 128>}, {transform_indices = @transform_3, window_bounds = array<i64: 128, 128>}]} {
    %c0 = arith.constant 0 : index
    %c0_0 = arith.constant 0 : index
    %0 = vector.load %arg1[%c0, %c0_0] : memref<128x128xf32, #tpu.memory_space<vmem>>, vector<128x128xf32>
    %1 = vector.extract_strided_slice %0 {offsets = [0, 0], sizes = [128, 32], strides = [1, 1]} : vector<128x128xf32> to vector<128x32xf32>
    %c10 = arith.constant 10 : index
    %c0_1 = arith.constant 0 : index
    %c0_2 = arith.constant 0 : index
    %2 = vector.load %arg2[%c10, %c0_1, %c0_2] : memref<19x32x128xbf16, #tpu.memory_space<vmem>>, vector<1x32x128xbf16>
    %3 = vector.shape_cast %2 : vector<1x32x128xbf16> to vector<32x128xbf16>
    %4 = arith.extf %3 : vector<32x128xbf16> to vector<32x128xf32>
    %cst = arith.constant dense<0.000000e+00> : vector<128x128xf32>
    %5 = tpu.matmul %1, %4, %cst {dimension_numbers = #tpu.dot_dimension_numbers<[1], [0], [0], [1], [0, 0, 1, 1], [], []>} : vector<128x32xf32>, vector<32x128xf32>, vector<128x128xf32> -> vector<128x128xf32>
    %c10_3 = arith.constant 10 : index
    %c0_4 = arith.constant 0 : index
    %6 = vector.load %arg3[%c10_3, %c0_4] : memref<19x128xf32, #tpu.memory_space<vmem>>, vector<1x128xf32>
    %7 = vector.broadcast %6 : vector<1x128xf32> to vector<128x128xf32>
    %8 = arith.addf %5, %7 : vector<128x128xf32>
    %9 = math.tanh %8 : vector<128x128xf32>
    %10 = vector.extract_strided_slice %9 {offsets = [0, 0], sizes = [128, 32], strides = [1, 1]} : vector<128x128xf32> to vector<128x32xf32>
    %c11 = arith.constant 11 : index
    %c0_5 = arith.constant 0 : index
    %c0_6 = arith.constant 0 : index
    %11 = vector.load %arg2[%c11, %c0_5, %c0_6] : memref<19x32x128xbf16, #tpu.memory_space<vmem>>, vector<1x32x128xbf16>
    %12 = vector.shape_cast %11 : vector<1x32x128xbf16> to vector<32x128xbf16>
    %13 = arith.extf %12 : vector<32x128xbf16> to vector<32x128xf32>
    %cst_7 = arith.constant dense<0.000000e+00> : vector<128x128xf32>
    %14 = tpu.matmul %10, %13, %cst_7 {dimension_numbers = #tpu.dot_dimension_numbers<[1], [0], [0], [1], [0, 0, 1, 1], [], []>} : vector<128x32xf32>, vector<32x128xf32>, vector<128x128xf32> -> vector<128x128xf32>
    %c11_8 = arith.constant 11 : index
    %c0_9 = arith.constant 0 : index
    %15 = vector.load %arg3[%c11_8, %c0_9] : memref<19x128xf32, #tpu.memory_space<vmem>>, vector<1x128xf32>
    %16 = vector.broadcast %15 : vector<1x128xf32> to vector<128x128xf32>
    %17 = arith.addf %14, %16 : vector<128x128xf32>
    %18 = math.tanh %17 : vector<128x128xf32>
    %19 = vector.extract_strided_slice %18 {offsets = [0, 0], sizes = [128, 32], strides = [1, 1]} : vector<128x128xf32> to vector<128x32xf32>
    %c12 = arith.constant 12 : index
    %c0_10 = arith.constant 0 : index
    %c0_11 = arith.constant 0 : index
    %20 = vector.load %arg2[%c12, %c0_10, %c0_11] : memref<19x32x128xbf16, #tpu.memory_space<vmem>>, vector<1x32x128xbf16>
    %21 = vector.shape_cast %20 : vector<1x32x128xbf16> to vector<32x128xbf16>
    %22 = arith.extf %21 : vector<32x128xbf16> to vector<32x128xf32>
    %cst_12 = arith.constant dense<0.000000e+00> : vector<128x128xf32>
    %23 = tpu.matmul %19, %22, %cst_12 {dimension_numbers = #tpu.dot_dimension_numbers<[1], [0], [0], [1], [0, 0, 1, 1], [], []>} : vector<128x32xf32>, vector<32x128xf32>, vector<128x128xf32> -> vector<128x128xf32>
    %c12_13 = arith.constant 12 : index
    %c0_14 = arith.constant 0 : index
    %24 = vector.load %arg3[%c12_13, %c0_14] : memref<19x128xf32, #tpu.memory_space<vmem>>, vector<1x128xf32>
    %25 = vector.broadcast %24 : vector<1x128xf32> to vector<128x128xf32>
    %26 = arith.addf %23, %25 : vector<128x128xf32>
    %27 = math.tanh %26 : vector<128x128xf32>
    %28 = vector.extract_strided_slice %27 {offsets = [0, 0], sizes = [128, 32], strides = [1, 1]} : vector<128x128xf32> to vector<128x32xf32>
    %c13 = arith.constant 13 : index
    %c0_15 = arith.constant 0 : index
    %c0_16 = arith.constant 0 : index
    %29 = vector.load %arg2[%c13, %c0_15, %c0_16] : memref<19x32x128xbf16, #tpu.memory_space<vmem>>, vector<1x32x128xbf16>
    %30 = vector.shape_cast %29 : vector<1x32x128xbf16> to vector<32x128xbf16>
    %31 = arith.extf %30 : vector<32x128xbf16> to vector<32x128xf32>
    %cst_17 = arith.constant dense<0.000000e+00> : vector<128x128xf32>
    %32 = tpu.matmul %28, %31, %cst_17 {dimension_numbers = #tpu.dot_dimension_numbers<[1], [0], [0], [1], [0, 0, 1, 1], [], []>} : vector<128x32xf32>, vector<32x128xf32>, vector<128x128xf32> -> vector<128x128xf32>
    %c13_18 = arith.constant 13 : index
    %c0_19 = arith.constant 0 : index
    %33 = vector.load %arg3[%c13_18, %c0_19] : memref<19x128xf32, #tpu.memory_space<vmem>>, vector<1x128xf32>
    %34 = vector.broadcast %33 : vector<1x128xf32> to vector<128x128xf32>
    %35 = arith.addf %32, %34 : vector<128x128xf32>
    %36 = math.tanh %35 : vector<128x128xf32>
    %37 = vector.extract_strided_slice %36 {offsets = [0, 0], sizes = [128, 32], strides = [1, 1]} : vector<128x128xf32> to vector<128x32xf32>
    %c14 = arith.constant 14 : index
    %c0_20 = arith.constant 0 : index
    %c0_21 = arith.constant 0 : index
    %38 = vector.load %arg2[%c14, %c0_20, %c0_21] : memref<19x32x128xbf16, #tpu.memory_space<vmem>>, vector<1x32x128xbf16>
    %39 = vector.shape_cast %38 : vector<1x32x128xbf16> to vector<32x128xbf16>
    %40 = arith.extf %39 : vector<32x128xbf16> to vector<32x128xf32>
    %cst_22 = arith.constant dense<0.000000e+00> : vector<128x128xf32>
    %41 = tpu.matmul %37, %40, %cst_22 {dimension_numbers = #tpu.dot_dimension_numbers<[1], [0], [0], [1], [0, 0, 1, 1], [], []>} : vector<128x32xf32>, vector<32x128xf32>, vector<128x128xf32> -> vector<128x128xf32>
    %c14_23 = arith.constant 14 : index
    %c0_24 = arith.constant 0 : index
    %42 = vector.load %arg3[%c14_23, %c0_24] : memref<19x128xf32, #tpu.memory_space<vmem>>, vector<1x128xf32>
    %43 = vector.broadcast %42 : vector<1x128xf32> to vector<128x128xf32>
    %44 = arith.addf %41, %43 : vector<128x128xf32>
    %45 = math.tanh %44 : vector<128x128xf32>
    %46 = vector.extract_strided_slice %45 {offsets = [0, 0], sizes = [128, 32], strides = [1, 1]} : vector<128x128xf32> to vector<128x32xf32>
    %c15 = arith.constant 15 : index
    %c0_25 = arith.constant 0 : index
    %c0_26 = arith.constant 0 : index
    %47 = vector.load %arg2[%c15, %c0_25, %c0_26] : memref<19x32x128xbf16, #tpu.memory_space<vmem>>, vector<1x32x128xbf16>
    %48 = vector.shape_cast %47 : vector<1x32x128xbf16> to vector<32x128xbf16>
    %49 = arith.extf %48 : vector<32x128xbf16> to vector<32x128xf32>
    %cst_27 = arith.constant dense<0.000000e+00> : vector<128x128xf32>
    %50 = tpu.matmul %46, %49, %cst_27 {dimension_numbers = #tpu.dot_dimension_numbers<[1], [0], [0], [1], [0, 0, 1, 1], [], []>} : vector<128x32xf32>, vector<32x128xf32>, vector<128x128xf32> -> vector<128x128xf32>
    %c15_28 = arith.constant 15 : index
    %c0_29 = arith.constant 0 : index
    %51 = vector.load %arg3[%c15_28, %c0_29] : memref<19x128xf32, #tpu.memory_space<vmem>>, vector<1x128xf32>
    %52 = vector.broadcast %51 : vector<1x128xf32> to vector<128x128xf32>
    %53 = arith.addf %50, %52 : vector<128x128xf32>
    %54 = math.tanh %53 : vector<128x128xf32>
    %55 = vector.extract_strided_slice %54 {offsets = [0, 0], sizes = [128, 32], strides = [1, 1]} : vector<128x128xf32> to vector<128x32xf32>
    %c16 = arith.constant 16 : index
    %c0_30 = arith.constant 0 : index
    %c0_31 = arith.constant 0 : index
    %56 = vector.load %arg2[%c16, %c0_30, %c0_31] : memref<19x32x128xbf16, #tpu.memory_space<vmem>>, vector<1x32x128xbf16>
    %57 = vector.shape_cast %56 : vector<1x32x128xbf16> to vector<32x128xbf16>
    %58 = arith.extf %57 : vector<32x128xbf16> to vector<32x128xf32>
    %cst_32 = arith.constant dense<0.000000e+00> : vector<128x128xf32>
    %59 = tpu.matmul %55, %58, %cst_32 {dimension_numbers = #tpu.dot_dimension_numbers<[1], [0], [0], [1], [0, 0, 1, 1], [], []>} : vector<128x32xf32>, vector<32x128xf32>, vector<128x128xf32> -> vector<128x128xf32>
    %c16_33 = arith.constant 16 : index
    %c0_34 = arith.constant 0 : index
    %60 = vector.load %arg3[%c16_33, %c0_34] : memref<19x128xf32, #tpu.memory_space<vmem>>, vector<1x128xf32>
    %61 = vector.broadcast %60 : vector<1x128xf32> to vector<128x128xf32>
    %62 = arith.addf %59, %61 : vector<128x128xf32>
    %63 = math.tanh %62 : vector<128x128xf32>
    %64 = vector.extract_strided_slice %63 {offsets = [0, 0], sizes = [128, 32], strides = [1, 1]} : vector<128x128xf32> to vector<128x32xf32>
    %c17 = arith.constant 17 : index
    %c0_35 = arith.constant 0 : index
    %c0_36 = arith.constant 0 : index
    %65 = vector.load %arg2[%c17, %c0_35, %c0_36] : memref<19x32x128xbf16, #tpu.memory_space<vmem>>, vector<1x32x128xbf16>
    %66 = vector.shape_cast %65 : vector<1x32x128xbf16> to vector<32x128xbf16>
    %67 = arith.extf %66 : vector<32x128xbf16> to vector<32x128xf32>
    %cst_37 = arith.constant dense<0.000000e+00> : vector<128x128xf32>
    %68 = tpu.matmul %64, %67, %cst_37 {dimension_numbers = #tpu.dot_dimension_numbers<[1], [0], [0], [1], [0, 0, 1, 1], [], []>} : vector<128x32xf32>, vector<32x128xf32>, vector<128x128xf32> -> vector<128x128xf32>
    %c17_38 = arith.constant 17 : index
    %c0_39 = arith.constant 0 : index
    %69 = vector.load %arg3[%c17_38, %c0_39] : memref<19x128xf32, #tpu.memory_space<vmem>>, vector<1x128xf32>
    %70 = vector.broadcast %69 : vector<1x128xf32> to vector<128x128xf32>
    %71 = arith.addf %68, %70 : vector<128x128xf32>
    %72 = math.tanh %71 : vector<128x128xf32>
    %73 = vector.extract_strided_slice %72 {offsets = [0, 0], sizes = [128, 32], strides = [1, 1]} : vector<128x128xf32> to vector<128x32xf32>
    %c18 = arith.constant 18 : index
    %c0_40 = arith.constant 0 : index
    %c0_41 = arith.constant 0 : index
    %74 = vector.load %arg2[%c18, %c0_40, %c0_41] : memref<19x32x128xbf16, #tpu.memory_space<vmem>>, vector<1x32x128xbf16>
    %75 = vector.shape_cast %74 : vector<1x32x128xbf16> to vector<32x128xbf16>
    %76 = arith.extf %75 : vector<32x128xbf16> to vector<32x128xf32>
    %cst_42 = arith.constant dense<0.000000e+00> : vector<128x128xf32>
    %77 = tpu.matmul %73, %76, %cst_42 {dimension_numbers = #tpu.dot_dimension_numbers<[1], [0], [0], [1], [0, 0, 1, 1], [], []>} : vector<128x32xf32>, vector<32x128xf32>, vector<128x128xf32> -> vector<128x128xf32>
    %c18_43 = arith.constant 18 : index
    %c0_44 = arith.constant 0 : index
    %78 = vector.load %arg3[%c18_43, %c0_44] : memref<19x128xf32, #tpu.memory_space<vmem>>, vector<1x128xf32>
    %79 = vector.broadcast %78 : vector<1x128xf32> to vector<128x128xf32>
    %80 = arith.addf %77, %79 : vector<128x128xf32>
    %81 = vector.extract_strided_slice %0 {offsets = [0, 0], sizes = [128, 32], strides = [1, 1]} : vector<128x128xf32> to vector<128x32xf32>
    %c5 = arith.constant 5 : index
    %c0_45 = arith.constant 0 : index
    %c0_46 = arith.constant 0 : index
    %82 = vector.load %arg2[%c5, %c0_45, %c0_46] : memref<19x32x128xbf16, #tpu.memory_space<vmem>>, vector<1x32x128xbf16>
    %83 = vector.shape_cast %82 : vector<1x32x128xbf16> to vector<32x128xbf16>
    %84 = arith.extf %83 : vector<32x128xbf16> to vector<32x128xf32>
    %cst_47 = arith.constant dense<0.000000e+00> : vector<128x128xf32>
    %85 = tpu.matmul %81, %84, %cst_47 {dimension_numbers = #tpu.dot_dimension_numbers<[1], [0], [0], [1], [0, 0, 1, 1], [], []>} : vector<128x32xf32>, vector<32x128xf32>, vector<128x128xf32> -> vector<128x128xf32>
    %c5_48 = arith.constant 5 : index
    %c0_49 = arith.constant 0 : index
    %86 = vector.load %arg3[%c5_48, %c0_49] : memref<19x128xf32, #tpu.memory_space<vmem>>, vector<1x128xf32>
    %87 = vector.broadcast %86 : vector<1x128xf32> to vector<128x128xf32>
    %88 = arith.addf %85, %87 : vector<128x128xf32>
    %89 = math.tanh %88 : vector<128x128xf32>
    %90 = vector.extract_strided_slice %89 {offsets = [0, 0], sizes = [128, 32], strides = [1, 1]} : vector<128x128xf32> to vector<128x32xf32>
    %c6 = arith.constant 6 : index
    %c0_50 = arith.constant 0 : index
    %c0_51 = arith.constant 0 : index
    %91 = vector.load %arg2[%c6, %c0_50, %c0_51] : memref<19x32x128xbf16, #tpu.memory_space<vmem>>, vector<1x32x128xbf16>
    %92 = vector.shape_cast %91 : vector<1x32x128xbf16> to vector<32x128xbf16>
    %93 = arith.extf %92 : vector<32x128xbf16> to vector<32x128xf32>
    %cst_52 = arith.constant dense<0.000000e+00> : vector<128x128xf32>
    %94 = tpu.matmul %90, %93, %cst_52 {dimension_numbers = #tpu.dot_dimension_numbers<[1], [0], [0], [1], [0, 0, 1, 1], [], []>} : vector<128x32xf32>, vector<32x128xf32>, vector<128x128xf32> -> vector<128x128xf32>
    %c6_53 = arith.constant 6 : index
    %c0_54 = arith.constant 0 : index
    %95 = vector.load %arg3[%c6_53, %c0_54] : memref<19x128xf32, #tpu.memory_space<vmem>>, vector<1x128xf32>
    %96 = vector.broadcast %95 : vector<1x128xf32> to vector<128x128xf32>
    %97 = arith.addf %94, %96 : vector<128x128xf32>
    %98 = arith.addf %97, %26 : vector<128x128xf32>
    %99 = math.tanh %98 : vector<128x128xf32>
    %100 = vector.extract_strided_slice %99 {offsets = [0, 0], sizes = [128, 32], strides = [1, 1]} : vector<128x128xf32> to vector<128x32xf32>
    %c7 = arith.constant 7 : index
    %c0_55 = arith.constant 0 : index
    %c0_56 = arith.constant 0 : index
    %101 = vector.load %arg2[%c7, %c0_55, %c0_56] : memref<19x32x128xbf16, #tpu.memory_space<vmem>>, vector<1x32x128xbf16>
    %102 = vector.shape_cast %101 : vector<1x32x128xbf16> to vector<32x128xbf16>
    %103 = arith.extf %102 : vector<32x128xbf16> to vector<32x128xf32>
    %cst_57 = arith.constant dense<0.000000e+00> : vector<128x128xf32>
    %104 = tpu.matmul %100, %103, %cst_57 {dimension_numbers = #tpu.dot_dimension_numbers<[1], [0], [0], [1], [0, 0, 1, 1], [], []>} : vector<128x32xf32>, vector<32x128xf32>, vector<128x128xf32> -> vector<128x128xf32>
    %c7_58 = arith.constant 7 : index
    %c0_59 = arith.constant 0 : index
    %105 = vector.load %arg3[%c7_58, %c0_59] : memref<19x128xf32, #tpu.memory_space<vmem>>, vector<1x128xf32>
    %106 = vector.broadcast %105 : vector<1x128xf32> to vector<128x128xf32>
    %107 = arith.addf %104, %106 : vector<128x128xf32>
    %108 = arith.addf %107, %44 : vector<128x128xf32>
    %109 = math.tanh %108 : vector<128x128xf32>
    %110 = vector.extract_strided_slice %109 {offsets = [0, 0], sizes = [128, 32], strides = [1, 1]} : vector<128x128xf32> to vector<128x32xf32>
    %c8 = arith.constant 8 : index
    %c0_60 = arith.constant 0 : index
    %c0_61 = arith.constant 0 : index
    %111 = vector.load %arg2[%c8, %c0_60, %c0_61] : memref<19x32x128xbf16, #tpu.memory_space<vmem>>, vector<1x32x128xbf16>
    %112 = vector.shape_cast %111 : vector<1x32x128xbf16> to vector<32x128xbf16>
    %113 = arith.extf %112 : vector<32x128xbf16> to vector<32x128xf32>
    %cst_62 = arith.constant dense<0.000000e+00> : vector<128x128xf32>
    %114 = tpu.matmul %110, %113, %cst_62 {dimension_numbers = #tpu.dot_dimension_numbers<[1], [0], [0], [1], [0, 0, 1, 1], [], []>} : vector<128x32xf32>, vector<32x128xf32>, vector<128x128xf32> -> vector<128x128xf32>
    %c8_63 = arith.constant 8 : index
    %c0_64 = arith.constant 0 : index
    %115 = vector.load %arg3[%c8_63, %c0_64] : memref<19x128xf32, #tpu.memory_space<vmem>>, vector<1x128xf32>
    %116 = vector.broadcast %115 : vector<1x128xf32> to vector<128x128xf32>
    %117 = arith.addf %114, %116 : vector<128x128xf32>
    %118 = arith.addf %117, %62 : vector<128x128xf32>
    %119 = math.tanh %118 : vector<128x128xf32>
    %120 = vector.extract_strided_slice %119 {offsets = [0, 0], sizes = [128, 32], strides = [1, 1]} : vector<128x128xf32> to vector<128x32xf32>
    %c9 = arith.constant 9 : index
    %c0_65 = arith.constant 0 : index
    %c0_66 = arith.constant 0 : index
    %121 = vector.load %arg2[%c9, %c0_65, %c0_66] : memref<19x32x128xbf16, #tpu.memory_space<vmem>>, vector<1x32x128xbf16>
    %122 = vector.shape_cast %121 : vector<1x32x128xbf16> to vector<32x128xbf16>
    %123 = arith.extf %122 : vector<32x128xbf16> to vector<32x128xf32>
    %cst_67 = arith.constant dense<0.000000e+00> : vector<128x128xf32>
    %124 = tpu.matmul %120, %123, %cst_67 {dimension_numbers = #tpu.dot_dimension_numbers<[1], [0], [0], [1], [0, 0, 1, 1], [], []>} : vector<128x32xf32>, vector<32x128xf32>, vector<128x128xf32> -> vector<128x128xf32>
    %c9_68 = arith.constant 9 : index
    %c0_69 = arith.constant 0 : index
    %125 = vector.load %arg3[%c9_68, %c0_69] : memref<19x128xf32, #tpu.memory_space<vmem>>, vector<1x128xf32>
    %126 = vector.broadcast %125 : vector<1x128xf32> to vector<128x128xf32>
    %127 = arith.addf %124, %126 : vector<128x128xf32>
    %128 = arith.addf %127, %80 : vector<128x128xf32>
    %129 = vector.extract_strided_slice %0 {offsets = [0, 0], sizes = [128, 32], strides = [1, 1]} : vector<128x128xf32> to vector<128x32xf32>
    %c2 = arith.constant 2 : index
    %c0_70 = arith.constant 0 : index
    %c0_71 = arith.constant 0 : index
    %130 = vector.load %arg2[%c2, %c0_70, %c0_71] : memref<19x32x128xbf16, #tpu.memory_space<vmem>>, vector<1x32x128xbf16>
    %131 = vector.shape_cast %130 : vector<1x32x128xbf16> to vector<32x128xbf16>
    %132 = arith.extf %131 : vector<32x128xbf16> to vector<32x128xf32>
    %cst_72 = arith.constant dense<0.000000e+00> : vector<128x128xf32>
    %133 = tpu.matmul %129, %132, %cst_72 {dimension_numbers = #tpu.dot_dimension_numbers<[1], [0], [0], [1], [0, 0, 1, 1], [], []>} : vector<128x32xf32>, vector<32x128xf32>, vector<128x128xf32> -> vector<128x128xf32>
    %c2_73 = arith.constant 2 : index
    %c0_74 = arith.constant 0 : index
    %134 = vector.load %arg3[%c2_73, %c0_74] : memref<19x128xf32, #tpu.memory_space<vmem>>, vector<1x128xf32>
    %135 = vector.broadcast %134 : vector<1x128xf32> to vector<128x128xf32>
    %136 = arith.addf %133, %135 : vector<128x128xf32>
    %137 = math.tanh %136 : vector<128x128xf32>
    %138 = vector.extract_strided_slice %137 {offsets = [0, 0], sizes = [128, 32], strides = [1, 1]} : vector<128x128xf32> to vector<128x32xf32>
    %c3 = arith.constant 3 : index
    %c0_75 = arith.constant 0 : index
    %c0_76 = arith.constant 0 : index
    %139 = vector.load %arg2[%c3, %c0_75, %c0_76] : memref<19x32x128xbf16, #tpu.memory_space<vmem>>, vector<1x32x128xbf16>
    %140 = vector.shape_cast %139 : vector<1x32x128xbf16> to vector<32x128xbf16>
    %141 = arith.extf %140 : vector<32x128xbf16> to vector<32x128xf32>
    %cst_77 = arith.constant dense<0.000000e+00> : vector<128x128xf32>
    %142 = tpu.matmul %138, %141, %cst_77 {dimension_numbers = #tpu.dot_dimension_numbers<[1], [0], [0], [1], [0, 0, 1, 1], [], []>} : vector<128x32xf32>, vector<32x128xf32>, vector<128x128xf32> -> vector<128x128xf32>
    %c3_78 = arith.constant 3 : index
    %c0_79 = arith.constant 0 : index
    %143 = vector.load %arg3[%c3_78, %c0_79] : memref<19x128xf32, #tpu.memory_space<vmem>>, vector<1x128xf32>
    %144 = vector.broadcast %143 : vector<1x128xf32> to vector<128x128xf32>
    %145 = arith.addf %142, %144 : vector<128x128xf32>
    %146 = arith.addf %145, %108 : vector<128x128xf32>
    %147 = math.tanh %146 : vector<128x128xf32>
    %148 = vector.extract_strided_slice %147 {offsets = [0, 0], sizes = [128, 32], strides = [1, 1]} : vector<128x128xf32> to vector<128x32xf32>
    %c4 = arith.constant 4 : index
    %c0_80 = arith.constant 0 : index
    %c0_81 = arith.constant 0 : index
    %149 = vector.load %arg2[%c4, %c0_80, %c0_81] : memref<19x32x128xbf16, #tpu.memory_space<vmem>>, vector<1x32x128xbf16>
    %150 = vector.shape_cast %149 : vector<1x32x128xbf16> to vector<32x128xbf16>
    %151 = arith.extf %150 : vector<32x128xbf16> to vector<32x128xf32>
    %cst_82 = arith.constant dense<0.000000e+00> : vector<128x128xf32>
    %152 = tpu.matmul %148, %151, %cst_82 {dimension_numbers = #tpu.dot_dimension_numbers<[1], [0], [0], [1], [0, 0, 1, 1], [], []>} : vector<128x32xf32>, vector<32x128xf32>, vector<128x128xf32> -> vector<128x128xf32>
    %c4_83 = arith.constant 4 : index
    %c0_84 = arith.constant 0 : index
    %153 = vector.load %arg3[%c4_83, %c0_84] : memref<19x128xf32, #tpu.memory_space<vmem>>, vector<1x128xf32>
    %154 = vector.broadcast %153 : vector<1x128xf32> to vector<128x128xf32>
    %155 = arith.addf %152, %154 : vector<128x128xf32>
    %156 = arith.addf %155, %128 : vector<128x128xf32>
    %157 = vector.extract_strided_slice %0 {offsets = [0, 0], sizes = [128, 32], strides = [1, 1]} : vector<128x128xf32> to vector<128x32xf32>
    %c0_85 = arith.constant 0 : index
    %c0_86 = arith.constant 0 : index
    %c0_87 = arith.constant 0 : index
    %158 = vector.load %arg2[%c0_85, %c0_86, %c0_87] : memref<19x32x128xbf16, #tpu.memory_space<vmem>>, vector<1x32x128xbf16>
    %159 = vector.shape_cast %158 : vector<1x32x128xbf16> to vector<32x128xbf16>
    %160 = arith.extf %159 : vector<32x128xbf16> to vector<32x128xf32>
    %cst_88 = arith.constant dense<0.000000e+00> : vector<128x128xf32>
    %161 = tpu.matmul %157, %160, %cst_88 {dimension_numbers = #tpu.dot_dimension_numbers<[1], [0], [0], [1], [0, 0, 1, 1], [], []>} : vector<128x32xf32>, vector<32x128xf32>, vector<128x128xf32> -> vector<128x128xf32>
    %c0_89 = arith.constant 0 : index
    %c0_90 = arith.constant 0 : index
    %162 = vector.load %arg3[%c0_89, %c0_90] : memref<19x128xf32, #tpu.memory_space<vmem>>, vector<1x128xf32>
    %163 = vector.broadcast %162 : vector<1x128xf32> to vector<128x128xf32>
    %164 = arith.addf %161, %163 : vector<128x128xf32>
    %165 = math.tanh %164 : vector<128x128xf32>
    %166 = vector.extract_strided_slice %165 {offsets = [0, 0], sizes = [128, 32], strides = [1, 1]} : vector<128x128xf32> to vector<128x32xf32>
    %c1 = arith.constant 1 : index
    %c0_91 = arith.constant 0 : index
    %c0_92 = arith.constant 0 : index
    %167 = vector.load %arg2[%c1, %c0_91, %c0_92] : memref<19x32x128xbf16, #tpu.memory_space<vmem>>, vector<1x32x128xbf16>
    %168 = vector.shape_cast %167 : vector<1x32x128xbf16> to vector<32x128xbf16>
    %169 = arith.extf %168 : vector<32x128xbf16> to vector<32x128xf32>
    %cst_93 = arith.constant dense<0.000000e+00> : vector<128x128xf32>
    %170 = tpu.matmul %166, %169, %cst_93 {dimension_numbers = #tpu.dot_dimension_numbers<[1], [0], [0], [1], [0, 0, 1, 1], [], []>} : vector<128x32xf32>, vector<32x128xf32>, vector<128x128xf32> -> vector<128x128xf32>
    %c1_94 = arith.constant 1 : index
    %c0_95 = arith.constant 0 : index
    %171 = vector.load %arg3[%c1_94, %c0_95] : memref<19x128xf32, #tpu.memory_space<vmem>>, vector<1x128xf32>
    %172 = vector.broadcast %171 : vector<1x128xf32> to vector<128x128xf32>
    %173 = arith.addf %170, %172 : vector<128x128xf32>
    %174 = arith.addf %173, %156 : vector<128x128xf32>
    %c0_96 = arith.constant 0 : index
    %c0_97 = arith.constant 0 : index
    %175 = vector.load %arg4[%c0_96, %c0_97] : memref<128x128xf32, #tpu.memory_space<vmem>>, vector<128x128xf32>
    tpu.vector_store %arg4[%c0_96, %c0_97], %174 {strides = array<i32>} : memref<128x128xf32, #tpu.memory_space<vmem>>, vector<128x128xf32>,
    return
  }
  func.func @transform_0(%arg0: i32) -> (i32, i32) {
    %c0_i32 = arith.constant 0 : i32
    %c0_i32_0 = arith.constant 0 : i32
    return %arg0, %c0_i32 : i32, i32
  }
  func.func @transform_1(%arg0: i32) -> (i32, i32, i32) {
    %c0_i32 = arith.constant 0 : i32
    %c0_i32_0 = arith.constant 0 : i32
    %c0_i32_1 = arith.constant 0 : i32
    %c0_i32_2 = arith.constant 0 : i32
    return %c0_i32, %c0_i32_0, %c0_i32_1 : i32, i32, i32
  }
  func.func @transform_2(%arg0: i32) -> (i32, i32) {
    %c0_i32 = arith.constant 0 : i32
    %c0_i32_0 = arith.constant 0 : i32
    %c0_i32_1 = arith.constant 0 : i32
    return %c0_i32, %c0_i32_0 : i32, i32
  }
  func.func @transform_3(%arg0: i32) -> (i32, i32) {
    %c0_i32 = arith.constant 0 : i32
    %c0_i32_0 = arith.constant 0 : i32
    return %arg0, %c0_i32 : i32, i32
  }
}

</mosaic_0001>

<llo_original>
// kernel: tpu_custom_call.1
$region0: #{tpu_custom_call.1}
  #allocation0 [shape = 'u32[]', space=smem, size = 0x4, offset = 0x4, fixed_abs, tag = 'smem constant byte address 0x4 - core index']
  #allocation1 [shape = 'u32[144,128]{1,0:T(1,128)}', space=vmem, size = 0x12000, scoped, tag = 'internal scratch']
  %s0 = inlined_call_operand.hbm [shape: f32[128,128], index: 0, kind: input, shape index: {}]
  %s1 = inlined_call_operand.hbm [shape: bf16[19,32,128], index: 1, kind: input, shape index: {}]
  %s2 = inlined_call_operand.hbm [shape: f32[19,128], index: 2, kind: input, shape index: {}]
  %s3 = inlined_call_operand.hbm [shape: f32[128,128], index: 3, kind: output, shape index: {}]
  %s4 = sld [smem:[#allocation0]]
  $region34: #{tpu_custom_call.1} parent=0
    _
  %s6 = ssub.s32 1, %s4
  %s7 = scalar_select 0, %s6, %s4
  $region1: #{tpu_custom_call.1} parent=0
    #allocation2 [shape = 'u8[65536]{0}', space=vmem, size = 0x10000, scoped, tag = 'input window, operand 0, single buffered']
    #allocation3 [shape = 's32[1]{0}', space=sflag, size = 0x4, scoped, tag = 'scoped memory for tpu_custom_call.1']
    #allocation4 [shape = 's32[1]{0}', space=sflag, size = 0x4, scoped, tag = 'scoped memory for tpu_custom_call.1']
    #allocation5 [shape = 'u8[155648]{0}', space=vmem, size = 0x26000, scoped, tag = 'input window, operand 1, single buffered']
    #allocation6 [shape = 's32[1]{0}', space=sflag, size = 0x4, scoped, tag = 'scoped memory for tpu_custom_call.1']
    #allocation7 [shape = 'u8[12288]{0}', space=vmem, size = 0x3000, scoped, tag = 'input window, operand 2, single buffered']
    #allocation8 [shape = 'u8[65536]{0}', space=vmem, size = 0x10000, scoped, tag = 'output window, operand 0, single buffered']
    %8 = vsyncpa [#allocation3], 0
    %9 = vsyncpa [#allocation6], 0
    %10 = vsyncpa [#allocation4], 0
    // Predicated region
    $region2: #{tpu_custom_call.1} parent=1 // pred_check
      _
    $region3: #{tpu_custom_call.1} parent=1 // pred_check_branch
      %12 = sbr.rel (0) target = $region5
    $region4: #{tpu_custom_call.1} parent=1 // pred_region
      %s14 = ssub.s32 2048, 2048
      %15 = vsyncadd [#allocation3], %s14
      %s16 = sshll.u32 [#allocation2], 4
      %s17 = int_to_ptr.vmem [resolvable:$true] %s16
      %22 = dma.hbm_to_vmem [thread:$0]  %s0, 2048, %s17, [#allocation3], 128, 128, 8
    $region5: #{tpu_custom_call.1} parent=1 // pred_fallthru
      _
    // Predicated region
    $region6: #{tpu_custom_call.1} parent=1 // pred_check
      _
    $region7: #{tpu_custom_call.1} parent=1 // pred_check_branch
      %24 = sbr.rel (0) target = $region9
    $region8: #{tpu_custom_call.1} parent=1 // pred_region
      %s26 = ssub.s32 4864, 4864
      %27 = vsyncadd [#allocation6], %s26
      %s28 = sshll.u32 [#allocation5], 4
      %s29 = int_to_ptr.vmem [resolvable:$true] %s28
      %34 = dma.hbm_to_vmem [thread:$0]  %s1, 4864, %s29, [#allocation6], 64, 64, 4
    $region9: #{tpu_custom_call.1} parent=1 // pred_fallthru
      _
    // Predicated region
    $region10: #{tpu_custom_call.1} parent=1 // pred_check
      _
    $region11: #{tpu_custom_call.1} parent=1 // pred_check_branch
      %36 = sbr.rel (0) target = $region13
    $region12: #{tpu_custom_call.1} parent=1 // pred_region
      %s38 = ssub.s32 384, 384
      %39 = vsyncadd [#allocation6], %s38
      %s40 = sshll.u32 [#allocation7], 4
      %s41 = int_to_ptr.vmem [resolvable:$true] %s40
      %46 = dma.hbm_to_vmem [thread:$0]  %s2, 384, %s41, [#allocation6], 128, 128, 8
    $region13: #{tpu_custom_call.1} parent=1 // pred_fallthru
      _
    // Predicated region
    $region14: #{tpu_custom_call.1} parent=1 // pred_check
      _
    $region15: #{tpu_custom_call.1} parent=1 // pred_check_branch
      %48 = sbr.rel (0) target = $region17
    $region16: #{tpu_custom_call.1} parent=1 // pred_region
      %49 = dma.done [#allocation3], 2048
    $region17: #{tpu_custom_call.1} parent=1 // pred_fallthru
      _
    // Predicated region
    $region18: #{tpu_custom_call.1} parent=1 // pred_check
      _
    $region19: #{tpu_custom_call.1} parent=1 // pred_check_branch
      %51 = sbr.rel (0) target = $region21
    $region20: #{tpu_custom_call.1} parent=1 // pred_region
      %52 = dma.done [#allocation6], 4864
    $region21: #{tpu_custom_call.1} parent=1 // pred_fallthru
      _
    // Predicated region
    $region22: #{tpu_custom_call.1} parent=1 // pred_check
      _
    $region23: #{tpu_custom_call.1} parent=1 // pred_check_branch
      %54 = sbr.rel (0) target = $region25
    $region24: #{tpu_custom_call.1} parent=1 // pred_region
      %55 = dma.done [#allocation6], 384
    $region25: #{tpu_custom_call.1} parent=1 // pred_fallthru
      _
    %v56 = vld [vmem:[#allocation2] sm:$0xff]
    %v57 = vld [vmem:[#allocation2 + $0x8] sm:$0xff]
    %v58 = vld [vmem:[#allocation2 + $0x10] sm:$0xff]
    %v59 = vld [vmem:[#allocation2 + $0x18] sm:$0xff]
    %v60 = vld [vmem:[#allocation2 + $0x20] sm:$0xff]
    %v61 = vld [vmem:[#allocation2 + $0x28] sm:$0xff]
    %v62 = vld [vmem:[#allocation2 + $0x30] sm:$0xff]
    %v63 = vld [vmem:[#allocation2 + $0x38] sm:$0xff]
    %v64 = vld [vmem:[#allocation2 + $0x40] sm:$0xff]
    %v65 = vld [vmem:[#allocation2 + $0x48] sm:$0xff]
    %v66 = vld [vmem:[#allocation2 + $0x50] sm:$0xff]
    %v67 = vld [vmem:[#allocation2 + $0x58] sm:$0xff]
    %v68 = vld [vmem:[#allocation2 + $0x60] sm:$0xff]
    %v69 = vld [vmem:[#allocation2 + $0x68] sm:$0xff]
    %v70 = vld [vmem:[#allocation2 + $0x70] sm:$0xff]
    %v71 = vld [vmem:[#allocation2 + $0x78] sm:$0xff]
    %s72 = scalar_lea.vmem [#allocation5], 160
    %v73 = vld [vmem:[%s72] sm:$0xf]
    %v74 = vld [vmem:[%s72 + $0x4] sm:$0xf]
    %v75 = vld [vmem:[%s72 + $0x8] sm:$0xf]
    %v76 = vld [vmem:[%s72 + $0xc] sm:$0xf]
    %v77 = vunpack.c.l.bf16 %v73
    %v78 = vunpack.c.l.bf16 %v74
    %v79 = vunpack.c.l.bf16 %v75
    %v80 = vunpack.c.l.bf16 %v76
    %v81 = vld [vmem:[#allocation7 + $0xa] sm:$0x1]
    %v82 = vlaneseq
    %v83 = vshrl.u32 %v82, 7
    %v84 = vsub.s32 0, %v83
    %v85 = vrot.slane %v81, %v84
    %vm86 = vcmask 261120
    %v88 = vsel %vm86, %v56, 0
    %v91 = vsel %vm86, %v57, 0
    %v94 = vsel %vm86, %v58, 0
    %v97 = vsel %vm86, %v59, 0
    %v100 = vsel %vm86, %v60, 0
    %v103 = vsel %vm86, %v61, 0
    %v106 = vsel %vm86, %v62, 0
    %v109 = vsel %vm86, %v63, 0
    %v112 = vsel %vm86, %v64, 0
    %v115 = vsel %vm86, %v65, 0
    %v118 = vsel %vm86, %v66, 0
    %v121 = vsel %vm86, %v67, 0
    %v124 = vsel %vm86, %v68, 0
    %v127 = vsel %vm86, %v69, 0
    %v130 = vsel %vm86, %v70, 0
    %v133 = vsel %vm86, %v71, 0
    %135 = vmatprep.subr.mxu0 0.0
    %136 = vmatpush1.msra.mxu0 0.0
    %137 = vmatprep.subr.mxu0 0.0
    %138 = vmatpush1.msra.mxu0 0.0
    %139 = vmatprep.subr.mxu0 0.0
    %140 = vmatpush1.msra.mxu0 0.0
    %141 = vmatprep.subr.mxu0 0.0
    %142 = vmatpush1.msra.mxu0 0.0
    %143 = vmatprep.subr.mxu0 0.0
    %144 = vmatpush1.msra.mxu0 0.0
    %145 = vmatprep.subr.mxu0 0.0
    %146 = vmatpush1.msra.mxu0 0.0
    %147 = vmatprep.subr.mxu0 0.0
    %148 = vmatpush1.msra.mxu0 0.0
    %149 = vmatprep.subr.mxu0 0.0
    %150 = vmatpush1.msra.mxu0 0.0
    %151 = vmatprep.subr.mxu0 0.0
    %152 = vmatpush1.msra.mxu0 0.0
    %153 = vmatprep.subr.mxu0 0.0
    %154 = vmatpush1.msra.mxu0 0.0
    %155 = vmatprep.subr.mxu0 0.0
    %156 = vmatpush1.msra.mxu0 0.0
    %157 = vmatprep.subr.mxu0 0.0
    %158 = vmatpush1.msra.mxu0 0.0
    %159 = vmatprep.subr.mxu0 0.0
    %160 = vmatpush1.msra.mxu0 %v80
    %161 = vmatprep.subr.mxu0 0.0
    %162 = vmatpush1.msra.mxu0 %v79
    %163 = vmatprep.subr.mxu0 0.0
    %164 = vmatpush1.msra.mxu0 %v78
    %165 = vmatprep.subr.mxu0 0.0
    %166 = vmatpush1.msra.mxu0 %v77
    %167 = vmatprep.subr.mxu0 0.0
    %168 = vmatpush2.msra.mxu0 0.0
    %169 = vmatprep.subr.mxu0 0.0
    %170 = vmatpush2.msra.mxu0 0.0
    %171 = vmatprep.subr.mxu0 0.0
    %172 = vmatpush2.msra.mxu0 0.0
    %173 = vmatprep.subr.mxu0 0.0
    %174 = vmatpush2.msra.mxu0 0.0
    %175 = vmatprep.subr.mxu0 0.0
    %176 = vmatpush2.msra.mxu0 0.0
    %177 = vmatprep.subr.mxu0 0.0
    %178 = vmatpush2.msra.mxu0 0.0
    %179 = vmatprep.subr.mxu0 0.0
    %180 = vmatpush2.msra.mxu0 0.0
    %181 = vmatprep.subr.mxu0 0.0
    %182 = vmatpush2.msra.mxu0 0.0
    %183 = vmatprep.subr.mxu0 0.0
    %184 = vmatpush2.msra.mxu0 0.0
    %185 = vmatprep.subr.mxu0 0.0
    %186 = vmatpush2.msra.mxu0 0.0
    %187 = vmatprep.subr.mxu0 0.0
    %188 = vmatpush2.msra.mxu0 0.0
    %189 = vmatprep.subr.mxu0 0.0
    %190 = vmatpush2.msra.mxu0 0.0
    %191 = vmatprep.subr.mxu0 0.0
    %192 = vmatpush2.msra.mxu0 0.0
    %193 = vmatprep.subr.mxu0 0.0
    %194 = vmatpush2.msra.mxu0 0.0
    %195 = vmatprep.subr.mxu0 0.0
    %196 = vmatpush2.msra.mxu0 0.0
    %197 = vmatprep.subr.mxu0 0.0
    %198 = vmatpush2.msra.mxu0 0.0
    %199 = vmatprep.mubr.f32.mxu0 0.0
    %200 = vmatmul.mubr.f32.gmra.mxu0 %v88
    %v201 = vpop.f32.mrf.mxu0
    %v202 = vadd.f32 %v85, %v201
    %v203 = vpop.f32.mrf.mxu0
    %204 = vmatprep.mubr.f32.mxu0 0.0
    %205 = vmatmul.mubr.f32.gmra.mxu0 %v91
    %v206 = vpop.f32.mrf.mxu0
    %v207 = vadd.f32 %v85, %v206
    %v208 = vpop.f32.mrf.mxu0
    %209 = vmatprep.mubr.f32.mxu0 0.0
    %210 = vmatmul.mubr.f32.gmra.mxu0 %v94
    %v211 = vpop.f32.mrf.mxu0
    %v212 = vadd.f32 %v85, %v211
    %v213 = vpop.f32.mrf.mxu0
    %214 = vmatprep.mubr.f32.mxu0 0.0
    %215 = vmatmul.mubr.f32.gmra.mxu0 %v97
    %v216 = vpop.f32.mrf.mxu0
    %v217 = vadd.f32 %v85, %v216
    %v218 = vpop.f32.mrf.mxu0
    %219 = vmatprep.mubr.f32.mxu0 0.0
    %220 = vmatmul.mubr.f32.gmra.mxu0 %v100
    %v221 = vpop.f32.mrf.mxu0
    %v222 = vadd.f32 %v85, %v221
    %v223 = vpop.f32.mrf.mxu0
    %224 = vmatprep.mubr.f32.mxu0 0.0
    %225 = vmatmul.mubr.f32.gmra.mxu0 %v103
    %v226 = vpop.f32.mrf.mxu0
    %v227 = vadd.f32 %v85, %v226
    %v228 = vpop.f32.mrf.mxu0
    %229 = vmatprep.mubr.f32.mxu0 0.0
    %230 = vmatmul.mubr.f32.gmra.mxu0 %v106
    %v231 = vpop.f32.mrf.mxu0
    %v232 = vadd.f32 %v85, %v231
    %v233 = vpop.f32.mrf.mxu0
    %234 = vmatprep.mubr.f32.mxu0 0.0
    %235 = vmatmul.mubr.f32.gmra.mxu0 %v109
    %v236 = vpop.f32.mrf.mxu0
    %v237 = vadd.f32 %v85, %v236
    %v238 = vpop.f32.mrf.mxu0
    %239 = vmatprep.mubr.f32.mxu0 0.0
    %240 = vmatmul.mubr.f32.gmra.mxu0 %v112
    %v241 = vpop.f32.mrf.mxu0
    %v242 = vadd.f32 %v85, %v241
    %v243 = vpop.f32.mrf.mxu0
    %244 = vmatprep.mubr.f32.mxu0 0.0
    %245 = vmatmul.mubr.f32.gmra.mxu0 %v115
    %v246 = vpop.f32.mrf.mxu0
    %v247 = vadd.f32 %v85, %v246
    %v248 = vpop.f32.mrf.mxu0
    %249 = vmatprep.mubr.f32.mxu0 0.0
    %250 = vmatmul.mubr.f32.gmra.mxu0 %v118
    %v251 = vpop.f32.mrf.mxu0
    %v252 = vadd.f32 %v85, %v251
    %v253 = vpop.f32.mrf.mxu0
    %254 = vmatprep.mubr.f32.mxu0 0.0
    %255 = vmatmul.mubr.f32.gmra.mxu0 %v121
    %v256 = vpop.f32.mrf.mxu0
    %v257 = vadd.f32 %v85, %v256
    %v258 = vpop.f32.mrf.mxu0
    %259 = vmatprep.mubr.f32.mxu0 0.0
    %260 = vmatmul.mubr.f32.gmra.mxu0 %v124
    %v261 = vpop.f32.mrf.mxu0
    %v262 = vadd.f32 %v85, %v261
    %v263 = vpop.f32.mrf.mxu0
    %264 = vmatprep.mubr.f32.mxu0 0.0
    %265 = vmatmul.mubr.f32.gmra.mxu0 %v127
    %v266 = vpop.f32.mrf.mxu0
    %v267 = vadd.f32 %v85, %v266
    %v268 = vpop.f32.mrf.mxu0
    %269 = vmatprep.mubr.f32.mxu0 0.0
    %270 = vmatmul.mubr.f32.gmra.mxu0 %v130
    %v271 = vpop.f32.mrf.mxu0
    %v272 = vadd.f32 %v85, %v271
    %v273 = vpop.f32.mrf.mxu0
    %274 = vmatprep.mubr.f32.mxu0 0.0
    %275 = vmatmul.mubr.f32.gmra.mxu0 %v133
    %v276 = vpop.f32.mrf.mxu0
    %v277 = vadd.f32 %v85, %v276
    %v278 = vpop.f32.mrf.mxu0
    %279 = vdwg.mxu0
    %v280 = vtanh.pop %v202
    %v281 = vtanh.pop %v207
    %v282 = vtanh.pop %v212
    %v283 = vtanh.pop %v217
    %v284 = vtanh.pop %v222
    %v285 = vtanh.pop %v227
    %v286 = vtanh.pop %v232
    %v287 = vtanh.pop %v237
    %v288 = vtanh.pop %v242
    %v289 = vtanh.pop %v247
    %v290 = vtanh.pop %v252
    %v291 = vtanh.pop %v257
    %v292 = vtanh.pop %v262
    %v293 = vtanh.pop %v267
    %v294 = vtanh.pop %v272
    %v295 = vtanh.pop %v277
    %s296 = scalar_lea.vmem [#allocation5], 176
    %v297 = vld [vmem:[%s296] sm:$0xf]
    %v298 = vld [vmem:[%s296 + $0x4] sm:$0xf]
    %v299 = vld [vmem:[%s296 + $0x8] sm:$0xf]
    %v300 = vld [vmem:[%s296 + $0xc] sm:$0xf]
    %v301 = vunpack.c.l.bf16 %v297
    %v302 = vunpack.c.l.bf16 %v298
    %v303 = vunpack.c.l.bf16 %v299
    %v304 = vunpack.c.l.bf16 %v300
    %v305 = vld [vmem:[#allocation7 + $0xb] sm:$0x1]
    %v306 = vlaneseq
    %v307 = vshrl.u32 %v306, 7
    %v308 = vsub.s32 0, %v307
    %v309 = vrot.slane %v305, %v308
    %v311 = vsel %vm86, %v280, 0
    %v314 = vsel %vm86, %v281, 0
    %v317 = vsel %vm86, %v282, 0
    %v320 = vsel %vm86, %v283, 0
    %v323 = vsel %vm86, %v284, 0
    %v326 = vsel %vm86, %v285, 0
    %v329 = vsel %vm86, %v286, 0
    %v332 = vsel %vm86, %v287, 0
    %v335 = vsel %vm86, %v288, 0
    %v338 = vsel %vm86, %v289, 0
    %v341 = vsel %vm86, %v290, 0
    %v344 = vsel %vm86, %v291, 0
    %v347 = vsel %vm86, %v292, 0
    %v350 = vsel %vm86, %v293, 0
    %v353 = vsel %vm86, %v294, 0
    %v356 = vsel %vm86, %v295, 0
    %358 = vmatprep.subr.mxu0 0.0
    %359 = vmatpush1.msra.mxu0 0.0
    %360 = vmatprep.subr.mxu0 0.0
    %361 = vmatpush1.msra.mxu0 0.0
    %362 = vmatprep.subr.mxu0 0.0
    %363 = vmatpush1.msra.mxu0 0.0
    %364 = vmatprep.subr.mxu0 0.0
    %365 = vmatpush1.msra.mxu0 0.0
    %366 = vmatprep.subr.mxu0 0.0
    %367 = vmatpush1.msra.mxu0 0.0
    %368 = vmatprep.subr.mxu0 0.0
    %369 = vmatpush1.msra.mxu0 0.0
    %370 = vmatprep.subr.mxu0 0.0
    %371 = vmatpush1.msra.mxu0 0.0
    %372 = vmatprep.subr.mxu0 0.0
    %373 = vmatpush1.msra.mxu0 0.0
    %374 = vmatprep.subr.mxu0 0.0
    %375 = vmatpush1.msra.mxu0 0.0
    %376 = vmatprep.subr.mxu0 0.0
    %377 = vmatpush1.msra.mxu0 0.0
    %378 = vmatprep.subr.mxu0 0.0
    %379 = vmatpush1.msra.mxu0 0.0
    %380 = vmatprep.subr.mxu0 0.0
    %381 = vmatpush1.msra.mxu0 0.0
    %382 = vmatprep.subr.mxu0 0.0
    %383 = vmatpush1.msra.mxu0 %v304
    %384 = vmatprep.subr.mxu0 0.0
    %385 = vmatpush1.msra.mxu0 %v303
    %386 = vmatprep.subr.mxu0 0.0
    %387 = vmatpush1.msra.mxu0 %v302
    %388 = vmatprep.subr.mxu0 0.0
    %389 = vmatpush1.msra.mxu0 %v301
    %390 = vmatprep.subr.mxu0 0.0
    %391 = vmatpush2.msra.mxu0 0.0
    %392 = vmatprep.subr.mxu0 0.0
    %393 = vmatpush2.msra.mxu0 0.0
    %394 = vmatprep.subr.mxu0 0.0
    %395 = vmatpush2.msra.mxu0 0.0
    %396 = vmatprep.subr.mxu0 0.0
    %397 = vmatpush2.msra.mxu0 0.0
    %398 = vmatprep.subr.mxu0 0.0
    %399 = vmatpush2.msra.mxu0 0.0
    %400 = vmatprep.subr.mxu0 0.0
    %401 = vmatpush2.msra.mxu0 0.0
    %402 = vmatprep.subr.mxu0 0.0
    %403 = vmatpush2.msra.mxu0 0.0
    %404 = vmatprep.subr.mxu0 0.0
    %405 = vmatpush2.msra.mxu0 0.0
    %406 = vmatprep.subr.mxu0 0.0
    %407 = vmatpush2.msra.mxu0 0.0
    %408 = vmatprep.subr.mxu0 0.0
    %409 = vmatpush2.msra.mxu0 0.0
    %410 = vmatprep.subr.mxu0 0.0
    %411 = vmatpush2.msra.mxu0 0.0
    %412 = vmatprep.subr.mxu0 0.0
    %413 = vmatpush2.msra.mxu0 0.0
    %414 = vmatprep.subr.mxu0 0.0
    %415 = vmatpush2.msra.mxu0 0.0
    %416 = vmatprep.subr.mxu0 0.0
    %417 = vmatpush2.msra.mxu0 0.0
    %418 = vmatprep.subr.mxu0 0.0
    %419 = vmatpush2.msra.mxu0 0.0
    %420 = vmatprep.subr.mxu0 0.0
    %421 = vmatpush2.msra.mxu0 0.0
    %422 = vmatprep.mubr.f32.mxu0 0.0
    %423 = vmatmul.mubr.f32.gmra.mxu0 %v311
    %v424 = vpop.f32.mrf.mxu0
    %v425 = vadd.f32 %v309, %v424
    %v426 = vpop.f32.mrf.mxu0
    %427 = vmatprep.mubr.f32.mxu0 0.0
    %428 = vmatmul.mubr.f32.gmra.mxu0 %v314
    %v429 = vpop.f32.mrf.mxu0
    %v430 = vadd.f32 %v309, %v429
    %v431 = vpop.f32.mrf.mxu0
    %432 = vmatprep.mubr.f32.mxu0 0.0
    %433 = vmatmul.mubr.f32.gmra.mxu0 %v317
    %v434 = vpop.f32.mrf.mxu0
    %v435 = vadd.f32 %v309, %v434
    %v436 = vpop.f32.mrf.mxu0
    %437 = vmatprep.mubr.f32.mxu0 0.0
    %438 = vmatmul.mubr.f32.gmra.mxu0 %v320
    %v439 = vpop.f32.mrf.mxu0
    %v440 = vadd.f32 %v309, %v439
    %v441 = vpop.f32.mrf.mxu0
    %442 = vmatprep.mubr.f32.mxu0 0.0
    %443 = vmatmul.mubr.f32.gmra.mxu0 %v323
    %v444 = vpop.f32.mrf.mxu0
    %v445 = vadd.f32 %v309, %v444
    %v446 = vpop.f32.mrf.mxu0
    %447 = vmatprep.mubr.f32.mxu0 0.0
    %448 = vmatmul.mubr.f32.gmra.mxu0 %v326
    %v449 = vpop.f32.mrf.mxu0
    %v450 = vadd.f32 %v309, %v449
    %v451 = vpop.f32.mrf.mxu0
    %452 = vmatprep.mubr.f32.mxu0 0.0
    %453 = vmatmul.mubr.f32.gmra.mxu0 %v329
    %v454 = vpop.f32.mrf.mxu0
    %v455 = vadd.f32 %v309, %v454
    %v456 = vpop.f32.mrf.mxu0
    %457 = vmatprep.mubr.f32.mxu0 0.0
    %458 = vmatmul.mubr.f32.gmra.mxu0 %v332
    %v459 = vpop.f32.mrf.mxu0
    %v460 = vadd.f32 %v309, %v459
    %v461 = vpop.f32.mrf.mxu0
    %462 = vmatprep.mubr.f32.mxu0 0.0
    %463 = vmatmul.mubr.f32.gmra.mxu0 %v335
    %v464 = vpop.f32.mrf.mxu0
    %v465 = vadd.f32 %v309, %v464
    %v466 = vpop.f32.mrf.mxu0
    %467 = vmatprep.mubr.f32.mxu0 0.0
    %468 = vmatmul.mubr.f32.gmra.mxu0 %v338
    %v469 = vpop.f32.mrf.mxu0
    %v470 = vadd.f32 %v309, %v469
    %v471 = vpop.f32.mrf.mxu0
    %472 = vmatprep.mubr.f32.mxu0 0.0
    %473 = vmatmul.mubr.f32.gmra.mxu0 %v341
    %v474 = vpop.f32.mrf.mxu0
    %v475 = vadd.f32 %v309, %v474
    %v476 = vpop.f32.mrf.mxu0
    %477 = vmatprep.mubr.f32.mxu0 0.0
    %478 = vmatmul.mubr.f32.gmra.mxu0 %v344
    %v479 = vpop.f32.mrf.mxu0
    %v480 = vadd.f32 %v309, %v479
    %v481 = vpop.f32.mrf.mxu0
    %482 = vmatprep.mubr.f32.mxu0 0.0
    %483 = vmatmul.mubr.f32.gmra.mxu0 %v347
    %v484 = vpop.f32.mrf.mxu0
    %v485 = vadd.f32 %v309, %v484
    %v486 = vpop.f32.mrf.mxu0
    %487 = vmatprep.mubr.f32.mxu0 0.0
    %488 = vmatmul.mubr.f32.gmra.mxu0 %v350
    %v489 = vpop.f32.mrf.mxu0
    %v490 = vadd.f32 %v309, %v489
    %v491 = vpop.f32.mrf.mxu0
    %492 = vmatprep.mubr.f32.mxu0 0.0
    %493 = vmatmul.mubr.f32.gmra.mxu0 %v353
    %v494 = vpop.f32.mrf.mxu0
    %v495 = vadd.f32 %v309, %v494
    %v496 = vpop.f32.mrf.mxu0
    %497 = vmatprep.mubr.f32.mxu0 0.0
    %498 = vmatmul.mubr.f32.gmra.mxu0 %v356
    %v499 = vpop.f32.mrf.mxu0
    %v500 = vadd.f32 %v309, %v499
    %v501 = vpop.f32.mrf.mxu0
    %502 = vdwg.mxu0
    %v503 = vtanh.pop %v425
    %v504 = vtanh.pop %v430
    %v505 = vtanh.pop %v435
    %v506 = vtanh.pop %v440
    %v507 = vtanh.pop %v445
    %v508 = vtanh.pop %v450
    %v509 = vtanh.pop %v455
    %v510 = vtanh.pop %v460
    %v511 = vtanh.pop %v465
    %v512 = vtanh.pop %v470
    %v513 = vtanh.pop %v475
    %v514 = vtanh.pop %v480
    %v515 = vtanh.pop %v485
    %v516 = vtanh.pop %v490
    %v517 = vtanh.pop %v495
    %v518 = vtanh.pop %v500
    %s519 = scalar_lea.vmem [#allocation5], 192
    %v520 = vld [vmem:[%s519] sm:$0xf]
    %v521 = vld [vmem:[%s519 + $0x4] sm:$0xf]
    %v522 = vld [vmem:[%s519 + $0x8] sm:$0xf]
    %v523 = vld [vmem:[%s519 + $0xc] sm:$0xf]
    %v524 = vunpack.c.l.bf16 %v520
    %v525 = vunpack.c.l.bf16 %v521
    %v526 = vunpack.c.l.bf16 %v522
    %v527 = vunpack.c.l.bf16 %v523
    %v528 = vld [vmem:[#allocation7 + $0xc] sm:$0x1]
    %v529 = vlaneseq
    %v530 = vshrl.u32 %v529, 7
    %v531 = vsub.s32 0, %v530
    %v532 = vrot.slane %v528, %v531
    %v534 = vsel %vm86, %v503, 0
    %v537 = vsel %vm86, %v504, 0
    %v540 = vsel %vm86, %v505, 0
    %v543 = vsel %vm86, %v506, 0
    %v546 = vsel %vm86, %v507, 0
    %v549 = vsel %vm86, %v508, 0
    %v552 = vsel %vm86, %v509, 0
    %v555 = vsel %vm86, %v510, 0
    %v558 = vsel %vm86, %v511, 0
    %v561 = vsel %vm86, %v512, 0
    %v564 = vsel %vm86, %v513, 0
    %v567 = vsel %vm86, %v514, 0
    %v570 = vsel %vm86, %v515, 0
    %v573 = vsel %vm86, %v516, 0
    %v576 = vsel %vm86, %v517, 0
    %v579 = vsel %vm86, %v518, 0
    %581 = vmatprep.subr.mxu0 0.0
    %582 = vmatpush1.msra.mxu0 0.0
    %583 = vmatprep.subr.mxu0 0.0
    %584 = vmatpush1.msra.mxu0 0.0
    %585 = vmatprep.subr.mxu0 0.0
    %586 = vmatpush1.msra.mxu0 0.0
    %587 = vmatprep.subr.mxu0 0.0
    %588 = vmatpush1.msra.mxu0 0.0
    %589 = vmatprep.subr.mxu0 0.0
    %590 = vmatpush1.msra.mxu0 0.0
    %591 = vmatprep.subr.mxu0 0.0
    %592 = vmatpush1.msra.mxu0 0.0
    %593 = vmatprep.subr.mxu0 0.0
    %594 = vmatpush1.msra.mxu0 0.0
    %595 = vmatprep.subr.mxu0 0.0
    %596 = vmatpush1.msra.mxu0 0.0
    %597 = vmatprep.subr.mxu0 0.0
    %598 = vmatpush1.msra.mxu0 0.0
    %599 = vmatprep.subr.mxu0 0.0
    %600 = vmatpush1.msra.mxu0 0.0
    %601 = vmatprep.subr.mxu0 0.0
    %602 = vmatpush1.msra.mxu0 0.0
    %603 = vmatprep.subr.mxu0 0.0
    %604 = vmatpush1.msra.mxu0 0.0
    %605 = vmatprep.subr.mxu0 0.0
    %606 = vmatpush1.msra.mxu0 %v527
    %607 = vmatprep.subr.mxu0 0.0
    %608 = vmatpush1.msra.mxu0 %v526
    %609 = vmatprep.subr.mxu0 0.0
    %610 = vmatpush1.msra.mxu0 %v525
    %611 = vmatprep.subr.mxu0 0.0
    %612 = vmatpush1.msra.mxu0 %v524
    %613 = vmatprep.subr.mxu0 0.0
    %614 = vmatpush2.msra.mxu0 0.0
    %615 = vmatprep.subr.mxu0 0.0
    %616 = vmatpush2.msra.mxu0 0.0
    %617 = vmatprep.subr.mxu0 0.0
    %618 = vmatpush2.msra.mxu0 0.0
    %619 = vmatprep.subr.mxu0 0.0
    %620 = vmatpush2.msra.mxu0 0.0
    %621 = vmatprep.subr.mxu0 0.0
    %622 = vmatpush2.msra.mxu0 0.0
    %623 = vmatprep.subr.mxu0 0.0
    %624 = vmatpush2.msra.mxu0 0.0
    %625 = vmatprep.subr.mxu0 0.0
    %626 = vmatpush2.msra.mxu0 0.0
    %627 = vmatprep.subr.mxu0 0.0
    %628 = vmatpush2.msra.mxu0 0.0
    %629 = vmatprep.subr.mxu0 0.0
    %630 = vmatpush2.msra.mxu0 0.0
    %631 = vmatprep.subr.mxu0 0.0
    %632 = vmatpush2.msra.mxu0 0.0
    %633 = vmatprep.subr.mxu0 0.0
    %634 = vmatpush2.msra.mxu0 0.0
    %635 = vmatprep.subr.mxu0 0.0
    %636 = vmatpush2.msra.mxu0 0.0
    %637 = vmatprep.subr.mxu0 0.0
    %638 = vmatpush2.msra.mxu0 0.0
    %639 = vmatprep.subr.mxu0 0.0
    %640 = vmatpush2.msra.mxu0 0.0
    %641 = vmatprep.subr.mxu0 0.0
    %642 = vmatpush2.msra.mxu0 0.0
    %643 = vmatprep.subr.mxu0 0.0
    %644 = vmatpush2.msra.mxu0 0.0
    %645 = vmatprep.mubr.f32.mxu0 0.0
    %646 = vmatmul.mubr.f32.gmra.mxu0 %v534
    %v647 = vpop.f32.mrf.mxu0
    %v648 = vadd.f32 %v532, %v647
    %v649 = vpop.f32.mrf.mxu0
    %650 = vmatprep.mubr.f32.mxu0 0.0
    %651 = vmatmul.mubr.f32.gmra.mxu0 %v537
    %v652 = vpop.f32.mrf.mxu0
    %v653 = vadd.f32 %v532, %v652
    %v654 = vpop.f32.mrf.mxu0
    %655 = vmatprep.mubr.f32.mxu0 0.0
    %656 = vmatmul.mubr.f32.gmra.mxu0 %v540
    %v657 = vpop.f32.mrf.mxu0
    %v658 = vadd.f32 %v532, %v657
    %v659 = vpop.f32.mrf.mxu0
    %660 = vmatprep.mubr.f32.mxu0 0.0
    %661 = vmatmul.mubr.f32.gmra.mxu0 %v543
    %v662 = vpop.f32.mrf.mxu0
    %v663 = vadd.f32 %v532, %v662
    %v664 = vpop.f32.mrf.mxu0
    %665 = vmatprep.mubr.f32.mxu0 0.0
    %666 = vmatmul.mubr.f32.gmra.mxu0 %v546
    %v667 = vpop.f32.mrf.mxu0
    %v668 = vadd.f32 %v532, %v667
    %v669 = vpop.f32.mrf.mxu0
    %670 = vmatprep.mubr.f32.mxu0 0.0
    %671 = vmatmul.mubr.f32.gmra.mxu0 %v549
    %v672 = vpop.f32.mrf.mxu0
    %v673 = vadd.f32 %v532, %v672
    %v674 = vpop.f32.mrf.mxu0
    %675 = vmatprep.mubr.f32.mxu0 0.0
    %676 = vmatmul.mubr.f32.gmra.mxu0 %v552
    %v677 = vpop.f32.mrf.mxu0
    %v678 = vadd.f32 %v532, %v677
    %v679 = vpop.f32.mrf.mxu0
    %680 = vmatprep.mubr.f32.mxu0 0.0
    %681 = vmatmul.mubr.f32.gmra.mxu0 %v555
    %v682 = vpop.f32.mrf.mxu0
    %v683 = vadd.f32 %v532, %v682
    %v684 = vpop.f32.mrf.mxu0
    %685 = vmatprep.mubr.f32.mxu0 0.0
    %686 = vmatmul.mubr.f32.gmra.mxu0 %v558
    %v687 = vpop.f32.mrf.mxu0
    %v688 = vadd.f32 %v532, %v687
    %v689 = vpop.f32.mrf.mxu0
    %690 = vmatprep.mubr.f32.mxu0 0.0
    %691 = vmatmul.mubr.f32.gmra.mxu0 %v561
    %v692 = vpop.f32.mrf.mxu0
    %v693 = vadd.f32 %v532, %v692
    %v694 = vpop.f32.mrf.mxu0
    %695 = vmatprep.mubr.f32.mxu0 0.0
    %696 = vmatmul.mubr.f32.gmra.mxu0 %v564
    %v697 = vpop.f32.mrf.mxu0
    %v698 = vadd.f32 %v532, %v697
    %v699 = vpop.f32.mrf.mxu0
    %700 = vmatprep.mubr.f32.mxu0 0.0
    %701 = vmatmul.mubr.f32.gmra.mxu0 %v567
    %v702 = vpop.f32.mrf.mxu0
    %v703 = vadd.f32 %v532, %v702
    %v704 = vpop.f32.mrf.mxu0
    %705 = vmatprep.mubr.f32.mxu0 0.0
    %706 = vmatmul.mubr.f32.gmra.mxu0 %v570
    %v707 = vpop.f32.mrf.mxu0
    %v708 = vadd.f32 %v532, %v707
    %v709 = vpop.f32.mrf.mxu0
    %710 = vmatprep.mubr.f32.mxu0 0.0
    %711 = vmatmul.mubr.f32.gmra.mxu0 %v573
    %v712 = vpop.f32.mrf.mxu0
    %v713 = vadd.f32 %v532, %v712
    %v714 = vpop.f32.mrf.mxu0
    %715 = vmatprep.mubr.f32.mxu0 0.0
    %716 = vmatmul.mubr.f32.gmra.mxu0 %v576
    %v717 = vpop.f32.mrf.mxu0
    %v718 = vadd.f32 %v532, %v717
    %v719 = vpop.f32.mrf.mxu0
    %720 = vmatprep.mubr.f32.mxu0 0.0
    %721 = vmatmul.mubr.f32.gmra.mxu0 %v579
    %v722 = vpop.f32.mrf.mxu0
    %v723 = vadd.f32 %v532, %v722
    %v724 = vpop.f32.mrf.mxu0
    %725 = vdwg.mxu0
    %v726 = vtanh.pop %v648
    %v727 = vtanh.pop %v653
    %v728 = vtanh.pop %v658
    %v729 = vtanh.pop %v663
    %v730 = vtanh.pop %v668
    %v731 = vtanh.pop %v673
    %v732 = vtanh.pop %v678
    %v733 = vtanh.pop %v683
    %v734 = vtanh.pop %v688
    %v735 = vtanh.pop %v693
    %v736 = vtanh.pop %v698
    %v737 = vtanh.pop %v703
    %v738 = vtanh.pop %v708
    %v739 = vtanh.pop %v713
    %v740 = vtanh.pop %v718
    %v741 = vtanh.pop %v723
    %s742 = scalar_lea.vmem [#allocation5], 208
    %v743 = vld [vmem:[%s742] sm:$0xf]
    %v744 = vld [vmem:[%s742 + $0x4] sm:$0xf]
    %v745 = vld [vmem:[%s742 + $0x8] sm:$0xf]
    %v746 = vld [vmem:[%s742 + $0xc] sm:$0xf]
    %v747 = vunpack.c.l.bf16 %v743
    %v748 = vunpack.c.l.bf16 %v744
    %v749 = vunpack.c.l.bf16 %v745
    %v750 = vunpack.c.l.bf16 %v746
    %v751 = vld [vmem:[#allocation7 + $0xd] sm:$0x1]
    %v752 = vlaneseq
    %v753 = vshrl.u32 %v752, 7
    %v754 = vsub.s32 0, %v753
    %v755 = vrot.slane %v751, %v754
    %v757 = vsel %vm86, %v726, 0
    %v760 = vsel %vm86, %v727, 0
    %v763 = vsel %vm86, %v728, 0
    %v766 = vsel %vm86, %v729, 0
    %v769 = vsel %vm86, %v730, 0
    %v772 = vsel %vm86, %v731, 0
    %v775 = vsel %vm86, %v732, 0
    %v778 = vsel %vm86, %v733, 0
    %v781 = vsel %vm86, %v734, 0
    %v784 = vsel %vm86, %v735, 0
    %v787 = vsel %vm86, %v736, 0
    %v790 = vsel %vm86, %v737, 0
    %v793 = vsel %vm86, %v738, 0
    %v796 = vsel %vm86, %v739, 0
    %v799 = vsel %vm86, %v740, 0
    %v802 = vsel %vm86, %v741, 0
    %804 = vmatprep.subr.mxu0 0.0
    %805 = vmatpush1.msra.mxu0 0.0
    %806 = vmatprep.subr.mxu0 0.0
    %807 = vmatpush1.msra.mxu0 0.0
    %808 = vmatprep.subr.mxu0 0.0
    %809 = vmatpush1.msra.mxu0 0.0
    %810 = vmatprep.subr.mxu0 0.0
    %811 = vmatpush1.msra.mxu0 0.0
    %812 = vmatprep.subr.mxu0 0.0
    %813 = vmatpush1.msra.mxu0 0.0
    %814 = vmatprep.subr.mxu0 0.0
    %815 = vmatpush1.msra.mxu0 0.0
    %816 = vmatprep.subr.mxu0 0.0
    %817 = vmatpush1.msra.mxu0 0.0
    %818 = vmatprep.subr.mxu0 0.0
    %819 = vmatpush1.msra.mxu0 0.0
    %820 = vmatprep.subr.mxu0 0.0
    %821 = vmatpush1.msra.mxu0 0.0
    %822 = vmatprep.subr.mxu0 0.0
    %823 = vmatpush1.msra.mxu0 0.0
    %824 = vmatprep.subr.mxu0 0.0
    %825 = vmatpush1.msra.mxu0 0.0
    %826 = vmatprep.subr.mxu0 0.0
    %827 = vmatpush1.msra.mxu0 0.0
    %828 = vmatprep.subr.mxu0 0.0
    %829 = vmatpush1.msra.mxu0 %v750
    %830 = vmatprep.subr.mxu0 0.0
    %831 = vmatpush1.msra.mxu0 %v749
    %832 = vmatprep.subr.mxu0 0.0
    %833 = vmatpush1.msra.mxu0 %v748
    %834 = vmatprep.subr.mxu0 0.0
    %835 = vmatpush1.msra.mxu0 %v747
    %836 = vmatprep.subr.mxu0 0.0
    %837 = vmatpush2.msra.mxu0 0.0
    %838 = vmatprep.subr.mxu0 0.0
    %839 = vmatpush2.msra.mxu0 0.0
    %840 = vmatprep.subr.mxu0 0.0
    %841 = vmatpush2.msra.mxu0 0.0
    %842 = vmatprep.subr.mxu0 0.0
    %843 = vmatpush2.msra.mxu0 0.0
    %844 = vmatprep.subr.mxu0 0.0
    %845 = vmatpush2.msra.mxu0 0.0
    %846 = vmatprep.subr.mxu0 0.0
    %847 = vmatpush2.msra.mxu0 0.0
    %848 = vmatprep.subr.mxu0 0.0
    %849 = vmatpush2.msra.mxu0 0.0
    %850 = vmatprep.subr.mxu0 0.0
    %851 = vmatpush2.msra.mxu0 0.0
    %852 = vmatprep.subr.mxu0 0.0
    %853 = vmatpush2.msra.mxu0 0.0
    %854 = vmatprep.subr.mxu0 0.0
    %855 = vmatpush2.msra.mxu0 0.0
    %856 = vmatprep.subr.mxu0 0.0
    %857 = vmatpush2.msra.mxu0 0.0
    %858 = vmatprep.subr.mxu0 0.0
    %859 = vmatpush2.msra.mxu0 0.0
    %860 = vmatprep.subr.mxu0 0.0
    %861 = vmatpush2.msra.mxu0 0.0
    %862 = vmatprep.subr.mxu0 0.0
    %863 = vmatpush2.msra.mxu0 0.0
    %864 = vmatprep.subr.mxu0 0.0
    %865 = vmatpush2.msra.mxu0 0.0
    %866 = vmatprep.subr.mxu0 0.0
    %867 = vmatpush2.msra.mxu0 0.0
    %868 = vmatprep.mubr.f32.mxu0 0.0
    %869 = vmatmul.mubr.f32.gmra.mxu0 %v757
    %v870 = vpop.f32.mrf.mxu0
    %v871 = vadd.f32 %v755, %v870
    %v872 = vpop.f32.mrf.mxu0
    %873 = vmatprep.mubr.f32.mxu0 0.0
    %874 = vmatmul.mubr.f32.gmra.mxu0 %v760
    %v875 = vpop.f32.mrf.mxu0
    %v876 = vadd.f32 %v755, %v875
    %v877 = vpop.f32.mrf.mxu0
    %878 = vmatprep.mubr.f32.mxu0 0.0
    %879 = vmatmul.mubr.f32.gmra.mxu0 %v763
    %v880 = vpop.f32.mrf.mxu0
    %v881 = vadd.f32 %v755, %v880
    %v882 = vpop.f32.mrf.mxu0
    %883 = vmatprep.mubr.f32.mxu0 0.0
    %884 = vmatmul.mubr.f32.gmra.mxu0 %v766
    %v885 = vpop.f32.mrf.mxu0
    %v886 = vadd.f32 %v755, %v885
    %v887 = vpop.f32.mrf.mxu0
    %888 = vmatprep.mubr.f32.mxu0 0.0
    %889 = vmatmul.mubr.f32.gmra.mxu0 %v769
    %v890 = vpop.f32.mrf.mxu0
    %v891 = vadd.f32 %v755, %v890
    %v892 = vpop.f32.mrf.mxu0
    %893 = vmatprep.mubr.f32.mxu0 0.0
    %894 = vmatmul.mubr.f32.gmra.mxu0 %v772
    %v895 = vpop.f32.mrf.mxu0
    %v896 = vadd.f32 %v755, %v895
    %v897 = vpop.f32.mrf.mxu0
    %898 = vmatprep.mubr.f32.mxu0 0.0
    %899 = vmatmul.mubr.f32.gmra.mxu0 %v775
    %v900 = vpop.f32.mrf.mxu0
    %v901 = vadd.f32 %v755, %v900
    %v902 = vpop.f32.mrf.mxu0
    %903 = vmatprep.mubr.f32.mxu0 0.0
    %904 = vmatmul.mubr.f32.gmra.mxu0 %v778
    %v905 = vpop.f32.mrf.mxu0
    %v906 = vadd.f32 %v755, %v905
    %v907 = vpop.f32.mrf.mxu0
    %908 = vmatprep.mubr.f32.mxu0 0.0
    %909 = vmatmul.mubr.f32.gmra.mxu0 %v781
    %v910 = vpop.f32.mrf.mxu0
    %v911 = vadd.f32 %v755, %v910
    %v912 = vpop.f32.mrf.mxu0
    %913 = vmatprep.mubr.f32.mxu0 0.0
    %914 = vmatmul.mubr.f32.gmra.mxu0 %v784
    %v915 = vpop.f32.mrf.mxu0
    %v916 = vadd.f32 %v755, %v915
    %v917 = vpop.f32.mrf.mxu0
    %918 = vmatprep.mubr.f32.mxu0 0.0
    %919 = vmatmul.mubr.f32.gmra.mxu0 %v787
    %v920 = vpop.f32.mrf.mxu0
    %v921 = vadd.f32 %v755, %v920
    %v922 = vpop.f32.mrf.mxu0
    %923 = vmatprep.mubr.f32.mxu0 0.0
    %924 = vmatmul.mubr.f32.gmra.mxu0 %v790
    %v925 = vpop.f32.mrf.mxu0
    %v926 = vadd.f32 %v755, %v925
    %v927 = vpop.f32.mrf.mxu0
    %928 = vmatprep.mubr.f32.mxu0 0.0
    %929 = vmatmul.mubr.f32.gmra.mxu0 %v793
    %v930 = vpop.f32.mrf.mxu0
    %v931 = vadd.f32 %v755, %v930
    %v932 = vpop.f32.mrf.mxu0
    %933 = vmatprep.mubr.f32.mxu0 0.0
    %934 = vmatmul.mubr.f32.gmra.mxu0 %v796
    %v935 = vpop.f32.mrf.mxu0
    %v936 = vadd.f32 %v755, %v935
    %v937 = vpop.f32.mrf.mxu0
    %938 = vmatprep.mubr.f32.mxu0 0.0
    %939 = vmatmul.mubr.f32.gmra.mxu0 %v799
    %v940 = vpop.f32.mrf.mxu0
    %v941 = vadd.f32 %v755, %v940
    %v942 = vpop.f32.mrf.mxu0
    %943 = vmatprep.mubr.f32.mxu0 0.0
    %944 = vmatmul.mubr.f32.gmra.mxu0 %v802
    %v945 = vpop.f32.mrf.mxu0
    %v946 = vadd.f32 %v755, %v945
    %v947 = vpop.f32.mrf.mxu0
    %948 = vdwg.mxu0
    %v949 = vtanh.pop %v871
    %v950 = vtanh.pop %v876
    %v951 = vtanh.pop %v881
    %v952 = vtanh.pop %v886
    %v953 = vtanh.pop %v891
    %v954 = vtanh.pop %v896
    %v955 = vtanh.pop %v901
    %v956 = vtanh.pop %v906
    %v957 = vtanh.pop %v911
    %v958 = vtanh.pop %v916
    %v959 = vtanh.pop %v921
    %v960 = vtanh.pop %v926
    %v961 = vtanh.pop %v931
    %v962 = vtanh.pop %v936
    %v963 = vtanh.pop %v941
    %v964 = vtanh.pop %v946
    %s965 = scalar_lea.vmem [#allocation5], 224
    %v966 = vld [vmem:[%s965] sm:$0xf]
    %v967 = vld [vmem:[%s965 + $0x4] sm:$0xf]
    %v968 = vld [vmem:[%s965 + $0x8] sm:$0xf]
    %v969 = vld [vmem:[%s965 + $0xc] sm:$0xf]
    %v970 = vunpack.c.l.bf16 %v966
    %v971 = vunpack.c.l.bf16 %v967
    %v972 = vunpack.c.l.bf16 %v968
    %v973 = vunpack.c.l.bf16 %v969
    %v974 = vld [vmem:[#allocation7 + $0xe] sm:$0x1]
    %v975 = vlaneseq
    %v976 = vshrl.u32 %v975, 7
    %v977 = vsub.s32 0, %v976
    %v978 = vrot.slane %v974, %v977
    %v980 = vsel %vm86, %v949, 0
    %v983 = vsel %vm86, %v950, 0
    %v986 = vsel %vm86, %v951, 0
    %v989 = vsel %vm86, %v952, 0
    %v992 = vsel %vm86, %v953, 0
    %v995 = vsel %vm86, %v954, 0
    %v998 = vsel %vm86, %v955, 0
    %v1001 = vsel %vm86, %v956, 0
    %v1004 = vsel %vm86, %v957, 0
    %v1007 = vsel %vm86, %v958, 0
    %v1010 = vsel %vm86, %v959, 0
    %v1013 = vsel %vm86, %v960, 0
    %v1016 = vsel %vm86, %v961, 0
    %v1019 = vsel %vm86, %v962, 0
    %v1022 = vsel %vm86, %v963, 0
    %v1025 = vsel %vm86, %v964, 0
    %1027 = vmatprep.subr.mxu0 0.0
    %1028 = vmatpush1.msra.mxu0 0.0
    %1029 = vmatprep.subr.mxu0 0.0
    %1030 = vmatpush1.msra.mxu0 0.0
    %1031 = vmatprep.subr.mxu0 0.0
    %1032 = vmatpush1.msra.mxu0 0.0
    %1033 = vmatprep.subr.mxu0 0.0
    %1034 = vmatpush1.msra.mxu0 0.0
    %1035 = vmatprep.subr.mxu0 0.0
    %1036 = vmatpush1.msra.mxu0 0.0
    %1037 = vmatprep.subr.mxu0 0.0
    %1038 = vmatpush1.msra.mxu0 0.0
    %1039 = vmatprep.subr.mxu0 0.0
    %1040 = vmatpush1.msra.mxu0 0.0
    %1041 = vmatprep.subr.mxu0 0.0
    %1042 = vmatpush1.msra.mxu0 0.0
    %1043 = vmatprep.subr.mxu0 0.0
    %1044 = vmatpush1.msra.mxu0 0.0
    %1045 = vmatprep.subr.mxu0 0.0
    %1046 = vmatpush1.msra.mxu0 0.0
    %1047 = vmatprep.subr.mxu0 0.0
    %1048 = vmatpush1.msra.mxu0 0.0
    %1049 = vmatprep.subr.mxu0 0.0
    %1050 = vmatpush1.msra.mxu0 0.0
    %1051 = vmatprep.subr.mxu0 0.0
    %1052 = vmatpush1.msra.mxu0 %v973
    %1053 = vmatprep.subr.mxu0 0.0
    %1054 = vmatpush1.msra.mxu0 %v972
    %1055 = vmatprep.subr.mxu0 0.0
    %1056 = vmatpush1.msra.mxu0 %v971
    %1057 = vmatprep.subr.mxu0 0.0
    %1058 = vmatpush1.msra.mxu0 %v970
    %1059 = vmatprep.subr.mxu0 0.0
    %1060 = vmatpush2.msra.mxu0 0.0
    %1061 = vmatprep.subr.mxu0 0.0
    %1062 = vmatpush2.msra.mxu0 0.0
    %1063 = vmatprep.subr.mxu0 0.0
    %1064 = vmatpush2.msra.mxu0 0.0
    %1065 = vmatprep.subr.mxu0 0.0
    %1066 = vmatpush2.msra.mxu0 0.0
    %1067 = vmatprep.subr.mxu0 0.0
    %1068 = vmatpush2.msra.mxu0 0.0
    %1069 = vmatprep.subr.mxu0 0.0
    %1070 = vmatpush2.msra.mxu0 0.0
    %1071 = vmatprep.subr.mxu0 0.0
    %1072 = vmatpush2.msra.mxu0 0.0
    %1073 = vmatprep.subr.mxu0 0.0
    %1074 = vmatpush2.msra.mxu0 0.0
    %1075 = vmatprep.subr.mxu0 0.0
    %1076 = vmatpush2.msra.mxu0 0.0
    %1077 = vmatprep.subr.mxu0 0.0
    %1078 = vmatpush2.msra.mxu0 0.0
    %1079 = vmatprep.subr.mxu0 0.0
    %1080 = vmatpush2.msra.mxu0 0.0
    %1081 = vmatprep.subr.mxu0 0.0
    %1082 = vmatpush2.msra.mxu0 0.0
    %1083 = vmatprep.subr.mxu0 0.0
    %1084 = vmatpush2.msra.mxu0 0.0
    %1085 = vmatprep.subr.mxu0 0.0
    %1086 = vmatpush2.msra.mxu0 0.0
    %1087 = vmatprep.subr.mxu0 0.0
    %1088 = vmatpush2.msra.mxu0 0.0
    %1089 = vmatprep.subr.mxu0 0.0
    %1090 = vmatpush2.msra.mxu0 0.0
    %1091 = vmatprep.mubr.f32.mxu0 0.0
    %1092 = vmatmul.mubr.f32.gmra.mxu0 %v980
    %v1093 = vpop.f32.mrf.mxu0
    %v1094 = vadd.f32 %v978, %v1093
    %v1095 = vpop.f32.mrf.mxu0
    %1096 = vmatprep.mubr.f32.mxu0 0.0
    %1097 = vmatmul.mubr.f32.gmra.mxu0 %v983
    %v1098 = vpop.f32.mrf.mxu0
    %v1099 = vadd.f32 %v978, %v1098
    %v1100 = vpop.f32.mrf.mxu0
    %1101 = vmatprep.mubr.f32.mxu0 0.0
    %1102 = vmatmul.mubr.f32.gmra.mxu0 %v986
    %v1103 = vpop.f32.mrf.mxu0
    %v1104 = vadd.f32 %v978, %v1103
    %v1105 = vpop.f32.mrf.mxu0
    %1106 = vmatprep.mubr.f32.mxu0 0.0
    %1107 = vmatmul.mubr.f32.gmra.mxu0 %v989
    %v1108 = vpop.f32.mrf.mxu0
    %v1109 = vadd.f32 %v978, %v1108
    %v1110 = vpop.f32.mrf.mxu0
    %1111 = vmatprep.mubr.f32.mxu0 0.0
    %1112 = vmatmul.mubr.f32.gmra.mxu0 %v992
    %v1113 = vpop.f32.mrf.mxu0
    %v1114 = vadd.f32 %v978, %v1113
    %v1115 = vpop.f32.mrf.mxu0
    %1116 = vmatprep.mubr.f32.mxu0 0.0
    %1117 = vmatmul.mubr.f32.gmra.mxu0 %v995
    %v1118 = vpop.f32.mrf.mxu0
    %v1119 = vadd.f32 %v978, %v1118
    %v1120 = vpop.f32.mrf.mxu0
    %1121 = vmatprep.mubr.f32.mxu0 0.0
    %1122 = vmatmul.mubr.f32.gmra.mxu0 %v998
    %v1123 = vpop.f32.mrf.mxu0
    %v1124 = vadd.f32 %v978, %v1123
    %v1125 = vpop.f32.mrf.mxu0
    %1126 = vmatprep.mubr.f32.mxu0 0.0
    %1127 = vmatmul.mubr.f32.gmra.mxu0 %v1001
    %v1128 = vpop.f32.mrf.mxu0
    %v1129 = vadd.f32 %v978, %v1128
    %v1130 = vpop.f32.mrf.mxu0
    %1131 = vmatprep.mubr.f32.mxu0 0.0
    %1132 = vmatmul.mubr.f32.gmra.mxu0 %v1004
    %v1133 = vpop.f32.mrf.mxu0
    %v1134 = vadd.f32 %v978, %v1133
    %v1135 = vpop.f32.mrf.mxu0
    %1136 = vmatprep.mubr.f32.mxu0 0.0
    %1137 = vmatmul.mubr.f32.gmra.mxu0 %v1007
    %v1138 = vpop.f32.mrf.mxu0
    %v1139 = vadd.f32 %v978, %v1138
    %v1140 = vpop.f32.mrf.mxu0
    %1141 = vmatprep.mubr.f32.mxu0 0.0
    %1142 = vmatmul.mubr.f32.gmra.mxu0 %v1010
    %v1143 = vpop.f32.mrf.mxu0
    %v1144 = vadd.f32 %v978, %v1143
    %v1145 = vpop.f32.mrf.mxu0
    %1146 = vmatprep.mubr.f32.mxu0 0.0
    %1147 = vmatmul.mubr.f32.gmra.mxu0 %v1013
    %v1148 = vpop.f32.mrf.mxu0
    %v1149 = vadd.f32 %v978, %v1148
    %v1150 = vpop.f32.mrf.mxu0
    %1151 = vmatprep.mubr.f32.mxu0 0.0
    %1152 = vmatmul.mubr.f32.gmra.mxu0 %v1016
    %v1153 = vpop.f32.mrf.mxu0
    %v1154 = vadd.f32 %v978, %v1153
    %v1155 = vpop.f32.mrf.mxu0
    %1156 = vmatprep.mubr.f32.mxu0 0.0
    %1157 = vmatmul.mubr.f32.gmra.mxu0 %v1019
    %v1158 = vpop.f32.mrf.mxu0
    %v1159 = vadd.f32 %v978, %v1158
    %v1160 = vpop.f32.mrf.mxu0
    %1161 = vmatprep.mubr.f32.mxu0 0.0
    %1162 = vmatmul.mubr.f32.gmra.mxu0 %v1022
    %v1163 = vpop.f32.mrf.mxu0
    %v1164 = vadd.f32 %v978, %v1163
    %v1165 = vpop.f32.mrf.mxu0
    %1166 = vmatprep.mubr.f32.mxu0 0.0
    %1167 = vmatmul.mubr.f32.gmra.mxu0 %v1025
    %v1168 = vpop.f32.mrf.mxu0
    %v1169 = vadd.f32 %v978, %v1168
    %v1170 = vpop.f32.mrf.mxu0
    %1171 = vdwg.mxu0
    %v1172 = vtanh.pop %v1094
    %v1173 = vtanh.pop %v1099
    %v1174 = vtanh.pop %v1104
    %v1175 = vtanh.pop %v1109
    %v1176 = vtanh.pop %v1114
    %v1177 = vtanh.pop %v1119
    %v1178 = vtanh.pop %v1124
    %v1179 = vtanh.pop %v1129
    %v1180 = vtanh.pop %v1134
    %v1181 = vtanh.pop %v1139
    %v1182 = vtanh.pop %v1144
    %v1183 = vtanh.pop %v1149
    %v1184 = vtanh.pop %v1154
    %v1185 = vtanh.pop %v1159
    %v1186 = vtanh.pop %v1164
    %v1187 = vtanh.pop %v1169
    %s1188 = scalar_lea.vmem [#allocation5], 240
    %v1189 = vld [vmem:[%s1188] sm:$0xf]
    %v1190 = vld [vmem:[%s1188 + $0x4] sm:$0xf]
    %v1191 = vld [vmem:[%s1188 + $0x8] sm:$0xf]
    %v1192 = vld [vmem:[%s1188 + $0xc] sm:$0xf]
    %v1193 = vunpack.c.l.bf16 %v1189
    %v1194 = vunpack.c.l.bf16 %v1190
    %v1195 = vunpack.c.l.bf16 %v1191
    %v1196 = vunpack.c.l.bf16 %v1192
    %v1197 = vld [vmem:[#allocation7 + $0xf] sm:$0x1]
    %v1198 = vlaneseq
    %v1199 = vshrl.u32 %v1198, 7
    %v1200 = vsub.s32 0, %v1199
    %v1201 = vrot.slane %v1197, %v1200
    %v1203 = vsel %vm86, %v1172, 0
    %v1206 = vsel %vm86, %v1173, 0
    %v1209 = vsel %vm86, %v1174, 0
    %v1212 = vsel %vm86, %v1175, 0
    %v1215 = vsel %vm86, %v1176, 0
    %v1218 = vsel %vm86, %v1177, 0
    %v1221 = vsel %vm86, %v1178, 0
    %v1224 = vsel %vm86, %v1179, 0
    %v1227 = vsel %vm86, %v1180, 0
    %v1230 = vsel %vm86, %v1181, 0
    %v1233 = vsel %vm86, %v1182, 0
    %v1236 = vsel %vm86, %v1183, 0
    %v1239 = vsel %vm86, %v1184, 0
    %v1242 = vsel %vm86, %v1185, 0
    %v1245 = vsel %vm86, %v1186, 0
    %v1248 = vsel %vm86, %v1187, 0
    %1250 = vmatprep.subr.mxu0 0.0
    %1251 = vmatpush1.msra.mxu0 0.0
    %1252 = vmatprep.subr.mxu0 0.0
    %1253 = vmatpush1.msra.mxu0 0.0
    %1254 = vmatprep.subr.mxu0 0.0
    %1255 = vmatpush1.msra.mxu0 0.0
    %1256 = vmatprep.subr.mxu0 0.0
    %1257 = vmatpush1.msra.mxu0 0.0
    %1258 = vmatprep.subr.mxu0 0.0
    %1259 = vmatpush1.msra.mxu0 0.0
    %1260 = vmatprep.subr.mxu0 0.0
    %1261 = vmatpush1.msra.mxu0 0.0
    %1262 = vmatprep.subr.mxu0 0.0
    %1263 = vmatpush1.msra.mxu0 0.0
    %1264 = vmatprep.subr.mxu0 0.0
    %1265 = vmatpush1.msra.mxu0 0.0
    %1266 = vmatprep.subr.mxu0 0.0
    %1267 = vmatpush1.msra.mxu0 0.0
    %1268 = vmatprep.subr.mxu0 0.0
    %1269 = vmatpush1.msra.mxu0 0.0
    %1270 = vmatprep.subr.mxu0 0.0
    %1271 = vmatpush1.msra.mxu0 0.0
    %1272 = vmatprep.subr.mxu0 0.0
    %1273 = vmatpush1.msra.mxu0 0.0
    %1274 = vmatprep.subr.mxu0 0.0
    %1275 = vmatpush1.msra.mxu0 %v1196
    %1276 = vmatprep.subr.mxu0 0.0
    %1277 = vmatpush1.msra.mxu0 %v1195
    %1278 = vmatprep.subr.mxu0 0.0
    %1279 = vmatpush1.msra.mxu0 %v1194
    %1280 = vmatprep.subr.mxu0 0.0
    %1281 = vmatpush1.msra.mxu0 %v1193
    %1282 = vmatprep.subr.mxu0 0.0
    %1283 = vmatpush2.msra.mxu0 0.0
    %1284 = vmatprep.subr.mxu0 0.0
    %1285 = vmatpush2.msra.mxu0 0.0
    %1286 = vmatprep.subr.mxu0 0.0
    %1287 = vmatpush2.msra.mxu0 0.0
    %1288 = vmatprep.subr.mxu0 0.0
    %1289 = vmatpush2.msra.mxu0 0.0
    %1290 = vmatprep.subr.mxu0 0.0
    %1291 = vmatpush2.msra.mxu0 0.0
    %1292 = vmatprep.subr.mxu0 0.0
    %1293 = vmatpush2.msra.mxu0 0.0
    %1294 = vmatprep.subr.mxu0 0.0
    %1295 = vmatpush2.msra.mxu0 0.0
    %1296 = vmatprep.subr.mxu0 0.0
    %1297 = vmatpush2.msra.mxu0 0.0
    %1298 = vmatprep.subr.mxu0 0.0
    %1299 = vmatpush2.msra.mxu0 0.0
    %1300 = vmatprep.subr.mxu0 0.0
    %1301 = vmatpush2.msra.mxu0 0.0
    %1302 = vmatprep.subr.mxu0 0.0
    %1303 = vmatpush2.msra.mxu0 0.0
    %1304 = vmatprep.subr.mxu0 0.0
    %1305 = vmatpush2.msra.mxu0 0.0
    %1306 = vmatprep.subr.mxu0 0.0
    %1307 = vmatpush2.msra.mxu0 0.0
    %1308 = vmatprep.subr.mxu0 0.0
    %1309 = vmatpush2.msra.mxu0 0.0
    %1310 = vmatprep.subr.mxu0 0.0
    %1311 = vmatpush2.msra.mxu0 0.0
    %1312 = vmatprep.subr.mxu0 0.0
    %1313 = vmatpush2.msra.mxu0 0.0
    %1314 = vmatprep.mubr.f32.mxu0 0.0
    %1315 = vmatmul.mubr.f32.gmra.mxu0 %v1203
    %v1316 = vpop.f32.mrf.mxu0
    %v1317 = vadd.f32 %v1201, %v1316
    %v1318 = vpop.f32.mrf.mxu0
    %1319 = vmatprep.mubr.f32.mxu0 0.0
    %1320 = vmatmul.mubr.f32.gmra.mxu0 %v1206
    %v1321 = vpop.f32.mrf.mxu0
    %v1322 = vadd.f32 %v1201, %v1321
    %v1323 = vpop.f32.mrf.mxu0
    %1324 = vmatprep.mubr.f32.mxu0 0.0
    %1325 = vmatmul.mubr.f32.gmra.mxu0 %v1209
    %v1326 = vpop.f32.mrf.mxu0
    %v1327 = vadd.f32 %v1201, %v1326
    %v1328 = vpop.f32.mrf.mxu0
    %1329 = vmatprep.mubr.f32.mxu0 0.0
    %1330 = vmatmul.mubr.f32.gmra.mxu0 %v1212
    %v1331 = vpop.f32.mrf.mxu0
    %v1332 = vadd.f32 %v1201, %v1331
    %v1333 = vpop.f32.mrf.mxu0
    %1334 = vmatprep.mubr.f32.mxu0 0.0
    %1335 = vmatmul.mubr.f32.gmra.mxu0 %v1215
    %v1336 = vpop.f32.mrf.mxu0
    %v1337 = vadd.f32 %v1201, %v1336
    %v1338 = vpop.f32.mrf.mxu0
    %1339 = vmatprep.mubr.f32.mxu0 0.0
    %1340 = vmatmul.mubr.f32.gmra.mxu0 %v1218
    %v1341 = vpop.f32.mrf.mxu0
    %v1342 = vadd.f32 %v1201, %v1341
    %v1343 = vpop.f32.mrf.mxu0
    %1344 = vmatprep.mubr.f32.mxu0 0.0
    %1345 = vmatmul.mubr.f32.gmra.mxu0 %v1221
    %v1346 = vpop.f32.mrf.mxu0
    %v1347 = vadd.f32 %v1201, %v1346
    %v1348 = vpop.f32.mrf.mxu0
    %1349 = vmatprep.mubr.f32.mxu0 0.0
    %1350 = vmatmul.mubr.f32.gmra.mxu0 %v1224
    %v1351 = vpop.f32.mrf.mxu0
    %v1352 = vadd.f32 %v1201, %v1351
    %v1353 = vpop.f32.mrf.mxu0
    %1354 = vmatprep.mubr.f32.mxu0 0.0
    %1355 = vmatmul.mubr.f32.gmra.mxu0 %v1227
    %v1356 = vpop.f32.mrf.mxu0
    %v1357 = vadd.f32 %v1201, %v1356
    %v1358 = vpop.f32.mrf.mxu0
    %1359 = vmatprep.mubr.f32.mxu0 0.0
    %1360 = vmatmul.mubr.f32.gmra.mxu0 %v1230
    %v1361 = vpop.f32.mrf.mxu0
    %v1362 = vadd.f32 %v1201, %v1361
    %v1363 = vpop.f32.mrf.mxu0
    %1364 = vmatprep.mubr.f32.mxu0 0.0
    %1365 = vmatmul.mubr.f32.gmra.mxu0 %v1233
    %v1366 = vpop.f32.mrf.mxu0
    %v1367 = vadd.f32 %v1201, %v1366
    %v1368 = vpop.f32.mrf.mxu0
    %1369 = vmatprep.mubr.f32.mxu0 0.0
    %1370 = vmatmul.mubr.f32.gmra.mxu0 %v1236
    %v1371 = vpop.f32.mrf.mxu0
    %v1372 = vadd.f32 %v1201, %v1371
    %v1373 = vpop.f32.mrf.mxu0
    %1374 = vmatprep.mubr.f32.mxu0 0.0
    %1375 = vmatmul.mubr.f32.gmra.mxu0 %v1239
    %v1376 = vpop.f32.mrf.mxu0
    %v1377 = vadd.f32 %v1201, %v1376
    %v1378 = vpop.f32.mrf.mxu0
    %1379 = vmatprep.mubr.f32.mxu0 0.0
    %1380 = vmatmul.mubr.f32.gmra.mxu0 %v1242
    %v1381 = vpop.f32.mrf.mxu0
    %v1382 = vadd.f32 %v1201, %v1381
    %v1383 = vpop.f32.mrf.mxu0
    %1384 = vmatprep.mubr.f32.mxu0 0.0
    %1385 = vmatmul.mubr.f32.gmra.mxu0 %v1245
    %v1386 = vpop.f32.mrf.mxu0
    %v1387 = vadd.f32 %v1201, %v1386
    %v1388 = vpop.f32.mrf.mxu0
    %1389 = vmatprep.mubr.f32.mxu0 0.0
    %1390 = vmatmul.mubr.f32.gmra.mxu0 %v1248
    %v1391 = vpop.f32.mrf.mxu0
    %v1392 = vadd.f32 %v1201, %v1391
    %v1393 = vpop.f32.mrf.mxu0
    %1394 = vdwg.mxu0
    %v1395 = vtanh.pop %v1317
    %v1396 = vtanh.pop %v1322
    %v1397 = vtanh.pop %v1327
    %v1398 = vtanh.pop %v1332
    %v1399 = vtanh.pop %v1337
    %v1400 = vtanh.pop %v1342
    %v1401 = vtanh.pop %v1347
    %v1402 = vtanh.pop %v1352
    %v1403 = vtanh.pop %v1357
    %v1404 = vtanh.pop %v1362
    %v1405 = vtanh.pop %v1367
    %v1406 = vtanh.pop %v1372
    %v1407 = vtanh.pop %v1377
    %v1408 = vtanh.pop %v1382
    %v1409 = vtanh.pop %v1387
    %v1410 = vtanh.pop %v1392
    %s1411 = scalar_lea.vmem [#allocation5], 256
    %v1412 = vld [vmem:[%s1411] sm:$0xf]
    %v1413 = vld [vmem:[%s1411 + $0x4] sm:$0xf]
    %v1414 = vld [vmem:[%s1411 + $0x8] sm:$0xf]
    %v1415 = vld [vmem:[%s1411 + $0xc] sm:$0xf]
    %v1416 = vunpack.c.l.bf16 %v1412
    %v1417 = vunpack.c.l.bf16 %v1413
    %v1418 = vunpack.c.l.bf16 %v1414
    %v1419 = vunpack.c.l.bf16 %v1415
    %v1420 = vld [vmem:[#allocation7 + $0x10] sm:$0x1]
    %v1421 = vlaneseq
    %v1422 = vshrl.u32 %v1421, 7
    %v1423 = vsub.s32 0, %v1422
    %v1424 = vrot.slane %v1420, %v1423
    %v1426 = vsel %vm86, %v1395, 0
    %v1429 = vsel %vm86, %v1396, 0
    %v1432 = vsel %vm86, %v1397, 0
    %v1435 = vsel %vm86, %v1398, 0
    %v1438 = vsel %vm86, %v1399, 0
    %v1441 = vsel %vm86, %v1400, 0
    %v1444 = vsel %vm86, %v1401, 0
    %v1447 = vsel %vm86, %v1402, 0
    %v1450 = vsel %vm86, %v1403, 0
    %v1453 = vsel %vm86, %v1404, 0
    %v1456 = vsel %vm86, %v1405, 0
    %v1459 = vsel %vm86, %v1406, 0
    %v1462 = vsel %vm86, %v1407, 0
    %v1465 = vsel %vm86, %v1408, 0
    %v1468 = vsel %vm86, %v1409, 0
    %v1471 = vsel %vm86, %v1410, 0
    %1473 = vmatprep.subr.mxu0 0.0
    %1474 = vmatpush1.msra.mxu0 0.0
    %1475 = vmatprep.subr.mxu0 0.0
    %1476 = vmatpush1.msra.mxu0 0.0
    %1477 = vmatprep.subr.mxu0 0.0
    %1478 = vmatpush1.msra.mxu0 0.0
    %1479 = vmatprep.subr.mxu0 0.0
    %1480 = vmatpush1.msra.mxu0 0.0
    %1481 = vmatprep.subr.mxu0 0.0
    %1482 = vmatpush1.msra.mxu0 0.0
    %1483 = vmatprep.subr.mxu0 0.0
    %1484 = vmatpush1.msra.mxu0 0.0
    %1485 = vmatprep.subr.mxu0 0.0
    %1486 = vmatpush1.msra.mxu0 0.0
    %1487 = vmatprep.subr.mxu0 0.0
    %1488 = vmatpush1.msra.mxu0 0.0
    %1489 = vmatprep.subr.mxu0 0.0
    %1490 = vmatpush1.msra.mxu0 0.0
    %1491 = vmatprep.subr.mxu0 0.0
    %1492 = vmatpush1.msra.mxu0 0.0
    %1493 = vmatprep.subr.mxu0 0.0
    %1494 = vmatpush1.msra.mxu0 0.0
    %1495 = vmatprep.subr.mxu0 0.0
    %1496 = vmatpush1.msra.mxu0 0.0
    %1497 = vmatprep.subr.mxu0 0.0
    %1498 = vmatpush1.msra.mxu0 %v1419
    %1499 = vmatprep.subr.mxu0 0.0
    %1500 = vmatpush1.msra.mxu0 %v1418
    %1501 = vmatprep.subr.mxu0 0.0
    %1502 = vmatpush1.msra.mxu0 %v1417
    %1503 = vmatprep.subr.mxu0 0.0
    %1504 = vmatpush1.msra.mxu0 %v1416
    %1505 = vmatprep.subr.mxu0 0.0
    %1506 = vmatpush2.msra.mxu0 0.0
    %1507 = vmatprep.subr.mxu0 0.0
    %1508 = vmatpush2.msra.mxu0 0.0
    %1509 = vmatprep.subr.mxu0 0.0
    %1510 = vmatpush2.msra.mxu0 0.0
    %1511 = vmatprep.subr.mxu0 0.0
    %1512 = vmatpush2.msra.mxu0 0.0
    %1513 = vmatprep.subr.mxu0 0.0
    %1514 = vmatpush2.msra.mxu0 0.0
    %1515 = vmatprep.subr.mxu0 0.0
    %1516 = vmatpush2.msra.mxu0 0.0
    %1517 = vmatprep.subr.mxu0 0.0
    %1518 = vmatpush2.msra.mxu0 0.0
    %1519 = vmatprep.subr.mxu0 0.0
    %1520 = vmatpush2.msra.mxu0 0.0
    %1521 = vmatprep.subr.mxu0 0.0
    %1522 = vmatpush2.msra.mxu0 0.0
    %1523 = vmatprep.subr.mxu0 0.0
    %1524 = vmatpush2.msra.mxu0 0.0
    %1525 = vmatprep.subr.mxu0 0.0
    %1526 = vmatpush2.msra.mxu0 0.0
    %1527 = vmatprep.subr.mxu0 0.0
    %1528 = vmatpush2.msra.mxu0 0.0
    %1529 = vmatprep.subr.mxu0 0.0
    %1530 = vmatpush2.msra.mxu0 0.0
    %1531 = vmatprep.subr.mxu0 0.0
    %1532 = vmatpush2.msra.mxu0 0.0
    %1533 = vmatprep.subr.mxu0 0.0
    %1534 = vmatpush2.msra.mxu0 0.0
    %1535 = vmatprep.subr.mxu0 0.0
    %1536 = vmatpush2.msra.mxu0 0.0
    %1537 = vmatprep.mubr.f32.mxu0 0.0
    %1538 = vmatmul.mubr.f32.gmra.mxu0 %v1426
    %v1539 = vpop.f32.mrf.mxu0
    %v1540 = vadd.f32 %v1424, %v1539
    %v1541 = vpop.f32.mrf.mxu0
    %1542 = vmatprep.mubr.f32.mxu0 0.0
    %1543 = vmatmul.mubr.f32.gmra.mxu0 %v1429
    %v1544 = vpop.f32.mrf.mxu0
    %v1545 = vadd.f32 %v1424, %v1544
    %v1546 = vpop.f32.mrf.mxu0
    %1547 = vmatprep.mubr.f32.mxu0 0.0
    %1548 = vmatmul.mubr.f32.gmra.mxu0 %v1432
    %v1549 = vpop.f32.mrf.mxu0
    %v1550 = vadd.f32 %v1424, %v1549
    %v1551 = vpop.f32.mrf.mxu0
    %1552 = vmatprep.mubr.f32.mxu0 0.0
    %1553 = vmatmul.mubr.f32.gmra.mxu0 %v1435
    %v1554 = vpop.f32.mrf.mxu0
    %v1555 = vadd.f32 %v1424, %v1554
    %v1556 = vpop.f32.mrf.mxu0
    %1557 = vmatprep.mubr.f32.mxu0 0.0
    %1558 = vmatmul.mubr.f32.gmra.mxu0 %v1438
    %v1559 = vpop.f32.mrf.mxu0
    %v1560 = vadd.f32 %v1424, %v1559
    %v1561 = vpop.f32.mrf.mxu0
    %1562 = vmatprep.mubr.f32.mxu0 0.0
    %1563 = vmatmul.mubr.f32.gmra.mxu0 %v1441
    %v1564 = vpop.f32.mrf.mxu0
    %v1565 = vadd.f32 %v1424, %v1564
    %v1566 = vpop.f32.mrf.mxu0
    %1567 = vmatprep.mubr.f32.mxu0 0.0
    %1568 = vmatmul.mubr.f32.gmra.mxu0 %v1444
    %v1569 = vpop.f32.mrf.mxu0
    %v1570 = vadd.f32 %v1424, %v1569
    %v1571 = vpop.f32.mrf.mxu0
    %1572 = vmatprep.mubr.f32.mxu0 0.0
    %1573 = vmatmul.mubr.f32.gmra.mxu0 %v1447
    %v1574 = vpop.f32.mrf.mxu0
    %v1575 = vadd.f32 %v1424, %v1574
    %v1576 = vpop.f32.mrf.mxu0
    %1577 = vmatprep.mubr.f32.mxu0 0.0
    %1578 = vmatmul.mubr.f32.gmra.mxu0 %v1450
    %v1579 = vpop.f32.mrf.mxu0
    %v1580 = vadd.f32 %v1424, %v1579
    %v1581 = vpop.f32.mrf.mxu0
    %1582 = vmatprep.mubr.f32.mxu0 0.0
    %1583 = vmatmul.mubr.f32.gmra.mxu0 %v1453
    %v1584 = vpop.f32.mrf.mxu0
    %v1585 = vadd.f32 %v1424, %v1584
    %v1586 = vpop.f32.mrf.mxu0
    %1587 = vmatprep.mubr.f32.mxu0 0.0
    %1588 = vmatmul.mubr.f32.gmra.mxu0 %v1456
    %v1589 = vpop.f32.mrf.mxu0
    %v1590 = vadd.f32 %v1424, %v1589
    %v1591 = vpop.f32.mrf.mxu0
    %1592 = vmatprep.mubr.f32.mxu0 0.0
    %1593 = vmatmul.mubr.f32.gmra.mxu0 %v1459
    %v1594 = vpop.f32.mrf.mxu0
    %v1595 = vadd.f32 %v1424, %v1594
    %v1596 = vpop.f32.mrf.mxu0
    %1597 = vmatprep.mubr.f32.mxu0 0.0
    %1598 = vmatmul.mubr.f32.gmra.mxu0 %v1462
    %v1599 = vpop.f32.mrf.mxu0
    %v1600 = vadd.f32 %v1424, %v1599
    %v1601 = vpop.f32.mrf.mxu0
    %1602 = vmatprep.mubr.f32.mxu0 0.0
    %1603 = vmatmul.mubr.f32.gmra.mxu0 %v1465
    %v1604 = vpop.f32.mrf.mxu0
    %v1605 = vadd.f32 %v1424, %v1604
    %v1606 = vpop.f32.mrf.mxu0
    %1607 = vmatprep.mubr.f32.mxu0 0.0
    %1608 = vmatmul.mubr.f32.gmra.mxu0 %v1468
    %v1609 = vpop.f32.mrf.mxu0
    %v1610 = vadd.f32 %v1424, %v1609
    %v1611 = vpop.f32.mrf.mxu0
    %1612 = vmatprep.mubr.f32.mxu0 0.0
    %1613 = vmatmul.mubr.f32.gmra.mxu0 %v1471
    %v1614 = vpop.f32.mrf.mxu0
    %v1615 = vadd.f32 %v1424, %v1614
    %v1616 = vpop.f32.mrf.mxu0
    %1617 = vdwg.mxu0
    %v1618 = vtanh.pop %v1540
    %v1619 = vtanh.pop %v1545
    %v1620 = vtanh.pop %v1550
    %v1621 = vtanh.pop %v1555
    %v1622 = vtanh.pop %v1560
    %v1623 = vtanh.pop %v1565
    %v1624 = vtanh.pop %v1570
    %v1625 = vtanh.pop %v1575
    %v1626 = vtanh.pop %v1580
    %v1627 = vtanh.pop %v1585
    %v1628 = vtanh.pop %v1590
    %v1629 = vtanh.pop %v1595
    %v1630 = vtanh.pop %v1600
    %v1631 = vtanh.pop %v1605
    %v1632 = vtanh.pop %v1610
    %v1633 = vtanh.pop %v1615
    %s1634 = scalar_lea.vmem [#allocation5], 272
    %v1635 = vld [vmem:[%s1634] sm:$0xf]
    %v1636 = vld [vmem:[%s1634 + $0x4] sm:$0xf]
    %v1637 = vld [vmem:[%s1634 + $0x8] sm:$0xf]
    %v1638 = vld [vmem:[%s1634 + $0xc] sm:$0xf]
    %v1639 = vunpack.c.l.bf16 %v1635
    %v1640 = vunpack.c.l.bf16 %v1636
    %v1641 = vunpack.c.l.bf16 %v1637
    %v1642 = vunpack.c.l.bf16 %v1638
    %v1643 = vld [vmem:[#allocation7 + $0x11] sm:$0x1]
    %v1644 = vlaneseq
    %v1645 = vshrl.u32 %v1644, 7
    %v1646 = vsub.s32 0, %v1645
    %v1647 = vrot.slane %v1643, %v1646
    %v1649 = vsel %vm86, %v1618, 0
    %v1652 = vsel %vm86, %v1619, 0
    %v1655 = vsel %vm86, %v1620, 0
    %v1658 = vsel %vm86, %v1621, 0
    %v1661 = vsel %vm86, %v1622, 0
    %v1664 = vsel %vm86, %v1623, 0
    %v1667 = vsel %vm86, %v1624, 0
    %v1670 = vsel %vm86, %v1625, 0
    %v1673 = vsel %vm86, %v1626, 0
    %v1676 = vsel %vm86, %v1627, 0
    %v1679 = vsel %vm86, %v1628, 0
    %v1682 = vsel %vm86, %v1629, 0
    %v1685 = vsel %vm86, %v1630, 0
    %v1688 = vsel %vm86, %v1631, 0
    %v1691 = vsel %vm86, %v1632, 0
    %v1694 = vsel %vm86, %v1633, 0
    %1696 = vmatprep.subr.mxu0 0.0
    %1697 = vmatpush1.msra.mxu0 0.0
    %1698 = vmatprep.subr.mxu0 0.0
    %1699 = vmatpush1.msra.mxu0 0.0
    %1700 = vmatprep.subr.mxu0 0.0
    %1701 = vmatpush1.msra.mxu0 0.0
    %1702 = vmatprep.subr.mxu0 0.0
    %1703 = vmatpush1.msra.mxu0 0.0
    %1704 = vmatprep.subr.mxu0 0.0
    %1705 = vmatpush1.msra.mxu0 0.0
    %1706 = vmatprep.subr.mxu0 0.0
    %1707 = vmatpush1.msra.mxu0 0.0
    %1708 = vmatprep.subr.mxu0 0.0
    %1709 = vmatpush1.msra.mxu0 0.0
    %1710 = vmatprep.subr.mxu0 0.0
    %1711 = vmatpush1.msra.mxu0 0.0
    %1712 = vmatprep.subr.mxu0 0.0
    %1713 = vmatpush1.msra.mxu0 0.0
    %1714 = vmatprep.subr.mxu0 0.0
    %1715 = vmatpush1.msra.mxu0 0.0
    %1716 = vmatprep.subr.mxu0 0.0
    %1717 = vmatpush1.msra.mxu0 0.0
    %1718 = vmatprep.subr.mxu0 0.0
    %1719 = vmatpush1.msra.mxu0 0.0
    %1720 = vmatprep.subr.mxu0 0.0
    %1721 = vmatpush1.msra.mxu0 %v1642
    %1722 = vmatprep.subr.mxu0 0.0
    %1723 = vmatpush1.msra.mxu0 %v1641
    %1724 = vmatprep.subr.mxu0 0.0
    %1725 = vmatpush1.msra.mxu0 %v1640
    %1726 = vmatprep.subr.mxu0 0.0
    %1727 = vmatpush1.msra.mxu0 %v1639
    %1728 = vmatprep.subr.mxu0 0.0
    %1729 = vmatpush2.msra.mxu0 0.0
    %1730 = vmatprep.subr.mxu0 0.0
    %1731 = vmatpush2.msra.mxu0 0.0
    %1732 = vmatprep.subr.mxu0 0.0
    %1733 = vmatpush2.msra.mxu0 0.0
    %1734 = vmatprep.subr.mxu0 0.0
    %1735 = vmatpush2.msra.mxu0 0.0
    %1736 = vmatprep.subr.mxu0 0.0
    %1737 = vmatpush2.msra.mxu0 0.0
    %1738 = vmatprep.subr.mxu0 0.0
    %1739 = vmatpush2.msra.mxu0 0.0
    %1740 = vmatprep.subr.mxu0 0.0
    %1741 = vmatpush2.msra.mxu0 0.0
    %1742 = vmatprep.subr.mxu0 0.0
    %1743 = vmatpush2.msra.mxu0 0.0
    %1744 = vmatprep.subr.mxu0 0.0
    %1745 = vmatpush2.msra.mxu0 0.0
    %1746 = vmatprep.subr.mxu0 0.0
    %1747 = vmatpush2.msra.mxu0 0.0
    %1748 = vmatprep.subr.mxu0 0.0
    %1749 = vmatpush2.msra.mxu0 0.0
    %1750 = vmatprep.subr.mxu0 0.0
    %1751 = vmatpush2.msra.mxu0 0.0
    %1752 = vmatprep.subr.mxu0 0.0
    %1753 = vmatpush2.msra.mxu0 0.0
    %1754 = vmatprep.subr.mxu0 0.0
    %1755 = vmatpush2.msra.mxu0 0.0
    %1756 = vmatprep.subr.mxu0 0.0
    %1757 = vmatpush2.msra.mxu0 0.0
    %1758 = vmatprep.subr.mxu0 0.0
    %1759 = vmatpush2.msra.mxu0 0.0
    %1760 = vmatprep.mubr.f32.mxu0 0.0
    %1761 = vmatmul.mubr.f32.gmra.mxu0 %v1649
    %v1762 = vpop.f32.mrf.mxu0
    %v1763 = vadd.f32 %v1647, %v1762
    %v1764 = vpop.f32.mrf.mxu0
    %1765 = vmatprep.mubr.f32.mxu0 0.0
    %1766 = vmatmul.mubr.f32.gmra.mxu0 %v1652
    %v1767 = vpop.f32.mrf.mxu0
    %v1768 = vadd.f32 %v1647, %v1767
    %v1769 = vpop.f32.mrf.mxu0
    %1770 = vmatprep.mubr.f32.mxu0 0.0
    %1771 = vmatmul.mubr.f32.gmra.mxu0 %v1655
    %v1772 = vpop.f32.mrf.mxu0
    %v1773 = vadd.f32 %v1647, %v1772
    %v1774 = vpop.f32.mrf.mxu0
    %1775 = vmatprep.mubr.f32.mxu0 0.0
    %1776 = vmatmul.mubr.f32.gmra.mxu0 %v1658
    %v1777 = vpop.f32.mrf.mxu0
    %v1778 = vadd.f32 %v1647, %v1777
    %v1779 = vpop.f32.mrf.mxu0
    %1780 = vmatprep.mubr.f32.mxu0 0.0
    %1781 = vmatmul.mubr.f32.gmra.mxu0 %v1661
    %v1782 = vpop.f32.mrf.mxu0
    %v1783 = vadd.f32 %v1647, %v1782
    %v1784 = vpop.f32.mrf.mxu0
    %1785 = vmatprep.mubr.f32.mxu0 0.0
    %1786 = vmatmul.mubr.f32.gmra.mxu0 %v1664
    %v1787 = vpop.f32.mrf.mxu0
    %v1788 = vadd.f32 %v1647, %v1787
    %v1789 = vpop.f32.mrf.mxu0
    %1790 = vmatprep.mubr.f32.mxu0 0.0
    %1791 = vmatmul.mubr.f32.gmra.mxu0 %v1667
    %v1792 = vpop.f32.mrf.mxu0
    %v1793 = vadd.f32 %v1647, %v1792
    %v1794 = vpop.f32.mrf.mxu0
    %1795 = vmatprep.mubr.f32.mxu0 0.0
    %1796 = vmatmul.mubr.f32.gmra.mxu0 %v1670
    %v1797 = vpop.f32.mrf.mxu0
    %v1798 = vadd.f32 %v1647, %v1797
    %v1799 = vpop.f32.mrf.mxu0
    %1800 = vmatprep.mubr.f32.mxu0 0.0
    %1801 = vmatmul.mubr.f32.gmra.mxu0 %v1673
    %v1802 = vpop.f32.mrf.mxu0
    %v1803 = vadd.f32 %v1647, %v1802
    %v1804 = vpop.f32.mrf.mxu0
    %1805 = vmatprep.mubr.f32.mxu0 0.0
    %1806 = vmatmul.mubr.f32.gmra.mxu0 %v1676
    %v1807 = vpop.f32.mrf.mxu0
    %v1808 = vadd.f32 %v1647, %v1807
    %v1809 = vpop.f32.mrf.mxu0
    %1810 = vmatprep.mubr.f32.mxu0 0.0
    %1811 = vmatmul.mubr.f32.gmra.mxu0 %v1679
    %v1812 = vpop.f32.mrf.mxu0
    %v1813 = vadd.f32 %v1647, %v1812
    %v1814 = vpop.f32.mrf.mxu0
    %1815 = vmatprep.mubr.f32.mxu0 0.0
    %1816 = vmatmul.mubr.f32.gmra.mxu0 %v1682
    %v1817 = vpop.f32.mrf.mxu0
    %v1818 = vadd.f32 %v1647, %v1817
    %v1819 = vpop.f32.mrf.mxu0
    %1820 = vmatprep.mubr.f32.mxu0 0.0
    %1821 = vmatmul.mubr.f32.gmra.mxu0 %v1685
    %v1822 = vpop.f32.mrf.mxu0
    %v1823 = vadd.f32 %v1647, %v1822
    %v1824 = vpop.f32.mrf.mxu0
    %1825 = vmatprep.mubr.f32.mxu0 0.0
    %1826 = vmatmul.mubr.f32.gmra.mxu0 %v1688
    %v1827 = vpop.f32.mrf.mxu0
    %v1828 = vadd.f32 %v1647, %v1827
    %v1829 = vpop.f32.mrf.mxu0
    %1830 = vmatprep.mubr.f32.mxu0 0.0
    %1831 = vmatmul.mubr.f32.gmra.mxu0 %v1691
    %v1832 = vpop.f32.mrf.mxu0
    %v1833 = vadd.f32 %v1647, %v1832
    %v1834 = vpop.f32.mrf.mxu0
    %1835 = vmatprep.mubr.f32.mxu0 0.0
    %1836 = vmatmul.mubr.f32.gmra.mxu0 %v1694
    %v1837 = vpop.f32.mrf.mxu0
    %v1838 = vadd.f32 %v1647, %v1837
    %v1839 = vpop.f32.mrf.mxu0
    %1840 = vdwg.mxu0
    %v1841 = vtanh.pop %v1763
    %v1842 = vtanh.pop %v1768
    %v1843 = vtanh.pop %v1773
    %v1844 = vtanh.pop %v1778
    %v1845 = vtanh.pop %v1783
    %v1846 = vtanh.pop %v1788
    %v1847 = vtanh.pop %v1793
    %v1848 = vtanh.pop %v1798
    %v1849 = vtanh.pop %v1803
    %v1850 = vtanh.pop %v1808
    %v1851 = vtanh.pop %v1813
    %v1852 = vtanh.pop %v1818
    %v1853 = vtanh.pop %v1823
    %v1854 = vtanh.pop %v1828
    %v1855 = vtanh.pop %v1833
    %v1856 = vtanh.pop %v1838
    %s1857 = scalar_lea.vmem [#allocation5], 288
    %v1858 = vld [vmem:[%s1857] sm:$0xf]
    %v1859 = vld [vmem:[%s1857 + $0x4] sm:$0xf]
    %v1860 = vld [vmem:[%s1857 + $0x8] sm:$0xf]
    %v1861 = vld [vmem:[%s1857 + $0xc] sm:$0xf]
    %v1862 = vunpack.c.l.bf16 %v1858
    %v1863 = vunpack.c.l.bf16 %v1859
    %v1864 = vunpack.c.l.bf16 %v1860
    %v1865 = vunpack.c.l.bf16 %v1861
    %v1866 = vld [vmem:[#allocation7 + $0x12] sm:$0x1]
    %v1867 = vlaneseq
    %v1868 = vshrl.u32 %v1867, 7
    %v1869 = vsub.s32 0, %v1868
    %v1870 = vrot.slane %v1866, %v1869
    %v1872 = vsel %vm86, %v1841, 0
    %v1875 = vsel %vm86, %v1842, 0
    %v1878 = vsel %vm86, %v1843, 0
    %v1881 = vsel %vm86, %v1844, 0
    %v1884 = vsel %vm86, %v1845, 0
    %v1887 = vsel %vm86, %v1846, 0
    %v1890 = vsel %vm86, %v1847, 0
    %v1893 = vsel %vm86, %v1848, 0
    %v1896 = vsel %vm86, %v1849, 0
    %v1899 = vsel %vm86, %v1850, 0
    %v1902 = vsel %vm86, %v1851, 0
    %v1905 = vsel %vm86, %v1852, 0
    %v1908 = vsel %vm86, %v1853, 0
    %v1911 = vsel %vm86, %v1854, 0
    %v1914 = vsel %vm86, %v1855, 0
    %v1917 = vsel %vm86, %v1856, 0
    %1919 = vmatprep.subr.mxu0 0.0
    %1920 = vmatpush1.msra.mxu0 0.0
    %1921 = vmatprep.subr.mxu0 0.0
    %1922 = vmatpush1.msra.mxu0 0.0
    %1923 = vmatprep.subr.mxu0 0.0
    %1924 = vmatpush1.msra.mxu0 0.0
    %1925 = vmatprep.subr.mxu0 0.0
    %1926 = vmatpush1.msra.mxu0 0.0
    %1927 = vmatprep.subr.mxu0 0.0
    %1928 = vmatpush1.msra.mxu0 0.0
    %1929 = vmatprep.subr.mxu0 0.0
    %1930 = vmatpush1.msra.mxu0 0.0
    %1931 = vmatprep.subr.mxu0 0.0
    %1932 = vmatpush1.msra.mxu0 0.0
    %1933 = vmatprep.subr.mxu0 0.0
    %1934 = vmatpush1.msra.mxu0 0.0
    %1935 = vmatprep.subr.mxu0 0.0
    %1936 = vmatpush1.msra.mxu0 0.0
    %1937 = vmatprep.subr.mxu0 0.0
    %1938 = vmatpush1.msra.mxu0 0.0
    %1939 = vmatprep.subr.mxu0 0.0
    %1940 = vmatpush1.msra.mxu0 0.0
    %1941 = vmatprep.subr.mxu0 0.0
    %1942 = vmatpush1.msra.mxu0 0.0
    %1943 = vmatprep.subr.mxu0 0.0
    %1944 = vmatpush1.msra.mxu0 %v1865
    %1945 = vmatprep.subr.mxu0 0.0
    %1946 = vmatpush1.msra.mxu0 %v1864
    %1947 = vmatprep.subr.mxu0 0.0
    %1948 = vmatpush1.msra.mxu0 %v1863
    %1949 = vmatprep.subr.mxu0 0.0
    %1950 = vmatpush1.msra.mxu0 %v1862
    %1951 = vmatprep.subr.mxu0 0.0
    %1952 = vmatpush2.msra.mxu0 0.0
    %1953 = vmatprep.subr.mxu0 0.0
    %1954 = vmatpush2.msra.mxu0 0.0
    %1955 = vmatprep.subr.mxu0 0.0
    %1956 = vmatpush2.msra.mxu0 0.0
    %1957 = vmatprep.subr.mxu0 0.0
    %1958 = vmatpush2.msra.mxu0 0.0
    %1959 = vmatprep.subr.mxu0 0.0
    %1960 = vmatpush2.msra.mxu0 0.0
    %1961 = vmatprep.subr.mxu0 0.0
    %1962 = vmatpush2.msra.mxu0 0.0
    %1963 = vmatprep.subr.mxu0 0.0
    %1964 = vmatpush2.msra.mxu0 0.0
    %1965 = vmatprep.subr.mxu0 0.0
    %1966 = vmatpush2.msra.mxu0 0.0
    %1967 = vmatprep.subr.mxu0 0.0
    %1968 = vmatpush2.msra.mxu0 0.0
    %1969 = vmatprep.subr.mxu0 0.0
    %1970 = vmatpush2.msra.mxu0 0.0
    %1971 = vmatprep.subr.mxu0 0.0
    %1972 = vmatpush2.msra.mxu0 0.0
    %1973 = vmatprep.subr.mxu0 0.0
    %1974 = vmatpush2.msra.mxu0 0.0
    %1975 = vmatprep.subr.mxu0 0.0
    %1976 = vmatpush2.msra.mxu0 0.0
    %1977 = vmatprep.subr.mxu0 0.0
    %1978 = vmatpush2.msra.mxu0 0.0
    %1979 = vmatprep.subr.mxu0 0.0
    %1980 = vmatpush2.msra.mxu0 0.0
    %1981 = vmatprep.subr.mxu0 0.0
    %1982 = vmatpush2.msra.mxu0 0.0
    %1983 = vmatprep.mubr.f32.mxu0 0.0
    %1984 = vmatmul.mubr.f32.gmra.mxu0 %v1872
    %v1985 = vpop.f32.mrf.mxu0
    %v1986 = vadd.f32 %v1870, %v1985
    %v1987 = vpop.f32.mrf.mxu0
    %1988 = vmatprep.mubr.f32.mxu0 0.0
    %1989 = vmatmul.mubr.f32.gmra.mxu0 %v1875
    %v1990 = vpop.f32.mrf.mxu0
    %v1991 = vadd.f32 %v1870, %v1990
    %v1992 = vpop.f32.mrf.mxu0
    %1993 = vmatprep.mubr.f32.mxu0 0.0
    %1994 = vmatmul.mubr.f32.gmra.mxu0 %v1878
    %v1995 = vpop.f32.mrf.mxu0
    %v1996 = vadd.f32 %v1870, %v1995
    %v1997 = vpop.f32.mrf.mxu0
    %1998 = vmatprep.mubr.f32.mxu0 0.0
    %1999 = vmatmul.mubr.f32.gmra.mxu0 %v1881
    %v2000 = vpop.f32.mrf.mxu0
    %v2001 = vadd.f32 %v1870, %v2000
    %v2002 = vpop.f32.mrf.mxu0
    %2003 = vmatprep.mubr.f32.mxu0 0.0
    %2004 = vmatmul.mubr.f32.gmra.mxu0 %v1884
    %v2005 = vpop.f32.mrf.mxu0
    %v2006 = vadd.f32 %v1870, %v2005
    %v2007 = vpop.f32.mrf.mxu0
    %2008 = vmatprep.mubr.f32.mxu0 0.0
    %2009 = vmatmul.mubr.f32.gmra.mxu0 %v1887
    %v2010 = vpop.f32.mrf.mxu0
    %v2011 = vadd.f32 %v1870, %v2010
    %v2012 = vpop.f32.mrf.mxu0
    %2013 = vmatprep.mubr.f32.mxu0 0.0
    %2014 = vmatmul.mubr.f32.gmra.mxu0 %v1890
    %v2015 = vpop.f32.mrf.mxu0
    %v2016 = vadd.f32 %v1870, %v2015
    %v2017 = vpop.f32.mrf.mxu0
    %2018 = vmatprep.mubr.f32.mxu0 0.0
    %2019 = vmatmul.mubr.f32.gmra.mxu0 %v1893
    %v2020 = vpop.f32.mrf.mxu0
    %v2021 = vadd.f32 %v1870, %v2020
    %v2022 = vpop.f32.mrf.mxu0
    %2023 = vmatprep.mubr.f32.mxu0 0.0
    %2024 = vmatmul.mubr.f32.gmra.mxu0 %v1896
    %v2025 = vpop.f32.mrf.mxu0
    %v2026 = vadd.f32 %v1870, %v2025
    %v2027 = vpop.f32.mrf.mxu0
    %2028 = vmatprep.mubr.f32.mxu0 0.0
    %2029 = vmatmul.mubr.f32.gmra.mxu0 %v1899
    %v2030 = vpop.f32.mrf.mxu0
    %v2031 = vadd.f32 %v1870, %v2030
    %v2032 = vpop.f32.mrf.mxu0
    %2033 = vmatprep.mubr.f32.mxu0 0.0
    %2034 = vmatmul.mubr.f32.gmra.mxu0 %v1902
    %v2035 = vpop.f32.mrf.mxu0
    %v2036 = vadd.f32 %v1870, %v2035
    %v2037 = vpop.f32.mrf.mxu0
    %2038 = vmatprep.mubr.f32.mxu0 0.0
    %2039 = vmatmul.mubr.f32.gmra.mxu0 %v1905
    %v2040 = vpop.f32.mrf.mxu0
    %v2041 = vadd.f32 %v1870, %v2040
    %v2042 = vpop.f32.mrf.mxu0
    %2043 = vmatprep.mubr.f32.mxu0 0.0
    %2044 = vmatmul.mubr.f32.gmra.mxu0 %v1908
    %v2045 = vpop.f32.mrf.mxu0
    %v2046 = vadd.f32 %v1870, %v2045
    %v2047 = vpop.f32.mrf.mxu0
    %2048 = vmatprep.mubr.f32.mxu0 0.0
    %2049 = vmatmul.mubr.f32.gmra.mxu0 %v1911
    %v2050 = vpop.f32.mrf.mxu0
    %v2051 = vadd.f32 %v1870, %v2050
    %v2052 = vpop.f32.mrf.mxu0
    %2053 = vmatprep.mubr.f32.mxu0 0.0
    %2054 = vmatmul.mubr.f32.gmra.mxu0 %v1914
    %v2055 = vpop.f32.mrf.mxu0
    %v2056 = vadd.f32 %v1870, %v2055
    %v2057 = vpop.f32.mrf.mxu0
    %2058 = vmatprep.mubr.f32.mxu0 0.0
    %2059 = vmatmul.mubr.f32.gmra.mxu0 %v1917
    %v2060 = vpop.f32.mrf.mxu0
    %v2061 = vadd.f32 %v1870, %v2060
    %v2062 = vpop.f32.mrf.mxu0
    %2063 = vdwg.mxu0
    %s2064 = scalar_lea.vmem [#allocation5], 80
    %v2065 = vld [vmem:[%s2064] sm:$0xf]
    %v2066 = vld [vmem:[%s2064 + $0x4] sm:$0xf]
    %v2067 = vld [vmem:[%s2064 + $0x8] sm:$0xf]
    %v2068 = vld [vmem:[%s2064 + $0xc] sm:$0xf]
    %v2069 = vunpack.c.l.bf16 %v2065
    %v2070 = vunpack.c.l.bf16 %v2066
    %v2071 = vunpack.c.l.bf16 %v2067
    %v2072 = vunpack.c.l.bf16 %v2068
    %v2073 = vld [vmem:[#allocation7 + $0x5] sm:$0x1]
    %v2074 = vlaneseq
    %v2075 = vshrl.u32 %v2074, 7
    %v2076 = vsub.s32 0, %v2075
    %v2077 = vrot.slane %v2073, %v2076
    %2078 = vmatprep.subr.mxu0 0.0
    %2079 = vmatpush1.msra.mxu0 0.0
    %2080 = vmatprep.subr.mxu0 0.0
    %2081 = vmatpush1.msra.mxu0 0.0
    %2082 = vmatprep.subr.mxu0 0.0
    %2083 = vmatpush1.msra.mxu0 0.0
    %2084 = vmatprep.subr.mxu0 0.0
    %2085 = vmatpush1.msra.mxu0 0.0
    %2086 = vmatprep.subr.mxu0 0.0
    %2087 = vmatpush1.msra.mxu0 0.0
    %2088 = vmatprep.subr.mxu0 0.0
    %2089 = vmatpush1.msra.mxu0 0.0
    %2090 = vmatprep.subr.mxu0 0.0
    %2091 = vmatpush1.msra.mxu0 0.0
    %2092 = vmatprep.subr.mxu0 0.0
    %2093 = vmatpush1.msra.mxu0 0.0
    %2094 = vmatprep.subr.mxu0 0.0
    %2095 = vmatpush1.msra.mxu0 0.0
    %2096 = vmatprep.subr.mxu0 0.0
    %2097 = vmatpush1.msra.mxu0 0.0
    %2098 = vmatprep.subr.mxu0 0.0
    %2099 = vmatpush1.msra.mxu0 0.0
    %2100 = vmatprep.subr.mxu0 0.0
    %2101 = vmatpush1.msra.mxu0 0.0
    %2102 = vmatprep.subr.mxu0 0.0
    %2103 = vmatpush1.msra.mxu0 %v2072
    %2104 = vmatprep.subr.mxu0 0.0
    %2105 = vmatpush1.msra.mxu0 %v2071
    %2106 = vmatprep.subr.mxu0 0.0
    %2107 = vmatpush1.msra.mxu0 %v2070
    %2108 = vmatprep.subr.mxu0 0.0
    %2109 = vmatpush1.msra.mxu0 %v2069
    %2110 = vmatprep.subr.mxu0 0.0
    %2111 = vmatpush2.msra.mxu0 0.0
    %2112 = vmatprep.subr.mxu0 0.0
    %2113 = vmatpush2.msra.mxu0 0.0
    %2114 = vmatprep.subr.mxu0 0.0
    %2115 = vmatpush2.msra.mxu0 0.0
    %2116 = vmatprep.subr.mxu0 0.0
    %2117 = vmatpush2.msra.mxu0 0.0
    %2118 = vmatprep.subr.mxu0 0.0
    %2119 = vmatpush2.msra.mxu0 0.0
    %2120 = vmatprep.subr.mxu0 0.0
    %2121 = vmatpush2.msra.mxu0 0.0
    %2122 = vmatprep.subr.mxu0 0.0
    %2123 = vmatpush2.msra.mxu0 0.0
    %2124 = vmatprep.subr.mxu0 0.0
    %2125 = vmatpush2.msra.mxu0 0.0
    %2126 = vmatprep.subr.mxu0 0.0
    %2127 = vmatpush2.msra.mxu0 0.0
    %2128 = vmatprep.subr.mxu0 0.0
    %2129 = vmatpush2.msra.mxu0 0.0
    %2130 = vmatprep.subr.mxu0 0.0
    %2131 = vmatpush2.msra.mxu0 0.0
    %2132 = vmatprep.subr.mxu0 0.0
    %2133 = vmatpush2.msra.mxu0 0.0
    %2134 = vmatprep.subr.mxu0 0.0
    %2135 = vmatpush2.msra.mxu0 0.0
    %2136 = vmatprep.subr.mxu0 0.0
    %2137 = vmatpush2.msra.mxu0 0.0
    %2138 = vmatprep.subr.mxu0 0.0
    %2139 = vmatpush2.msra.mxu0 0.0
    %2140 = vmatprep.subr.mxu0 0.0
    %2141 = vmatpush2.msra.mxu0 0.0
    %2142 = vmatprep.mubr.f32.mxu0 0.0
    %2143 = vmatmul.mubr.f32.gmra.mxu0 %v88
    %v2144 = vpop.f32.mrf.mxu0
    %v2145 = vadd.f32 %v2077, %v2144
    %v2146 = vpop.f32.mrf.mxu0
    %2147 = vmatprep.mubr.f32.mxu0 0.0
    %2148 = vmatmul.mubr.f32.gmra.mxu0 %v91
    %v2149 = vpop.f32.mrf.mxu0
    %v2150 = vadd.f32 %v2077, %v2149
    %v2151 = vpop.f32.mrf.mxu0
    %2152 = vmatprep.mubr.f32.mxu0 0.0
    %2153 = vmatmul.mubr.f32.gmra.mxu0 %v94
    %v2154 = vpop.f32.mrf.mxu0
    %v2155 = vadd.f32 %v2077, %v2154
    %v2156 = vpop.f32.mrf.mxu0
    %2157 = vmatprep.mubr.f32.mxu0 0.0
    %2158 = vmatmul.mubr.f32.gmra.mxu0 %v97
    %v2159 = vpop.f32.mrf.mxu0
    %v2160 = vadd.f32 %v2077, %v2159
    %v2161 = vpop.f32.mrf.mxu0
    %2162 = vmatprep.mubr.f32.mxu0 0.0
    %2163 = vmatmul.mubr.f32.gmra.mxu0 %v100
    %v2164 = vpop.f32.mrf.mxu0
    %v2165 = vadd.f32 %v2077, %v2164
    %v2166 = vpop.f32.mrf.mxu0
    %2167 = vmatprep.mubr.f32.mxu0 0.0
    %2168 = vmatmul.mubr.f32.gmra.mxu0 %v103
    %v2169 = vpop.f32.mrf.mxu0
    %v2170 = vadd.f32 %v2077, %v2169
    %v2171 = vpop.f32.mrf.mxu0
    %2172 = vmatprep.mubr.f32.mxu0 0.0
    %2173 = vmatmul.mubr.f32.gmra.mxu0 %v106
    %v2174 = vpop.f32.mrf.mxu0
    %v2175 = vadd.f32 %v2077, %v2174
    %v2176 = vpop.f32.mrf.mxu0
    %2177 = vmatprep.mubr.f32.mxu0 0.0
    %2178 = vmatmul.mubr.f32.gmra.mxu0 %v109
    %v2179 = vpop.f32.mrf.mxu0
    %v2180 = vadd.f32 %v2077, %v2179
    %v2181 = vpop.f32.mrf.mxu0
    %2182 = vmatprep.mubr.f32.mxu0 0.0
    %2183 = vmatmul.mubr.f32.gmra.mxu0 %v112
    %v2184 = vpop.f32.mrf.mxu0
    %v2185 = vadd.f32 %v2077, %v2184
    %v2186 = vpop.f32.mrf.mxu0
    %2187 = vmatprep.mubr.f32.mxu0 0.0
    %2188 = vmatmul.mubr.f32.gmra.mxu0 %v115
    %v2189 = vpop.f32.mrf.mxu0
    %v2190 = vadd.f32 %v2077, %v2189
    %v2191 = vpop.f32.mrf.mxu0
    %2192 = vmatprep.mubr.f32.mxu0 0.0
    %2193 = vmatmul.mubr.f32.gmra.mxu0 %v118
    %v2194 = vpop.f32.mrf.mxu0
    %v2195 = vadd.f32 %v2077, %v2194
    %v2196 = vpop.f32.mrf.mxu0
    %2197 = vmatprep.mubr.f32.mxu0 0.0
    %2198 = vmatmul.mubr.f32.gmra.mxu0 %v121
    %v2199 = vpop.f32.mrf.mxu0
    %v2200 = vadd.f32 %v2077, %v2199
    %v2201 = vpop.f32.mrf.mxu0
    %2202 = vmatprep.mubr.f32.mxu0 0.0
    %2203 = vmatmul.mubr.f32.gmra.mxu0 %v124
    %v2204 = vpop.f32.mrf.mxu0
    %v2205 = vadd.f32 %v2077, %v2204
    %v2206 = vpop.f32.mrf.mxu0
    %2207 = vmatprep.mubr.f32.mxu0 0.0
    %2208 = vmatmul.mubr.f32.gmra.mxu0 %v127
    %v2209 = vpop.f32.mrf.mxu0
    %v2210 = vadd.f32 %v2077, %v2209
    %v2211 = vpop.f32.mrf.mxu0
    %2212 = vmatprep.mubr.f32.mxu0 0.0
    %2213 = vmatmul.mubr.f32.gmra.mxu0 %v130
    %v2214 = vpop.f32.mrf.mxu0
    %v2215 = vadd.f32 %v2077, %v2214
    %v2216 = vpop.f32.mrf.mxu0
    %2217 = vmatprep.mubr.f32.mxu0 0.0
    %2218 = vmatmul.mubr.f32.gmra.mxu0 %v133
    %v2219 = vpop.f32.mrf.mxu0
    %v2220 = vadd.f32 %v2077, %v2219
    %v2221 = vpop.f32.mrf.mxu0
    %2222 = vdwg.mxu0
    %v2223 = vtanh.pop %v2145
    %v2224 = vtanh.pop %v2150
    %v2225 = vtanh.pop %v2155
    %v2226 = vtanh.pop %v2160
    %v2227 = vtanh.pop %v2165
    %v2228 = vtanh.pop %v2170
    %v2229 = vtanh.pop %v2175
    %v2230 = vtanh.pop %v2180
    %v2231 = vtanh.pop %v2185
    %v2232 = vtanh.pop %v2190
    %v2233 = vtanh.pop %v2195
    %v2234 = vtanh.pop %v2200
    %v2235 = vtanh.pop %v2205
    %v2236 = vtanh.pop %v2210
    %v2237 = vtanh.pop %v2215
    %v2238 = vtanh.pop %v2220
    %s2239 = scalar_lea.vmem [#allocation5], 96
    %v2240 = vld [vmem:[%s2239] sm:$0xf]
    %v2241 = vld [vmem:[%s2239 + $0x4] sm:$0xf]
    %v2242 = vld [vmem:[%s2239 + $0x8] sm:$0xf]
    %v2243 = vld [vmem:[%s2239 + $0xc] sm:$0xf]
    %v2244 = vunpack.c.l.bf16 %v2240
    %v2245 = vunpack.c.l.bf16 %v2241
    %v2246 = vunpack.c.l.bf16 %v2242
    %v2247 = vunpack.c.l.bf16 %v2243
    %v2248 = vld [vmem:[#allocation7 + $0x6] sm:$0x1]
    %v2249 = vlaneseq
    %v2250 = vshrl.u32 %v2249, 7
    %v2251 = vsub.s32 0, %v2250
    %v2252 = vrot.slane %v2248, %v2251
    %v2254 = vsel %vm86, %v2223, 0
    %v2257 = vsel %vm86, %v2224, 0
    %v2260 = vsel %vm86, %v2225, 0
    %v2263 = vsel %vm86, %v2226, 0
    %v2266 = vsel %vm86, %v2227, 0
    %v2269 = vsel %vm86, %v2228, 0
    %v2272 = vsel %vm86, %v2229, 0
    %v2275 = vsel %vm86, %v2230, 0
    %v2278 = vsel %vm86, %v2231, 0
    %v2281 = vsel %vm86, %v2232, 0
    %v2284 = vsel %vm86, %v2233, 0
    %v2287 = vsel %vm86, %v2234, 0
    %v2290 = vsel %vm86, %v2235, 0
    %v2293 = vsel %vm86, %v2236, 0
    %v2296 = vsel %vm86, %v2237, 0
    %v2299 = vsel %vm86, %v2238, 0
    %2301 = vmatprep.subr.mxu0 0.0
    %2302 = vmatpush1.msra.mxu0 0.0
    %2303 = vmatprep.subr.mxu0 0.0
    %2304 = vmatpush1.msra.mxu0 0.0
    %2305 = vmatprep.subr.mxu0 0.0
    %2306 = vmatpush1.msra.mxu0 0.0
    %2307 = vmatprep.subr.mxu0 0.0
    %2308 = vmatpush1.msra.mxu0 0.0
    %2309 = vmatprep.subr.mxu0 0.0
    %2310 = vmatpush1.msra.mxu0 0.0
    %2311 = vmatprep.subr.mxu0 0.0
    %2312 = vmatpush1.msra.mxu0 0.0
    %2313 = vmatprep.subr.mxu0 0.0
    %2314 = vmatpush1.msra.mxu0 0.0
    %2315 = vmatprep.subr.mxu0 0.0
    %2316 = vmatpush1.msra.mxu0 0.0
    %2317 = vmatprep.subr.mxu0 0.0
    %2318 = vmatpush1.msra.mxu0 0.0
    %2319 = vmatprep.subr.mxu0 0.0
    %2320 = vmatpush1.msra.mxu0 0.0
    %2321 = vmatprep.subr.mxu0 0.0
    %2322 = vmatpush1.msra.mxu0 0.0
    %2323 = vmatprep.subr.mxu0 0.0
    %2324 = vmatpush1.msra.mxu0 0.0
    %2325 = vmatprep.subr.mxu0 0.0
    %2326 = vmatpush1.msra.mxu0 %v2247
    %2327 = vmatprep.subr.mxu0 0.0
    %2328 = vmatpush1.msra.mxu0 %v2246
    %2329 = vmatprep.subr.mxu0 0.0
    %2330 = vmatpush1.msra.mxu0 %v2245
    %2331 = vmatprep.subr.mxu0 0.0
    %2332 = vmatpush1.msra.mxu0 %v2244
    %2333 = vmatprep.subr.mxu0 0.0
    %2334 = vmatpush2.msra.mxu0 0.0
    %2335 = vmatprep.subr.mxu0 0.0
    %2336 = vmatpush2.msra.mxu0 0.0
    %2337 = vmatprep.subr.mxu0 0.0
    %2338 = vmatpush2.msra.mxu0 0.0
    %2339 = vmatprep.subr.mxu0 0.0
    %2340 = vmatpush2.msra.mxu0 0.0
    %2341 = vmatprep.subr.mxu0 0.0
    %2342 = vmatpush2.msra.mxu0 0.0
    %2343 = vmatprep.subr.mxu0 0.0
    %2344 = vmatpush2.msra.mxu0 0.0
    %2345 = vmatprep.subr.mxu0 0.0
    %2346 = vmatpush2.msra.mxu0 0.0
    %2347 = vmatprep.subr.mxu0 0.0
    %2348 = vmatpush2.msra.mxu0 0.0
    %2349 = vmatprep.subr.mxu0 0.0
    %2350 = vmatpush2.msra.mxu0 0.0
    %2351 = vmatprep.subr.mxu0 0.0
    %2352 = vmatpush2.msra.mxu0 0.0
    %2353 = vmatprep.subr.mxu0 0.0
    %2354 = vmatpush2.msra.mxu0 0.0
    %2355 = vmatprep.subr.mxu0 0.0
    %2356 = vmatpush2.msra.mxu0 0.0
    %2357 = vmatprep.subr.mxu0 0.0
    %2358 = vmatpush2.msra.mxu0 0.0
    %2359 = vmatprep.subr.mxu0 0.0
    %2360 = vmatpush2.msra.mxu0 0.0
    %2361 = vmatprep.subr.mxu0 0.0
    %2362 = vmatpush2.msra.mxu0 0.0
    %2363 = vmatprep.subr.mxu0 0.0
    %2364 = vmatpush2.msra.mxu0 0.0
    %2365 = vmatprep.mubr.f32.mxu0 0.0
    %2366 = vmatmul.mubr.f32.gmra.mxu0 %v2254
    %v2367 = vpop.f32.mrf.mxu0
    %v2368 = vadd.f32 %v2252, %v2367
    %v2369 = vpop.f32.mrf.mxu0
    %2370 = vmatprep.mubr.f32.mxu0 0.0
    %2371 = vmatmul.mubr.f32.gmra.mxu0 %v2257
    %v2372 = vpop.f32.mrf.mxu0
    %v2373 = vadd.f32 %v2252, %v2372
    %v2374 = vpop.f32.mrf.mxu0
    %2375 = vmatprep.mubr.f32.mxu0 0.0
    %2376 = vmatmul.mubr.f32.gmra.mxu0 %v2260
    %v2377 = vpop.f32.mrf.mxu0
    %v2378 = vadd.f32 %v2252, %v2377
    %v2379 = vpop.f32.mrf.mxu0
    %2380 = vmatprep.mubr.f32.mxu0 0.0
    %2381 = vmatmul.mubr.f32.gmra.mxu0 %v2263
    %v2382 = vpop.f32.mrf.mxu0
    %v2383 = vadd.f32 %v2252, %v2382
    %v2384 = vpop.f32.mrf.mxu0
    %2385 = vmatprep.mubr.f32.mxu0 0.0
    %2386 = vmatmul.mubr.f32.gmra.mxu0 %v2266
    %v2387 = vpop.f32.mrf.mxu0
    %v2388 = vadd.f32 %v2252, %v2387
    %v2389 = vpop.f32.mrf.mxu0
    %2390 = vmatprep.mubr.f32.mxu0 0.0
    %2391 = vmatmul.mubr.f32.gmra.mxu0 %v2269
    %v2392 = vpop.f32.mrf.mxu0
    %v2393 = vadd.f32 %v2252, %v2392
    %v2394 = vpop.f32.mrf.mxu0
    %2395 = vmatprep.mubr.f32.mxu0 0.0
    %2396 = vmatmul.mubr.f32.gmra.mxu0 %v2272
    %v2397 = vpop.f32.mrf.mxu0
    %v2398 = vadd.f32 %v2252, %v2397
    %v2399 = vpop.f32.mrf.mxu0
    %2400 = vmatprep.mubr.f32.mxu0 0.0
    %2401 = vmatmul.mubr.f32.gmra.mxu0 %v2275
    %v2402 = vpop.f32.mrf.mxu0
    %v2403 = vadd.f32 %v2252, %v2402
    %v2404 = vpop.f32.mrf.mxu0
    %2405 = vmatprep.mubr.f32.mxu0 0.0
    %2406 = vmatmul.mubr.f32.gmra.mxu0 %v2278
    %v2407 = vpop.f32.mrf.mxu0
    %v2408 = vadd.f32 %v2252, %v2407
    %v2409 = vpop.f32.mrf.mxu0
    %2410 = vmatprep.mubr.f32.mxu0 0.0
    %2411 = vmatmul.mubr.f32.gmra.mxu0 %v2281
    %v2412 = vpop.f32.mrf.mxu0
    %v2413 = vadd.f32 %v2252, %v2412
    %v2414 = vpop.f32.mrf.mxu0
    %2415 = vmatprep.mubr.f32.mxu0 0.0
    %2416 = vmatmul.mubr.f32.gmra.mxu0 %v2284
    %v2417 = vpop.f32.mrf.mxu0
    %v2418 = vadd.f32 %v2252, %v2417
    %v2419 = vpop.f32.mrf.mxu0
    %2420 = vmatprep.mubr.f32.mxu0 0.0
    %2421 = vmatmul.mubr.f32.gmra.mxu0 %v2287
    %v2422 = vpop.f32.mrf.mxu0
    %v2423 = vadd.f32 %v2252, %v2422
    %v2424 = vpop.f32.mrf.mxu0
    %2425 = vmatprep.mubr.f32.mxu0 0.0
    %2426 = vmatmul.mubr.f32.gmra.mxu0 %v2290
    %v2427 = vpop.f32.mrf.mxu0
    %v2428 = vadd.f32 %v2252, %v2427
    %v2429 = vpop.f32.mrf.mxu0
    %2430 = vmatprep.mubr.f32.mxu0 0.0
    %2431 = vmatmul.mubr.f32.gmra.mxu0 %v2293
    %v2432 = vpop.f32.mrf.mxu0
    %v2433 = vadd.f32 %v2252, %v2432
    %v2434 = vpop.f32.mrf.mxu0
    %2435 = vmatprep.mubr.f32.mxu0 0.0
    %2436 = vmatmul.mubr.f32.gmra.mxu0 %v2296
    %v2437 = vpop.f32.mrf.mxu0
    %v2438 = vadd.f32 %v2252, %v2437
    %v2439 = vpop.f32.mrf.mxu0
    %2440 = vmatprep.mubr.f32.mxu0 0.0
    %2441 = vmatmul.mubr.f32.gmra.mxu0 %v2299
    %v2442 = vpop.f32.mrf.mxu0
    %v2443 = vadd.f32 %v2252, %v2442
    %v2444 = vpop.f32.mrf.mxu0
    %2445 = vdwg.mxu0
    %v2446 = vadd.f32 %v2368, %v648
    %v2447 = vadd.f32 %v2373, %v653
    %v2448 = vadd.f32 %v2378, %v658
    %v2449 = vadd.f32 %v2383, %v663
    %v2450 = vadd.f32 %v2388, %v668
    %v2451 = vadd.f32 %v2393, %v673
    %v2452 = vadd.f32 %v2398, %v678
    %v2453 = vadd.f32 %v2403, %v683
    %v2454 = vadd.f32 %v2408, %v688
    %v2455 = vadd.f32 %v2413, %v693
    %v2456 = vadd.f32 %v2418, %v698
    %v2457 = vadd.f32 %v2423, %v703
    %v2458 = vadd.f32 %v2428, %v708
    %v2459 = vadd.f32 %v2433, %v713
    %v2460 = vadd.f32 %v2438, %v718
    %v2461 = vadd.f32 %v2443, %v723
    %v2462 = vtanh.pop %v2446
    %v2463 = vtanh.pop %v2447
    %v2464 = vtanh.pop %v2448
    %v2465 = vtanh.pop %v2449
    %v2466 = vtanh.pop %v2450
    %v2467 = vtanh.pop %v2451
    %v2468 = vtanh.pop %v2452
    %v2469 = vtanh.pop %v2453
    %v2470 = vtanh.pop %v2454
    %v2471 = vtanh.pop %v2455
    %v2472 = vtanh.pop %v2456
    %v2473 = vtanh.pop %v2457
    %v2474 = vtanh.pop %v2458
    %v2475 = vtanh.pop %v2459
    %v2476 = vtanh.pop %v2460
    %v2477 = vtanh.pop %v2461
    %s2478 = scalar_lea.vmem [#allocation5], 112
    %v2479 = vld [vmem:[%s2478] sm:$0xf]
    %v2480 = vld [vmem:[%s2478 + $0x4] sm:$0xf]
    %v2481 = vld [vmem:[%s2478 + $0x8] sm:$0xf]
    %v2482 = vld [vmem:[%s2478 + $0xc] sm:$0xf]
    %v2483 = vunpack.c.l.bf16 %v2479
    %v2484 = vunpack.c.l.bf16 %v2480
    %v2485 = vunpack.c.l.bf16 %v2481
    %v2486 = vunpack.c.l.bf16 %v2482
    %v2487 = vld [vmem:[#allocation7 + $0x7] sm:$0x1]
    %v2488 = vlaneseq
    %v2489 = vshrl.u32 %v2488, 7
    %v2490 = vsub.s32 0, %v2489
    %v2491 = vrot.slane %v2487, %v2490
    %v2493 = vsel %vm86, %v2462, 0
    %v2496 = vsel %vm86, %v2463, 0
    %v2499 = vsel %vm86, %v2464, 0
    %v2502 = vsel %vm86, %v2465, 0
    %v2505 = vsel %vm86, %v2466, 0
    %v2508 = vsel %vm86, %v2467, 0
    %v2511 = vsel %vm86, %v2468, 0
    %v2514 = vsel %vm86, %v2469, 0
    %v2517 = vsel %vm86, %v2470, 0
    %v2520 = vsel %vm86, %v2471, 0
    %v2523 = vsel %vm86, %v2472, 0
    %v2526 = vsel %vm86, %v2473, 0
    %v2529 = vsel %vm86, %v2474, 0
    %v2532 = vsel %vm86, %v2475, 0
    %v2535 = vsel %vm86, %v2476, 0
    %v2538 = vsel %vm86, %v2477, 0
    %2540 = vmatprep.subr.mxu0 0.0
    %2541 = vmatpush1.msra.mxu0 0.0
    %2542 = vmatprep.subr.mxu0 0.0
    %2543 = vmatpush1.msra.mxu0 0.0
    %2544 = vmatprep.subr.mxu0 0.0
    %2545 = vmatpush1.msra.mxu0 0.0
    %2546 = vmatprep.subr.mxu0 0.0
    %2547 = vmatpush1.msra.mxu0 0.0
    %2548 = vmatprep.subr.mxu0 0.0
    %2549 = vmatpush1.msra.mxu0 0.0
    %2550 = vmatprep.subr.mxu0 0.0
    %2551 = vmatpush1.msra.mxu0 0.0
    %2552 = vmatprep.subr.mxu0 0.0
    %2553 = vmatpush1.msra.mxu0 0.0
    %2554 = vmatprep.subr.mxu0 0.0
    %2555 = vmatpush1.msra.mxu0 0.0
    %2556 = vmatprep.subr.mxu0 0.0
    %2557 = vmatpush1.msra.mxu0 0.0
    %2558 = vmatprep.subr.mxu0 0.0
    %2559 = vmatpush1.msra.mxu0 0.0
    %2560 = vmatprep.subr.mxu0 0.0
    %2561 = vmatpush1.msra.mxu0 0.0
    %2562 = vmatprep.subr.mxu0 0.0
    %2563 = vmatpush1.msra.mxu0 0.0
    %2564 = vmatprep.subr.mxu0 0.0
    %2565 = vmatpush1.msra.mxu0 %v2486
    %2566 = vmatprep.subr.mxu0 0.0
    %2567 = vmatpush1.msra.mxu0 %v2485
    %2568 = vmatprep.subr.mxu0 0.0
    %2569 = vmatpush1.msra.mxu0 %v2484
    %2570 = vmatprep.subr.mxu0 0.0
    %2571 = vmatpush1.msra.mxu0 %v2483
    %2572 = vmatprep.subr.mxu0 0.0
    %2573 = vmatpush2.msra.mxu0 0.0
    %2574 = vmatprep.subr.mxu0 0.0
    %2575 = vmatpush2.msra.mxu0 0.0
    %2576 = vmatprep.subr.mxu0 0.0
    %2577 = vmatpush2.msra.mxu0 0.0
    %2578 = vmatprep.subr.mxu0 0.0
    %2579 = vmatpush2.msra.mxu0 0.0
    %2580 = vmatprep.subr.mxu0 0.0
    %2581 = vmatpush2.msra.mxu0 0.0
    %2582 = vmatprep.subr.mxu0 0.0
    %2583 = vmatpush2.msra.mxu0 0.0
    %2584 = vmatprep.subr.mxu0 0.0
    %2585 = vmatpush2.msra.mxu0 0.0
    %2586 = vmatprep.subr.mxu0 0.0
    %2587 = vmatpush2.msra.mxu0 0.0
    %2588 = vmatprep.subr.mxu0 0.0
    %2589 = vmatpush2.msra.mxu0 0.0
    %2590 = vmatprep.subr.mxu0 0.0
    %2591 = vmatpush2.msra.mxu0 0.0
    %2592 = vmatprep.subr.mxu0 0.0
    %2593 = vmatpush2.msra.mxu0 0.0
    %2594 = vmatprep.subr.mxu0 0.0
    %2595 = vmatpush2.msra.mxu0 0.0
    %2596 = vmatprep.subr.mxu0 0.0
    %2597 = vmatpush2.msra.mxu0 0.0
    %2598 = vmatprep.subr.mxu0 0.0
    %2599 = vmatpush2.msra.mxu0 0.0
    %2600 = vmatprep.subr.mxu0 0.0
    %2601 = vmatpush2.msra.mxu0 0.0
    %2602 = vmatprep.subr.mxu0 0.0
    %2603 = vmatpush2.msra.mxu0 0.0
    %2604 = vmatprep.mubr.f32.mxu0 0.0
    %2605 = vmatmul.mubr.f32.gmra.mxu0 %v2493
    %v2606 = vpop.f32.mrf.mxu0
    %v2607 = vadd.f32 %v2491, %v2606
    %v2608 = vpop.f32.mrf.mxu0
    %2609 = vmatprep.mubr.f32.mxu0 0.0
    %2610 = vmatmul.mubr.f32.gmra.mxu0 %v2496
    %v2611 = vpop.f32.mrf.mxu0
    %v2612 = vadd.f32 %v2491, %v2611
    %v2613 = vpop.f32.mrf.mxu0
    %2614 = vmatprep.mubr.f32.mxu0 0.0
    %2615 = vmatmul.mubr.f32.gmra.mxu0 %v2499
    %v2616 = vpop.f32.mrf.mxu0
    %v2617 = vadd.f32 %v2491, %v2616
    %v2618 = vpop.f32.mrf.mxu0
    %2619 = vmatprep.mubr.f32.mxu0 0.0
    %2620 = vmatmul.mubr.f32.gmra.mxu0 %v2502
    %v2621 = vpop.f32.mrf.mxu0
    %v2622 = vadd.f32 %v2491, %v2621
    %v2623 = vpop.f32.mrf.mxu0
    %2624 = vmatprep.mubr.f32.mxu0 0.0
    %2625 = vmatmul.mubr.f32.gmra.mxu0 %v2505
    %v2626 = vpop.f32.mrf.mxu0
    %v2627 = vadd.f32 %v2491, %v2626
    %v2628 = vpop.f32.mrf.mxu0
    %2629 = vmatprep.mubr.f32.mxu0 0.0
    %2630 = vmatmul.mubr.f32.gmra.mxu0 %v2508
    %v2631 = vpop.f32.mrf.mxu0
    %v2632 = vadd.f32 %v2491, %v2631
    %v2633 = vpop.f32.mrf.mxu0
    %2634 = vmatprep.mubr.f32.mxu0 0.0
    %2635 = vmatmul.mubr.f32.gmra.mxu0 %v2511
    %v2636 = vpop.f32.mrf.mxu0
    %v2637 = vadd.f32 %v2491, %v2636
    %v2638 = vpop.f32.mrf.mxu0
    %2639 = vmatprep.mubr.f32.mxu0 0.0
    %2640 = vmatmul.mubr.f32.gmra.mxu0 %v2514
    %v2641 = vpop.f32.mrf.mxu0
    %v2642 = vadd.f32 %v2491, %v2641
    %v2643 = vpop.f32.mrf.mxu0
    %2644 = vmatprep.mubr.f32.mxu0 0.0
    %2645 = vmatmul.mubr.f32.gmra.mxu0 %v2517
    %v2646 = vpop.f32.mrf.mxu0
    %v2647 = vadd.f32 %v2491, %v2646
    %v2648 = vpop.f32.mrf.mxu0
    %2649 = vmatprep.mubr.f32.mxu0 0.0
    %2650 = vmatmul.mubr.f32.gmra.mxu0 %v2520
    %v2651 = vpop.f32.mrf.mxu0
    %v2652 = vadd.f32 %v2491, %v2651
    %v2653 = vpop.f32.mrf.mxu0
    %2654 = vmatprep.mubr.f32.mxu0 0.0
    %2655 = vmatmul.mubr.f32.gmra.mxu0 %v2523
    %v2656 = vpop.f32.mrf.mxu0
    %v2657 = vadd.f32 %v2491, %v2656
    %v2658 = vpop.f32.mrf.mxu0
    %2659 = vmatprep.mubr.f32.mxu0 0.0
    %2660 = vmatmul.mubr.f32.gmra.mxu0 %v2526
    %v2661 = vpop.f32.mrf.mxu0
    %v2662 = vadd.f32 %v2491, %v2661
    %v2663 = vpop.f32.mrf.mxu0
    %2664 = vmatprep.mubr.f32.mxu0 0.0
    %2665 = vmatmul.mubr.f32.gmra.mxu0 %v2529
    %v2666 = vpop.f32.mrf.mxu0
    %v2667 = vadd.f32 %v2491, %v2666
    %v2668 = vpop.f32.mrf.mxu0
    %2669 = vmatprep.mubr.f32.mxu0 0.0
    %2670 = vmatmul.mubr.f32.gmra.mxu0 %v2532
    %v2671 = vpop.f32.mrf.mxu0
    %v2672 = vadd.f32 %v2491, %v2671
    %v2673 = vpop.f32.mrf.mxu0
    %2674 = vmatprep.mubr.f32.mxu0 0.0
    %2675 = vmatmul.mubr.f32.gmra.mxu0 %v2535
    %v2676 = vpop.f32.mrf.mxu0
    %v2677 = vadd.f32 %v2491, %v2676
    %v2678 = vpop.f32.mrf.mxu0
    %2679 = vmatprep.mubr.f32.mxu0 0.0
    %2680 = vmatmul.mubr.f32.gmra.mxu0 %v2538
    %v2681 = vpop.f32.mrf.mxu0
    %v2682 = vadd.f32 %v2491, %v2681
    %v2683 = vpop.f32.mrf.mxu0
    %2684 = vdwg.mxu0
    %v2685 = vadd.f32 %v2607, %v1094
    %v2686 = vadd.f32 %v2612, %v1099
    %v2687 = vadd.f32 %v2617, %v1104
    %v2688 = vadd.f32 %v2622, %v1109
    %v2689 = vadd.f32 %v2627, %v1114
    %v2690 = vadd.f32 %v2632, %v1119
    %v2691 = vadd.f32 %v2637, %v1124
    %v2692 = vadd.f32 %v2642, %v1129
    %v2693 = vadd.f32 %v2647, %v1134
    %v2694 = vadd.f32 %v2652, %v1139
    %v2695 = vadd.f32 %v2657, %v1144
    %v2696 = vadd.f32 %v2662, %v1149
    %v2697 = vadd.f32 %v2667, %v1154
    %v2698 = vadd.f32 %v2672, %v1159
    %v2699 = vadd.f32 %v2677, %v1164
    %v2700 = vadd.f32 %v2682, %v1169
    %v2701 = vtanh.pop %v2685
    %v2702 = vtanh.pop %v2686
    %v2703 = vtanh.pop %v2687
    %v2704 = vtanh.pop %v2688
    %v2705 = vtanh.pop %v2689
    %v2706 = vtanh.pop %v2690
    %v2707 = vtanh.pop %v2691
    %v2708 = vtanh.pop %v2692
    %v2709 = vtanh.pop %v2693
    %v2710 = vtanh.pop %v2694
    %v2711 = vtanh.pop %v2695
    %v2712 = vtanh.pop %v2696
    %v2713 = vtanh.pop %v2697
    %v2714 = vtanh.pop %v2698
    %v2715 = vtanh.pop %v2699
    %v2716 = vtanh.pop %v2700
    %s2717 = scalar_lea.vmem [#allocation5], 128
    %v2718 = vld [vmem:[%s2717] sm:$0xf]
    %v2719 = vld [vmem:[%s2717 + $0x4] sm:$0xf]
    %v2720 = vld [vmem:[%s2717 + $0x8] sm:$0xf]
    %v2721 = vld [vmem:[%s2717 + $0xc] sm:$0xf]
    %v2722 = vunpack.c.l.bf16 %v2718
    %v2723 = vunpack.c.l.bf16 %v2719
    %v2724 = vunpack.c.l.bf16 %v2720
    %v2725 = vunpack.c.l.bf16 %v2721
    %v2726 = vld [vmem:[#allocation7 + $0x8] sm:$0x1]
    %v2727 = vlaneseq
    %v2728 = vshrl.u32 %v2727, 7
    %v2729 = vsub.s32 0, %v2728
    %v2730 = vrot.slane %v2726, %v2729
    %v2732 = vsel %vm86, %v2701, 0
    %v2735 = vsel %vm86, %v2702, 0
    %v2738 = vsel %vm86, %v2703, 0
    %v2741 = vsel %vm86, %v2704, 0
    %v2744 = vsel %vm86, %v2705, 0
    %v2747 = vsel %vm86, %v2706, 0
    %v2750 = vsel %vm86, %v2707, 0
    %v2753 = vsel %vm86, %v2708, 0
    %v2756 = vsel %vm86, %v2709, 0
    %v2759 = vsel %vm86, %v2710, 0
    %v2762 = vsel %vm86, %v2711, 0
    %v2765 = vsel %vm86, %v2712, 0
    %v2768 = vsel %vm86, %v2713, 0
    %v2771 = vsel %vm86, %v2714, 0
    %v2774 = vsel %vm86, %v2715, 0
    %v2777 = vsel %vm86, %v2716, 0
    %2779 = vmatprep.subr.mxu0 0.0
    %2780 = vmatpush1.msra.mxu0 0.0
    %2781 = vmatprep.subr.mxu0 0.0
    %2782 = vmatpush1.msra.mxu0 0.0
    %2783 = vmatprep.subr.mxu0 0.0
    %2784 = vmatpush1.msra.mxu0 0.0
    %2785 = vmatprep.subr.mxu0 0.0
    %2786 = vmatpush1.msra.mxu0 0.0
    %2787 = vmatprep.subr.mxu0 0.0
    %2788 = vmatpush1.msra.mxu0 0.0
    %2789 = vmatprep.subr.mxu0 0.0
    %2790 = vmatpush1.msra.mxu0 0.0
    %2791 = vmatprep.subr.mxu0 0.0
    %2792 = vmatpush1.msra.mxu0 0.0
    %2793 = vmatprep.subr.mxu0 0.0
    %2794 = vmatpush1.msra.mxu0 0.0
    %2795 = vmatprep.subr.mxu0 0.0
    %2796 = vmatpush1.msra.mxu0 0.0
    %2797 = vmatprep.subr.mxu0 0.0
    %2798 = vmatpush1.msra.mxu0 0.0
    %2799 = vmatprep.subr.mxu0 0.0
    %2800 = vmatpush1.msra.mxu0 0.0
    %2801 = vmatprep.subr.mxu0 0.0
    %2802 = vmatpush1.msra.mxu0 0.0
    %2803 = vmatprep.subr.mxu0 0.0
    %2804 = vmatpush1.msra.mxu0 %v2725
    %2805 = vmatprep.subr.mxu0 0.0
    %2806 = vmatpush1.msra.mxu0 %v2724
    %2807 = vmatprep.subr.mxu0 0.0
    %2808 = vmatpush1.msra.mxu0 %v2723
    %2809 = vmatprep.subr.mxu0 0.0
    %2810 = vmatpush1.msra.mxu0 %v2722
    %2811 = vmatprep.subr.mxu0 0.0
    %2812 = vmatpush2.msra.mxu0 0.0
    %2813 = vmatprep.subr.mxu0 0.0
    %2814 = vmatpush2.msra.mxu0 0.0
    %2815 = vmatprep.subr.mxu0 0.0
    %2816 = vmatpush2.msra.mxu0 0.0
    %2817 = vmatprep.subr.mxu0 0.0
    %2818 = vmatpush2.msra.mxu0 0.0
    %2819 = vmatprep.subr.mxu0 0.0
    %2820 = vmatpush2.msra.mxu0 0.0
    %2821 = vmatprep.subr.mxu0 0.0
    %2822 = vmatpush2.msra.mxu0 0.0
    %2823 = vmatprep.subr.mxu0 0.0
    %2824 = vmatpush2.msra.mxu0 0.0
    %2825 = vmatprep.subr.mxu0 0.0
    %2826 = vmatpush2.msra.mxu0 0.0
    %2827 = vmatprep.subr.mxu0 0.0
    %2828 = vmatpush2.msra.mxu0 0.0
    %2829 = vmatprep.subr.mxu0 0.0
    %2830 = vmatpush2.msra.mxu0 0.0
    %2831 = vmatprep.subr.mxu0 0.0
    %2832 = vmatpush2.msra.mxu0 0.0
    %2833 = vmatprep.subr.mxu0 0.0
    %2834 = vmatpush2.msra.mxu0 0.0
    %2835 = vmatprep.subr.mxu0 0.0
    %2836 = vmatpush2.msra.mxu0 0.0
    %2837 = vmatprep.subr.mxu0 0.0
    %2838 = vmatpush2.msra.mxu0 0.0
    %2839 = vmatprep.subr.mxu0 0.0
    %2840 = vmatpush2.msra.mxu0 0.0
    %2841 = vmatprep.subr.mxu0 0.0
    %2842 = vmatpush2.msra.mxu0 0.0
    %2843 = vmatprep.mubr.f32.mxu0 0.0
    %2844 = vmatmul.mubr.f32.gmra.mxu0 %v2732
    %v2845 = vpop.f32.mrf.mxu0
    %v2846 = vadd.f32 %v2730, %v2845
    %v2847 = vpop.f32.mrf.mxu0
    %2848 = vmatprep.mubr.f32.mxu0 0.0
    %2849 = vmatmul.mubr.f32.gmra.mxu0 %v2735
    %v2850 = vpop.f32.mrf.mxu0
    %v2851 = vadd.f32 %v2730, %v2850
    %v2852 = vpop.f32.mrf.mxu0
    %2853 = vmatprep.mubr.f32.mxu0 0.0
    %2854 = vmatmul.mubr.f32.gmra.mxu0 %v2738
    %v2855 = vpop.f32.mrf.mxu0
    %v2856 = vadd.f32 %v2730, %v2855
    %v2857 = vpop.f32.mrf.mxu0
    %2858 = vmatprep.mubr.f32.mxu0 0.0
    %2859 = vmatmul.mubr.f32.gmra.mxu0 %v2741
    %v2860 = vpop.f32.mrf.mxu0
    %v2861 = vadd.f32 %v2730, %v2860
    %v2862 = vpop.f32.mrf.mxu0
    %2863 = vmatprep.mubr.f32.mxu0 0.0
    %2864 = vmatmul.mubr.f32.gmra.mxu0 %v2744
    %v2865 = vpop.f32.mrf.mxu0
    %v2866 = vadd.f32 %v2730, %v2865
    %v2867 = vpop.f32.mrf.mxu0
    %2868 = vmatprep.mubr.f32.mxu0 0.0
    %2869 = vmatmul.mubr.f32.gmra.mxu0 %v2747
    %v2870 = vpop.f32.mrf.mxu0
    %v2871 = vadd.f32 %v2730, %v2870
    %v2872 = vpop.f32.mrf.mxu0
    %2873 = vmatprep.mubr.f32.mxu0 0.0
    %2874 = vmatmul.mubr.f32.gmra.mxu0 %v2750
    %v2875 = vpop.f32.mrf.mxu0
    %v2876 = vadd.f32 %v2730, %v2875
    %v2877 = vpop.f32.mrf.mxu0
    %2878 = vmatprep.mubr.f32.mxu0 0.0
    %2879 = vmatmul.mubr.f32.gmra.mxu0 %v2753
    %v2880 = vpop.f32.mrf.mxu0
    %v2881 = vadd.f32 %v2730, %v2880
    %v2882 = vpop.f32.mrf.mxu0
    %2883 = vmatprep.mubr.f32.mxu0 0.0
    %2884 = vmatmul.mubr.f32.gmra.mxu0 %v2756
    %v2885 = vpop.f32.mrf.mxu0
    %v2886 = vadd.f32 %v2730, %v2885
    %v2887 = vpop.f32.mrf.mxu0
    %2888 = vmatprep.mubr.f32.mxu0 0.0
    %2889 = vmatmul.mubr.f32.gmra.mxu0 %v2759
    %v2890 = vpop.f32.mrf.mxu0
    %v2891 = vadd.f32 %v2730, %v2890
    %v2892 = vpop.f32.mrf.mxu0
    %2893 = vmatprep.mubr.f32.mxu0 0.0
    %2894 = vmatmul.mubr.f32.gmra.mxu0 %v2762
    %v2895 = vpop.f32.mrf.mxu0
    %v2896 = vadd.f32 %v2730, %v2895
    %v2897 = vpop.f32.mrf.mxu0
    %2898 = vmatprep.mubr.f32.mxu0 0.0
    %2899 = vmatmul.mubr.f32.gmra.mxu0 %v2765
    %v2900 = vpop.f32.mrf.mxu0
    %v2901 = vadd.f32 %v2730, %v2900
    %v2902 = vpop.f32.mrf.mxu0
    %2903 = vmatprep.mubr.f32.mxu0 0.0
    %2904 = vmatmul.mubr.f32.gmra.mxu0 %v2768
    %v2905 = vpop.f32.mrf.mxu0
    %v2906 = vadd.f32 %v2730, %v2905
    %v2907 = vpop.f32.mrf.mxu0
    %2908 = vmatprep.mubr.f32.mxu0 0.0
    %2909 = vmatmul.mubr.f32.gmra.mxu0 %v2771
    %v2910 = vpop.f32.mrf.mxu0
    %v2911 = vadd.f32 %v2730, %v2910
    %v2912 = vpop.f32.mrf.mxu0
    %2913 = vmatprep.mubr.f32.mxu0 0.0
    %2914 = vmatmul.mubr.f32.gmra.mxu0 %v2774
    %v2915 = vpop.f32.mrf.mxu0
    %v2916 = vadd.f32 %v2730, %v2915
    %v2917 = vpop.f32.mrf.mxu0
    %2918 = vmatprep.mubr.f32.mxu0 0.0
    %2919 = vmatmul.mubr.f32.gmra.mxu0 %v2777
    %v2920 = vpop.f32.mrf.mxu0
    %v2921 = vadd.f32 %v2730, %v2920
    %v2922 = vpop.f32.mrf.mxu0
    %2923 = vdwg.mxu0
    %v2924 = vadd.f32 %v2846, %v1540
    %v2925 = vadd.f32 %v2851, %v1545
    %v2926 = vadd.f32 %v2856, %v1550
    %v2927 = vadd.f32 %v2861, %v1555
    %v2928 = vadd.f32 %v2866, %v1560
    %v2929 = vadd.f32 %v2871, %v1565
    %v2930 = vadd.f32 %v2876, %v1570
    %v2931 = vadd.f32 %v2881, %v1575
    %v2932 = vadd.f32 %v2886, %v1580
    %v2933 = vadd.f32 %v2891, %v1585
    %v2934 = vadd.f32 %v2896, %v1590
    %v2935 = vadd.f32 %v2901, %v1595
    %v2936 = vadd.f32 %v2906, %v1600
    %v2937 = vadd.f32 %v2911, %v1605
    %v2938 = vadd.f32 %v2916, %v1610
    %v2939 = vadd.f32 %v2921, %v1615
    %v2940 = vtanh.pop %v2924
    %v2941 = vtanh.pop %v2925
    %v2942 = vtanh.pop %v2926
    %v2943 = vtanh.pop %v2927
    %v2944 = vtanh.pop %v2928
    %v2945 = vtanh.pop %v2929
    %v2946 = vtanh.pop %v2930
    %v2947 = vtanh.pop %v2931
    %v2948 = vtanh.pop %v2932
    %v2949 = vtanh.pop %v2933
    %v2950 = vtanh.pop %v2934
    %v2951 = vtanh.pop %v2935
    %v2952 = vtanh.pop %v2936
    %v2953 = vtanh.pop %v2937
    %v2954 = vtanh.pop %v2938
    %v2955 = vtanh.pop %v2939
    %s2956 = scalar_lea.vmem [#allocation5], 144
    %v2957 = vld [vmem:[%s2956] sm:$0xf]
    %v2958 = vld [vmem:[%s2956 + $0x4] sm:$0xf]
    %v2959 = vld [vmem:[%s2956 + $0x8] sm:$0xf]
    %v2960 = vld [vmem:[%s2956 + $0xc] sm:$0xf]
    %v2961 = vunpack.c.l.bf16 %v2957
    %v2962 = vunpack.c.l.bf16 %v2958
    %v2963 = vunpack.c.l.bf16 %v2959
    %v2964 = vunpack.c.l.bf16 %v2960
    %v2965 = vld [vmem:[#allocation7 + $0x9] sm:$0x1]
    %v2966 = vlaneseq
    %v2967 = vshrl.u32 %v2966, 7
    %v2968 = vsub.s32 0, %v2967
    %v2969 = vrot.slane %v2965, %v2968
    %v2971 = vsel %vm86, %v2940, 0
    %v2974 = vsel %vm86, %v2941, 0
    %v2977 = vsel %vm86, %v2942, 0
    %v2980 = vsel %vm86, %v2943, 0
    %v2983 = vsel %vm86, %v2944, 0
    %v2986 = vsel %vm86, %v2945, 0
    %v2989 = vsel %vm86, %v2946, 0
    %v2992 = vsel %vm86, %v2947, 0
    %v2995 = vsel %vm86, %v2948, 0
    %v2998 = vsel %vm86, %v2949, 0
    %v3001 = vsel %vm86, %v2950, 0
    %v3004 = vsel %vm86, %v2951, 0
    %v3007 = vsel %vm86, %v2952, 0
    %v3010 = vsel %vm86, %v2953, 0
    %v3013 = vsel %vm86, %v2954, 0
    %v3016 = vsel %vm86, %v2955, 0
    %3018 = vmatprep.subr.mxu0 0.0
    %3019 = vmatpush1.msra.mxu0 0.0
    %3020 = vmatprep.subr.mxu0 0.0
    %3021 = vmatpush1.msra.mxu0 0.0
    %3022 = vmatprep.subr.mxu0 0.0
    %3023 = vmatpush1.msra.mxu0 0.0
    %3024 = vmatprep.subr.mxu0 0.0
    %3025 = vmatpush1.msra.mxu0 0.0
    %3026 = vmatprep.subr.mxu0 0.0
    %3027 = vmatpush1.msra.mxu0 0.0
    %3028 = vmatprep.subr.mxu0 0.0
    %3029 = vmatpush1.msra.mxu0 0.0
    %3030 = vmatprep.subr.mxu0 0.0
    %3031 = vmatpush1.msra.mxu0 0.0
    %3032 = vmatprep.subr.mxu0 0.0
    %3033 = vmatpush1.msra.mxu0 0.0
    %3034 = vmatprep.subr.mxu0 0.0
    %3035 = vmatpush1.msra.mxu0 0.0
    %3036 = vmatprep.subr.mxu0 0.0
    %3037 = vmatpush1.msra.mxu0 0.0
    %3038 = vmatprep.subr.mxu0 0.0
    %3039 = vmatpush1.msra.mxu0 0.0
    %3040 = vmatprep.subr.mxu0 0.0
    %3041 = vmatpush1.msra.mxu0 0.0
    %3042 = vmatprep.subr.mxu0 0.0
    %3043 = vmatpush1.msra.mxu0 %v2964
    %3044 = vmatprep.subr.mxu0 0.0
    %3045 = vmatpush1.msra.mxu0 %v2963
    %3046 = vmatprep.subr.mxu0 0.0
    %3047 = vmatpush1.msra.mxu0 %v2962
    %3048 = vmatprep.subr.mxu0 0.0
    %3049 = vmatpush1.msra.mxu0 %v2961
    %3050 = vmatprep.subr.mxu0 0.0
    %3051 = vmatpush2.msra.mxu0 0.0
    %3052 = vmatprep.subr.mxu0 0.0
    %3053 = vmatpush2.msra.mxu0 0.0
    %3054 = vmatprep.subr.mxu0 0.0
    %3055 = vmatpush2.msra.mxu0 0.0
    %3056 = vmatprep.subr.mxu0 0.0
    %3057 = vmatpush2.msra.mxu0 0.0
    %3058 = vmatprep.subr.mxu0 0.0
    %3059 = vmatpush2.msra.mxu0 0.0
    %3060 = vmatprep.subr.mxu0 0.0
    %3061 = vmatpush2.msra.mxu0 0.0
    %3062 = vmatprep.subr.mxu0 0.0
    %3063 = vmatpush2.msra.mxu0 0.0
    %3064 = vmatprep.subr.mxu0 0.0
    %3065 = vmatpush2.msra.mxu0 0.0
    %3066 = vmatprep.subr.mxu0 0.0
    %3067 = vmatpush2.msra.mxu0 0.0
    %3068 = vmatprep.subr.mxu0 0.0
    %3069 = vmatpush2.msra.mxu0 0.0
    %3070 = vmatprep.subr.mxu0 0.0
    %3071 = vmatpush2.msra.mxu0 0.0
    %3072 = vmatprep.subr.mxu0 0.0
    %3073 = vmatpush2.msra.mxu0 0.0
    %3074 = vmatprep.subr.mxu0 0.0
    %3075 = vmatpush2.msra.mxu0 0.0
    %3076 = vmatprep.subr.mxu0 0.0
    %3077 = vmatpush2.msra.mxu0 0.0
    %3078 = vmatprep.subr.mxu0 0.0
    %3079 = vmatpush2.msra.mxu0 0.0
    %3080 = vmatprep.subr.mxu0 0.0
    %3081 = vmatpush2.msra.mxu0 0.0
    %3082 = vmatprep.mubr.f32.mxu0 0.0
    %3083 = vmatmul.mubr.f32.gmra.mxu0 %v2971
    %v3084 = vpop.f32.mrf.mxu0
    %v3085 = vadd.f32 %v2969, %v3084
    %v3086 = vpop.f32.mrf.mxu0
    %3087 = vmatprep.mubr.f32.mxu0 0.0
    %3088 = vmatmul.mubr.f32.gmra.mxu0 %v2974
    %v3089 = vpop.f32.mrf.mxu0
    %v3090 = vadd.f32 %v2969, %v3089
    %v3091 = vpop.f32.mrf.mxu0
    %3092 = vmatprep.mubr.f32.mxu0 0.0
    %3093 = vmatmul.mubr.f32.gmra.mxu0 %v2977
    %v3094 = vpop.f32.mrf.mxu0
    %v3095 = vadd.f32 %v2969, %v3094
    %v3096 = vpop.f32.mrf.mxu0
    %3097 = vmatprep.mubr.f32.mxu0 0.0
    %3098 = vmatmul.mubr.f32.gmra.mxu0 %v2980
    %v3099 = vpop.f32.mrf.mxu0
    %v3100 = vadd.f32 %v2969, %v3099
    %v3101 = vpop.f32.mrf.mxu0
    %3102 = vmatprep.mubr.f32.mxu0 0.0
    %3103 = vmatmul.mubr.f32.gmra.mxu0 %v2983
    %v3104 = vpop.f32.mrf.mxu0
    %v3105 = vadd.f32 %v2969, %v3104
    %v3106 = vpop.f32.mrf.mxu0
    %3107 = vmatprep.mubr.f32.mxu0 0.0
    %3108 = vmatmul.mubr.f32.gmra.mxu0 %v2986
    %v3109 = vpop.f32.mrf.mxu0
    %v3110 = vadd.f32 %v2969, %v3109
    %v3111 = vpop.f32.mrf.mxu0
    %3112 = vmatprep.mubr.f32.mxu0 0.0
    %3113 = vmatmul.mubr.f32.gmra.mxu0 %v2989
    %v3114 = vpop.f32.mrf.mxu0
    %v3115 = vadd.f32 %v2969, %v3114
    %v3116 = vpop.f32.mrf.mxu0
    %3117 = vmatprep.mubr.f32.mxu0 0.0
    %3118 = vmatmul.mubr.f32.gmra.mxu0 %v2992
    %v3119 = vpop.f32.mrf.mxu0
    %v3120 = vadd.f32 %v2969, %v3119
    %v3121 = vpop.f32.mrf.mxu0
    %3122 = vmatprep.mubr.f32.mxu0 0.0
    %3123 = vmatmul.mubr.f32.gmra.mxu0 %v2995
    %v3124 = vpop.f32.mrf.mxu0
    %v3125 = vadd.f32 %v2969, %v3124
    %v3126 = vpop.f32.mrf.mxu0
    %3127 = vmatprep.mubr.f32.mxu0 0.0
    %3128 = vmatmul.mubr.f32.gmra.mxu0 %v2998
    %v3129 = vpop.f32.mrf.mxu0
    %v3130 = vadd.f32 %v2969, %v3129
    %v3131 = vpop.f32.mrf.mxu0
    %3132 = vmatprep.mubr.f32.mxu0 0.0
    %3133 = vmatmul.mubr.f32.gmra.mxu0 %v3001
    %v3134 = vpop.f32.mrf.mxu0
    %v3135 = vadd.f32 %v2969, %v3134
    %v3136 = vpop.f32.mrf.mxu0
    %3137 = vmatprep.mubr.f32.mxu0 0.0
    %3138 = vmatmul.mubr.f32.gmra.mxu0 %v3004
    %v3139 = vpop.f32.mrf.mxu0
    %v3140 = vadd.f32 %v2969, %v3139
    %v3141 = vpop.f32.mrf.mxu0
    %3142 = vmatprep.mubr.f32.mxu0 0.0
    %3143 = vmatmul.mubr.f32.gmra.mxu0 %v3007
    %v3144 = vpop.f32.mrf.mxu0
    %v3145 = vadd.f32 %v2969, %v3144
    %v3146 = vpop.f32.mrf.mxu0
    %3147 = vmatprep.mubr.f32.mxu0 0.0
    %3148 = vmatmul.mubr.f32.gmra.mxu0 %v3010
    %v3149 = vpop.f32.mrf.mxu0
    %v3150 = vadd.f32 %v2969, %v3149
    %v3151 = vpop.f32.mrf.mxu0
    %3152 = vmatprep.mubr.f32.mxu0 0.0
    %3153 = vmatmul.mubr.f32.gmra.mxu0 %v3013
    %v3154 = vpop.f32.mrf.mxu0
    %v3155 = vadd.f32 %v2969, %v3154
    %v3156 = vpop.f32.mrf.mxu0
    %3157 = vmatprep.mubr.f32.mxu0 0.0
    %3158 = vmatmul.mubr.f32.gmra.mxu0 %v3016
    %v3159 = vpop.f32.mrf.mxu0
    %v3160 = vadd.f32 %v2969, %v3159
    %v3161 = vpop.f32.mrf.mxu0
    %3162 = vdwg.mxu0
    %v3163 = vadd.f32 %v3085, %v1986
    %v3164 = vadd.f32 %v3090, %v1991
    %v3165 = vadd.f32 %v3095, %v1996
    %v3166 = vadd.f32 %v3100, %v2001
    %v3167 = vadd.f32 %v3105, %v2006
    %v3168 = vadd.f32 %v3110, %v2011
    %v3169 = vadd.f32 %v3115, %v2016
    %v3170 = vadd.f32 %v3120, %v2021
    %v3171 = vadd.f32 %v3125, %v2026
    %v3172 = vadd.f32 %v3130, %v2031
    %v3173 = vadd.f32 %v3135, %v2036
    %v3174 = vadd.f32 %v3140, %v2041
    %v3175 = vadd.f32 %v3145, %v2046
    %v3176 = vadd.f32 %v3150, %v2051
    %v3177 = vadd.f32 %v3155, %v2056
    %v3178 = vadd.f32 %v3160, %v2061
    %s3179 = scalar_lea.vmem [#allocation5], 32
    %v3180 = vld [vmem:[%s3179] sm:$0xf]
    %v3181 = vld [vmem:[%s3179 + $0x4] sm:$0xf]
    %v3182 = vld [vmem:[%s3179 + $0x8] sm:$0xf]
    %v3183 = vld [vmem:[%s3179 + $0xc] sm:$0xf]
    %v3184 = vunpack.c.l.bf16 %v3180
    %v3185 = vunpack.c.l.bf16 %v3181
    %v3186 = vunpack.c.l.bf16 %v3182
    %v3187 = vunpack.c.l.bf16 %v3183
    %v3188 = vld [vmem:[#allocation7 + $0x2] sm:$0x1]
    %v3189 = vlaneseq
    %v3190 = vshrl.u32 %v3189, 7
    %v3191 = vsub.s32 0, %v3190
    %v3192 = vrot.slane %v3188, %v3191
    %3193 = vmatprep.subr.mxu0 0.0
    %3194 = vmatpush1.msra.mxu0 0.0
    %3195 = vmatprep.subr.mxu0 0.0
    %3196 = vmatpush1.msra.mxu0 0.0
    %3197 = vmatprep.subr.mxu0 0.0
    %3198 = vmatpush1.msra.mxu0 0.0
    %3199 = vmatprep.subr.mxu0 0.0
    %3200 = vmatpush1.msra.mxu0 0.0
    %3201 = vmatprep.subr.mxu0 0.0
    %3202 = vmatpush1.msra.mxu0 0.0
    %3203 = vmatprep.subr.mxu0 0.0
    %3204 = vmatpush1.msra.mxu0 0.0
    %3205 = vmatprep.subr.mxu0 0.0
    %3206 = vmatpush1.msra.mxu0 0.0
    %3207 = vmatprep.subr.mxu0 0.0
    %3208 = vmatpush1.msra.mxu0 0.0
    %3209 = vmatprep.subr.mxu0 0.0
    %3210 = vmatpush1.msra.mxu0 0.0
    %3211 = vmatprep.subr.mxu0 0.0
    %3212 = vmatpush1.msra.mxu0 0.0
    %3213 = vmatprep.subr.mxu0 0.0
    %3214 = vmatpush1.msra.mxu0 0.0
    %3215 = vmatprep.subr.mxu0 0.0
    %3216 = vmatpush1.msra.mxu0 0.0
    %3217 = vmatprep.subr.mxu0 0.0
    %3218 = vmatpush1.msra.mxu0 %v3187
    %3219 = vmatprep.subr.mxu0 0.0
    %3220 = vmatpush1.msra.mxu0 %v3186
    %3221 = vmatprep.subr.mxu0 0.0
    %3222 = vmatpush1.msra.mxu0 %v3185
    %3223 = vmatprep.subr.mxu0 0.0
    %3224 = vmatpush1.msra.mxu0 %v3184
    %3225 = vmatprep.subr.mxu0 0.0
    %3226 = vmatpush2.msra.mxu0 0.0
    %3227 = vmatprep.subr.mxu0 0.0
    %3228 = vmatpush2.msra.mxu0 0.0
    %3229 = vmatprep.subr.mxu0 0.0
    %3230 = vmatpush2.msra.mxu0 0.0
    %3231 = vmatprep.subr.mxu0 0.0
    %3232 = vmatpush2.msra.mxu0 0.0
    %3233 = vmatprep.subr.mxu0 0.0
    %3234 = vmatpush2.msra.mxu0 0.0
    %3235 = vmatprep.subr.mxu0 0.0
    %3236 = vmatpush2.msra.mxu0 0.0
    %3237 = vmatprep.subr.mxu0 0.0
    %3238 = vmatpush2.msra.mxu0 0.0
    %3239 = vmatprep.subr.mxu0 0.0
    %3240 = vmatpush2.msra.mxu0 0.0
    %3241 = vmatprep.subr.mxu0 0.0
    %3242 = vmatpush2.msra.mxu0 0.0
    %3243 = vmatprep.subr.mxu0 0.0
    %3244 = vmatpush2.msra.mxu0 0.0
    %3245 = vmatprep.subr.mxu0 0.0
    %3246 = vmatpush2.msra.mxu0 0.0
    %3247 = vmatprep.subr.mxu0 0.0
    %3248 = vmatpush2.msra.mxu0 0.0
    %3249 = vmatprep.subr.mxu0 0.0
    %3250 = vmatpush2.msra.mxu0 0.0
    %3251 = vmatprep.subr.mxu0 0.0
    %3252 = vmatpush2.msra.mxu0 0.0
    %3253 = vmatprep.subr.mxu0 0.0
    %3254 = vmatpush2.msra.mxu0 0.0
    %3255 = vmatprep.subr.mxu0 0.0
    %3256 = vmatpush2.msra.mxu0 0.0
    %3257 = vmatprep.mubr.f32.mxu0 0.0
    %3258 = vmatmul.mubr.f32.gmra.mxu0 %v88
    %v3259 = vpop.f32.mrf.mxu0
    %v3260 = vadd.f32 %v3192, %v3259
    %v3261 = vpop.f32.mrf.mxu0
    %3262 = vmatprep.mubr.f32.mxu0 0.0
    %3263 = vmatmul.mubr.f32.gmra.mxu0 %v91
    %v3264 = vpop.f32.mrf.mxu0
    %v3265 = vadd.f32 %v3192, %v3264
    %v3266 = vpop.f32.mrf.mxu0
    %3267 = vmatprep.mubr.f32.mxu0 0.0
    %3268 = vmatmul.mubr.f32.gmra.mxu0 %v94
    %v3269 = vpop.f32.mrf.mxu0
    %v3270 = vadd.f32 %v3192, %v3269
    %v3271 = vpop.f32.mrf.mxu0
    %3272 = vmatprep.mubr.f32.mxu0 0.0
    %3273 = vmatmul.mubr.f32.gmra.mxu0 %v97
    %v3274 = vpop.f32.mrf.mxu0
    %v3275 = vadd.f32 %v3192, %v3274
    %v3276 = vpop.f32.mrf.mxu0
    %3277 = vmatprep.mubr.f32.mxu0 0.0
    %3278 = vmatmul.mubr.f32.gmra.mxu0 %v100
    %v3279 = vpop.f32.mrf.mxu0
    %v3280 = vadd.f32 %v3192, %v3279
    %v3281 = vpop.f32.mrf.mxu0
    %3282 = vmatprep.mubr.f32.mxu0 0.0
    %3283 = vmatmul.mubr.f32.gmra.mxu0 %v103
    %v3284 = vpop.f32.mrf.mxu0
    %v3285 = vadd.f32 %v3192, %v3284
    %v3286 = vpop.f32.mrf.mxu0
    %3287 = vmatprep.mubr.f32.mxu0 0.0
    %3288 = vmatmul.mubr.f32.gmra.mxu0 %v106
    %v3289 = vpop.f32.mrf.mxu0
    %v3290 = vadd.f32 %v3192, %v3289
    %v3291 = vpop.f32.mrf.mxu0
    %3292 = vmatprep.mubr.f32.mxu0 0.0
    %3293 = vmatmul.mubr.f32.gmra.mxu0 %v109
    %v3294 = vpop.f32.mrf.mxu0
    %v3295 = vadd.f32 %v3192, %v3294
    %v3296 = vpop.f32.mrf.mxu0
    %3297 = vmatprep.mubr.f32.mxu0 0.0
    %3298 = vmatmul.mubr.f32.gmra.mxu0 %v112
    %v3299 = vpop.f32.mrf.mxu0
    %v3300 = vadd.f32 %v3192, %v3299
    %v3301 = vpop.f32.mrf.mxu0
    %3302 = vmatprep.mubr.f32.mxu0 0.0
    %3303 = vmatmul.mubr.f32.gmra.mxu0 %v115
    %v3304 = vpop.f32.mrf.mxu0
    %v3305 = vadd.f32 %v3192, %v3304
    %v3306 = vpop.f32.mrf.mxu0
    %3307 = vmatprep.mubr.f32.mxu0 0.0
    %3308 = vmatmul.mubr.f32.gmra.mxu0 %v118
    %v3309 = vpop.f32.mrf.mxu0
    %v3310 = vadd.f32 %v3192, %v3309
    %v3311 = vpop.f32.mrf.mxu0
    %3312 = vmatprep.mubr.f32.mxu0 0.0
    %3313 = vmatmul.mubr.f32.gmra.mxu0 %v121
    %v3314 = vpop.f32.mrf.mxu0
    %v3315 = vadd.f32 %v3192, %v3314
    %v3316 = vpop.f32.mrf.mxu0
    %3317 = vmatprep.mubr.f32.mxu0 0.0
    %3318 = vmatmul.mubr.f32.gmra.mxu0 %v124
    %v3319 = vpop.f32.mrf.mxu0
    %v3320 = vadd.f32 %v3192, %v3319
    %v3321 = vpop.f32.mrf.mxu0
    %3322 = vmatprep.mubr.f32.mxu0 0.0
    %3323 = vmatmul.mubr.f32.gmra.mxu0 %v127
    %v3324 = vpop.f32.mrf.mxu0
    %v3325 = vadd.f32 %v3192, %v3324
    %v3326 = vpop.f32.mrf.mxu0
    %3327 = vmatprep.mubr.f32.mxu0 0.0
    %3328 = vmatmul.mubr.f32.gmra.mxu0 %v130
    %v3329 = vpop.f32.mrf.mxu0
    %v3330 = vadd.f32 %v3192, %v3329
    %v3331 = vpop.f32.mrf.mxu0
    %3332 = vmatprep.mubr.f32.mxu0 0.0
    %3333 = vmatmul.mubr.f32.gmra.mxu0 %v133
    %v3334 = vpop.f32.mrf.mxu0
    %v3335 = vadd.f32 %v3192, %v3334
    %v3336 = vpop.f32.mrf.mxu0
    %3337 = vdwg.mxu0
    %v3338 = vtanh.pop %v3260
    %v3339 = vtanh.pop %v3265
    %v3340 = vtanh.pop %v3270
    %v3341 = vtanh.pop %v3275
    %v3342 = vtanh.pop %v3280
    %v3343 = vtanh.pop %v3285
    %v3344 = vtanh.pop %v3290
    %v3345 = vtanh.pop %v3295
    %v3346 = vtanh.pop %v3300
    %v3347 = vtanh.pop %v3305
    %v3348 = vtanh.pop %v3310
    %v3349 = vtanh.pop %v3315
    %v3350 = vtanh.pop %v3320
    %v3351 = vtanh.pop %v3325
    %v3352 = vtanh.pop %v3330
    %v3353 = vtanh.pop %v3335
    %s3354 = scalar_lea.vmem [#allocation5], 48
    %v3355 = vld [vmem:[%s3354] sm:$0xf]
    %v3356 = vld [vmem:[%s3354 + $0x4] sm:$0xf]
    %v3357 = vld [vmem:[%s3354 + $0x8] sm:$0xf]
    %v3358 = vld [vmem:[%s3354 + $0xc] sm:$0xf]
    %v3359 = vunpack.c.l.bf16 %v3355
    %v3360 = vunpack.c.l.bf16 %v3356
    %v3361 = vunpack.c.l.bf16 %v3357
    %v3362 = vunpack.c.l.bf16 %v3358
    %v3363 = vld [vmem:[#allocation7 + $0x3] sm:$0x1]
    %v3364 = vlaneseq
    %v3365 = vshrl.u32 %v3364, 7
    %v3366 = vsub.s32 0, %v3365
    %v3367 = vrot.slane %v3363, %v3366
    %v3369 = vsel %vm86, %v3338, 0
    %v3372 = vsel %vm86, %v3339, 0
    %v3375 = vsel %vm86, %v3340, 0
    %v3378 = vsel %vm86, %v3341, 0
    %v3381 = vsel %vm86, %v3342, 0
    %v3384 = vsel %vm86, %v3343, 0
    %v3387 = vsel %vm86, %v3344, 0
    %v3390 = vsel %vm86, %v3345, 0
    %v3393 = vsel %vm86, %v3346, 0
    %v3396 = vsel %vm86, %v3347, 0
    %v3399 = vsel %vm86, %v3348, 0
    %v3402 = vsel %vm86, %v3349, 0
    %v3405 = vsel %vm86, %v3350, 0
    %v3408 = vsel %vm86, %v3351, 0
    %v3411 = vsel %vm86, %v3352, 0
    %v3414 = vsel %vm86, %v3353, 0
    %3416 = vmatprep.subr.mxu0 0.0
    %3417 = vmatpush1.msra.mxu0 0.0
    %3418 = vmatprep.subr.mxu0 0.0
    %3419 = vmatpush1.msra.mxu0 0.0
    %3420 = vmatprep.subr.mxu0 0.0
    %3421 = vmatpush1.msra.mxu0 0.0
    %3422 = vmatprep.subr.mxu0 0.0
    %3423 = vmatpush1.msra.mxu0 0.0
    %3424 = vmatprep.subr.mxu0 0.0
    %3425 = vmatpush1.msra.mxu0 0.0
    %3426 = vmatprep.subr.mxu0 0.0
    %3427 = vmatpush1.msra.mxu0 0.0
    %3428 = vmatprep.subr.mxu0 0.0
    %3429 = vmatpush1.msra.mxu0 0.0
    %3430 = vmatprep.subr.mxu0 0.0
    %3431 = vmatpush1.msra.mxu0 0.0
    %3432 = vmatprep.subr.mxu0 0.0
    %3433 = vmatpush1.msra.mxu0 0.0
    %3434 = vmatprep.subr.mxu0 0.0
    %3435 = vmatpush1.msra.mxu0 0.0
    %3436 = vmatprep.subr.mxu0 0.0
    %3437 = vmatpush1.msra.mxu0 0.0
    %3438 = vmatprep.subr.mxu0 0.0
    %3439 = vmatpush1.msra.mxu0 0.0
    %3440 = vmatprep.subr.mxu0 0.0
    %3441 = vmatpush1.msra.mxu0 %v3362
    %3442 = vmatprep.subr.mxu0 0.0
    %3443 = vmatpush1.msra.mxu0 %v3361
    %3444 = vmatprep.subr.mxu0 0.0
    %3445 = vmatpush1.msra.mxu0 %v3360
    %3446 = vmatprep.subr.mxu0 0.0
    %3447 = vmatpush1.msra.mxu0 %v3359
    %3448 = vmatprep.subr.mxu0 0.0
    %3449 = vmatpush2.msra.mxu0 0.0
    %3450 = vmatprep.subr.mxu0 0.0
    %3451 = vmatpush2.msra.mxu0 0.0
    %3452 = vmatprep.subr.mxu0 0.0
    %3453 = vmatpush2.msra.mxu0 0.0
    %3454 = vmatprep.subr.mxu0 0.0
    %3455 = vmatpush2.msra.mxu0 0.0
    %3456 = vmatprep.subr.mxu0 0.0
    %3457 = vmatpush2.msra.mxu0 0.0
    %3458 = vmatprep.subr.mxu0 0.0
    %3459 = vmatpush2.msra.mxu0 0.0
    %3460 = vmatprep.subr.mxu0 0.0
    %3461 = vmatpush2.msra.mxu0 0.0
    %3462 = vmatprep.subr.mxu0 0.0
    %3463 = vmatpush2.msra.mxu0 0.0
    %3464 = vmatprep.subr.mxu0 0.0
    %3465 = vmatpush2.msra.mxu0 0.0
    %3466 = vmatprep.subr.mxu0 0.0
    %3467 = vmatpush2.msra.mxu0 0.0
    %3468 = vmatprep.subr.mxu0 0.0
    %3469 = vmatpush2.msra.mxu0 0.0
    %3470 = vmatprep.subr.mxu0 0.0
    %3471 = vmatpush2.msra.mxu0 0.0
    %3472 = vmatprep.subr.mxu0 0.0
    %3473 = vmatpush2.msra.mxu0 0.0
    %3474 = vmatprep.subr.mxu0 0.0
    %3475 = vmatpush2.msra.mxu0 0.0
    %3476 = vmatprep.subr.mxu0 0.0
    %3477 = vmatpush2.msra.mxu0 0.0
    %3478 = vmatprep.subr.mxu0 0.0
    %3479 = vmatpush2.msra.mxu0 0.0
    %3480 = vmatprep.mubr.f32.mxu0 0.0
    %3481 = vmatmul.mubr.f32.gmra.mxu0 %v3369
    %v3482 = vpop.f32.mrf.mxu0
    %v3483 = vadd.f32 %v3367, %v3482
    %v3484 = vpop.f32.mrf.mxu0
    %3485 = vmatprep.mubr.f32.mxu0 0.0
    %3486 = vmatmul.mubr.f32.gmra.mxu0 %v3372
    %v3487 = vpop.f32.mrf.mxu0
    %v3488 = vadd.f32 %v3367, %v3487
    %v3489 = vpop.f32.mrf.mxu0
    %3490 = vmatprep.mubr.f32.mxu0 0.0
    %3491 = vmatmul.mubr.f32.gmra.mxu0 %v3375
    %v3492 = vpop.f32.mrf.mxu0
    %v3493 = vadd.f32 %v3367, %v3492
    %v3494 = vpop.f32.mrf.mxu0
    %3495 = vmatprep.mubr.f32.mxu0 0.0
    %3496 = vmatmul.mubr.f32.gmra.mxu0 %v3378
    %v3497 = vpop.f32.mrf.mxu0
    %v3498 = vadd.f32 %v3367, %v3497
    %v3499 = vpop.f32.mrf.mxu0
    %3500 = vmatprep.mubr.f32.mxu0 0.0
    %3501 = vmatmul.mubr.f32.gmra.mxu0 %v3381
    %v3502 = vpop.f32.mrf.mxu0
    %v3503 = vadd.f32 %v3367, %v3502
    %v3504 = vpop.f32.mrf.mxu0
    %3505 = vmatprep.mubr.f32.mxu0 0.0
    %3506 = vmatmul.mubr.f32.gmra.mxu0 %v3384
    %v3507 = vpop.f32.mrf.mxu0
    %v3508 = vadd.f32 %v3367, %v3507
    %v3509 = vpop.f32.mrf.mxu0
    %3510 = vmatprep.mubr.f32.mxu0 0.0
    %3511 = vmatmul.mubr.f32.gmra.mxu0 %v3387
    %v3512 = vpop.f32.mrf.mxu0
    %v3513 = vadd.f32 %v3367, %v3512
    %v3514 = vpop.f32.mrf.mxu0
    %3515 = vmatprep.mubr.f32.mxu0 0.0
    %3516 = vmatmul.mubr.f32.gmra.mxu0 %v3390
    %v3517 = vpop.f32.mrf.mxu0
    %v3518 = vadd.f32 %v3367, %v3517
    %v3519 = vpop.f32.mrf.mxu0
    %3520 = vmatprep.mubr.f32.mxu0 0.0
    %3521 = vmatmul.mubr.f32.gmra.mxu0 %v3393
    %v3522 = vpop.f32.mrf.mxu0
    %v3523 = vadd.f32 %v3367, %v3522
    %v3524 = vpop.f32.mrf.mxu0
    %3525 = vmatprep.mubr.f32.mxu0 0.0
    %3526 = vmatmul.mubr.f32.gmra.mxu0 %v3396
    %v3527 = vpop.f32.mrf.mxu0
    %v3528 = vadd.f32 %v3367, %v3527
    %v3529 = vpop.f32.mrf.mxu0
    %3530 = vmatprep.mubr.f32.mxu0 0.0
    %3531 = vmatmul.mubr.f32.gmra.mxu0 %v3399
    %v3532 = vpop.f32.mrf.mxu0
    %v3533 = vadd.f32 %v3367, %v3532
    %v3534 = vpop.f32.mrf.mxu0
    %3535 = vmatprep.mubr.f32.mxu0 0.0
    %3536 = vmatmul.mubr.f32.gmra.mxu0 %v3402
    %v3537 = vpop.f32.mrf.mxu0
    %v3538 = vadd.f32 %v3367, %v3537
    %v3539 = vpop.f32.mrf.mxu0
    %3540 = vmatprep.mubr.f32.mxu0 0.0
    %3541 = vmatmul.mubr.f32.gmra.mxu0 %v3405
    %v3542 = vpop.f32.mrf.mxu0
    %v3543 = vadd.f32 %v3367, %v3542
    %v3544 = vpop.f32.mrf.mxu0
    %3545 = vmatprep.mubr.f32.mxu0 0.0
    %3546 = vmatmul.mubr.f32.gmra.mxu0 %v3408
    %v3547 = vpop.f32.mrf.mxu0
    %v3548 = vadd.f32 %v3367, %v3547
    %v3549 = vpop.f32.mrf.mxu0
    %3550 = vmatprep.mubr.f32.mxu0 0.0
    %3551 = vmatmul.mubr.f32.gmra.mxu0 %v3411
    %v3552 = vpop.f32.mrf.mxu0
    %v3553 = vadd.f32 %v3367, %v3552
    %v3554 = vpop.f32.mrf.mxu0
    %3555 = vmatprep.mubr.f32.mxu0 0.0
    %3556 = vmatmul.mubr.f32.gmra.mxu0 %v3414
    %v3557 = vpop.f32.mrf.mxu0
    %v3558 = vadd.f32 %v3367, %v3557
    %v3559 = vpop.f32.mrf.mxu0
    %3560 = vdwg.mxu0
    %v3561 = vadd.f32 %v3483, %v2685
    %v3562 = vadd.f32 %v3488, %v2686
    %v3563 = vadd.f32 %v3493, %v2687
    %v3564 = vadd.f32 %v3498, %v2688
    %v3565 = vadd.f32 %v3503, %v2689
    %v3566 = vadd.f32 %v3508, %v2690
    %v3567 = vadd.f32 %v3513, %v2691
    %v3568 = vadd.f32 %v3518, %v2692
    %v3569 = vadd.f32 %v3523, %v2693
    %v3570 = vadd.f32 %v3528, %v2694
    %v3571 = vadd.f32 %v3533, %v2695
    %v3572 = vadd.f32 %v3538, %v2696
    %v3573 = vadd.f32 %v3543, %v2697
    %v3574 = vadd.f32 %v3548, %v2698
    %v3575 = vadd.f32 %v3553, %v2699
    %v3576 = vadd.f32 %v3558, %v2700
    %v3577 = vtanh.pop %v3561
    %v3578 = vtanh.pop %v3562
    %v3579 = vtanh.pop %v3563
    %v3580 = vtanh.pop %v3564
    %v3581 = vtanh.pop %v3565
    %v3582 = vtanh.pop %v3566
    %v3583 = vtanh.pop %v3567
    %v3584 = vtanh.pop %v3568
    %v3585 = vtanh.pop %v3569
    %v3586 = vtanh.pop %v3570
    %v3587 = vtanh.pop %v3571
    %v3588 = vtanh.pop %v3572
    %v3589 = vtanh.pop %v3573
    %v3590 = vtanh.pop %v3574
    %v3591 = vtanh.pop %v3575
    %v3592 = vtanh.pop %v3576
    %s3593 = scalar_lea.vmem [#allocation5], 64
    %v3594 = vld [vmem:[%s3593] sm:$0xf]
    %v3595 = vld [vmem:[%s3593 + $0x4] sm:$0xf]
    %v3596 = vld [vmem:[%s3593 + $0x8] sm:$0xf]
    %v3597 = vld [vmem:[%s3593 + $0xc] sm:$0xf]
    %v3598 = vunpack.c.l.bf16 %v3594
    %v3599 = vunpack.c.l.bf16 %v3595
    %v3600 = vunpack.c.l.bf16 %v3596
    %v3601 = vunpack.c.l.bf16 %v3597
    %v3602 = vld [vmem:[#allocation7 + $0x4] sm:$0x1]
    %v3603 = vlaneseq
    %v3604 = vshrl.u32 %v3603, 7
    %v3605 = vsub.s32 0, %v3604
    %v3606 = vrot.slane %v3602, %v3605
    %v3608 = vsel %vm86, %v3577, 0
    %v3611 = vsel %vm86, %v3578, 0
    %v3614 = vsel %vm86, %v3579, 0
    %v3617 = vsel %vm86, %v3580, 0
    %v3620 = vsel %vm86, %v3581, 0
    %v3623 = vsel %vm86, %v3582, 0
    %v3626 = vsel %vm86, %v3583, 0
    %v3629 = vsel %vm86, %v3584, 0
    %v3632 = vsel %vm86, %v3585, 0
    %v3635 = vsel %vm86, %v3586, 0
    %v3638 = vsel %vm86, %v3587, 0
    %v3641 = vsel %vm86, %v3588, 0
    %v3644 = vsel %vm86, %v3589, 0
    %v3647 = vsel %vm86, %v3590, 0
    %v3650 = vsel %vm86, %v3591, 0
    %v3653 = vsel %vm86, %v3592, 0
    %3655 = vmatprep.subr.mxu0 0.0
    %3656 = vmatpush1.msra.mxu0 0.0
    %3657 = vmatprep.subr.mxu0 0.0
    %3658 = vmatpush1.msra.mxu0 0.0
    %3659 = vmatprep.subr.mxu0 0.0
    %3660 = vmatpush1.msra.mxu0 0.0
    %3661 = vmatprep.subr.mxu0 0.0
    %3662 = vmatpush1.msra.mxu0 0.0
    %3663 = vmatprep.subr.mxu0 0.0
    %3664 = vmatpush1.msra.mxu0 0.0
    %3665 = vmatprep.subr.mxu0 0.0
    %3666 = vmatpush1.msra.mxu0 0.0
    %3667 = vmatprep.subr.mxu0 0.0
    %3668 = vmatpush1.msra.mxu0 0.0
    %3669 = vmatprep.subr.mxu0 0.0
    %3670 = vmatpush1.msra.mxu0 0.0
    %3671 = vmatprep.subr.mxu0 0.0
    %3672 = vmatpush1.msra.mxu0 0.0
    %3673 = vmatprep.subr.mxu0 0.0
    %3674 = vmatpush1.msra.mxu0 0.0
    %3675 = vmatprep.subr.mxu0 0.0
    %3676 = vmatpush1.msra.mxu0 0.0
    %3677 = vmatprep.subr.mxu0 0.0
    %3678 = vmatpush1.msra.mxu0 0.0
    %3679 = vmatprep.subr.mxu0 0.0
    %3680 = vmatpush1.msra.mxu0 %v3601
    %3681 = vmatprep.subr.mxu0 0.0
    %3682 = vmatpush1.msra.mxu0 %v3600
    %3683 = vmatprep.subr.mxu0 0.0
    %3684 = vmatpush1.msra.mxu0 %v3599
    %3685 = vmatprep.subr.mxu0 0.0
    %3686 = vmatpush1.msra.mxu0 %v3598
    %3687 = vmatprep.subr.mxu0 0.0
    %3688 = vmatpush2.msra.mxu0 0.0
    %3689 = vmatprep.subr.mxu0 0.0
    %3690 = vmatpush2.msra.mxu0 0.0
    %3691 = vmatprep.subr.mxu0 0.0
    %3692 = vmatpush2.msra.mxu0 0.0
    %3693 = vmatprep.subr.mxu0 0.0
    %3694 = vmatpush2.msra.mxu0 0.0
    %3695 = vmatprep.subr.mxu0 0.0
    %3696 = vmatpush2.msra.mxu0 0.0
    %3697 = vmatprep.subr.mxu0 0.0
    %3698 = vmatpush2.msra.mxu0 0.0
    %3699 = vmatprep.subr.mxu0 0.0
    %3700 = vmatpush2.msra.mxu0 0.0
    %3701 = vmatprep.subr.mxu0 0.0
    %3702 = vmatpush2.msra.mxu0 0.0
    %3703 = vmatprep.subr.mxu0 0.0
    %3704 = vmatpush2.msra.mxu0 0.0
    %3705 = vmatprep.subr.mxu0 0.0
    %3706 = vmatpush2.msra.mxu0 0.0
    %3707 = vmatprep.subr.mxu0 0.0
    %3708 = vmatpush2.msra.mxu0 0.0
    %3709 = vmatprep.subr.mxu0 0.0
    %3710 = vmatpush2.msra.mxu0 0.0
    %3711 = vmatprep.subr.mxu0 0.0
    %3712 = vmatpush2.msra.mxu0 0.0
    %3713 = vmatprep.subr.mxu0 0.0
    %3714 = vmatpush2.msra.mxu0 0.0
    %3715 = vmatprep.subr.mxu0 0.0
    %3716 = vmatpush2.msra.mxu0 0.0
    %3717 = vmatprep.subr.mxu0 0.0
    %3718 = vmatpush2.msra.mxu0 0.0
    %3719 = vmatprep.mubr.f32.mxu0 0.0
    %3720 = vmatmul.mubr.f32.gmra.mxu0 %v3608
    %v3721 = vpop.f32.mrf.mxu0
    %v3722 = vadd.f32 %v3606, %v3721
    %v3723 = vpop.f32.mrf.mxu0
    %3724 = vmatprep.mubr.f32.mxu0 0.0
    %3725 = vmatmul.mubr.f32.gmra.mxu0 %v3611
    %v3726 = vpop.f32.mrf.mxu0
    %v3727 = vadd.f32 %v3606, %v3726
    %v3728 = vpop.f32.mrf.mxu0
    %3729 = vmatprep.mubr.f32.mxu0 0.0
    %3730 = vmatmul.mubr.f32.gmra.mxu0 %v3614
    %v3731 = vpop.f32.mrf.mxu0
    %v3732 = vadd.f32 %v3606, %v3731
    %v3733 = vpop.f32.mrf.mxu0
    %3734 = vmatprep.mubr.f32.mxu0 0.0
    %3735 = vmatmul.mubr.f32.gmra.mxu0 %v3617
    %v3736 = vpop.f32.mrf.mxu0
    %v3737 = vadd.f32 %v3606, %v3736
    %v3738 = vpop.f32.mrf.mxu0
    %3739 = vmatprep.mubr.f32.mxu0 0.0
    %3740 = vmatmul.mubr.f32.gmra.mxu0 %v3620
    %v3741 = vpop.f32.mrf.mxu0
    %v3742 = vadd.f32 %v3606, %v3741
    %v3743 = vpop.f32.mrf.mxu0
    %3744 = vmatprep.mubr.f32.mxu0 0.0
    %3745 = vmatmul.mubr.f32.gmra.mxu0 %v3623
    %v3746 = vpop.f32.mrf.mxu0
    %v3747 = vadd.f32 %v3606, %v3746
    %v3748 = vpop.f32.mrf.mxu0
    %3749 = vmatprep.mubr.f32.mxu0 0.0
    %3750 = vmatmul.mubr.f32.gmra.mxu0 %v3626
    %v3751 = vpop.f32.mrf.mxu0
    %v3752 = vadd.f32 %v3606, %v3751
    %v3753 = vpop.f32.mrf.mxu0
    %3754 = vmatprep.mubr.f32.mxu0 0.0
    %3755 = vmatmul.mubr.f32.gmra.mxu0 %v3629
    %v3756 = vpop.f32.mrf.mxu0
    %v3757 = vadd.f32 %v3606, %v3756
    %v3758 = vpop.f32.mrf.mxu0
    %3759 = vmatprep.mubr.f32.mxu0 0.0
    %3760 = vmatmul.mubr.f32.gmra.mxu0 %v3632
    %v3761 = vpop.f32.mrf.mxu0
    %v3762 = vadd.f32 %v3606, %v3761
    %v3763 = vpop.f32.mrf.mxu0
    %3764 = vmatprep.mubr.f32.mxu0 0.0
    %3765 = vmatmul.mubr.f32.gmra.mxu0 %v3635
    %v3766 = vpop.f32.mrf.mxu0
    %v3767 = vadd.f32 %v3606, %v3766
    %v3768 = vpop.f32.mrf.mxu0
    %3769 = vmatprep.mubr.f32.mxu0 0.0
    %3770 = vmatmul.mubr.f32.gmra.mxu0 %v3638
    %v3771 = vpop.f32.mrf.mxu0
    %v3772 = vadd.f32 %v3606, %v3771
    %v3773 = vpop.f32.mrf.mxu0
    %3774 = vmatprep.mubr.f32.mxu0 0.0
    %3775 = vmatmul.mubr.f32.gmra.mxu0 %v3641
    %v3776 = vpop.f32.mrf.mxu0
    %v3777 = vadd.f32 %v3606, %v3776
    %v3778 = vpop.f32.mrf.mxu0
    %3779 = vmatprep.mubr.f32.mxu0 0.0
    %3780 = vmatmul.mubr.f32.gmra.mxu0 %v3644
    %v3781 = vpop.f32.mrf.mxu0
    %v3782 = vadd.f32 %v3606, %v3781
    %v3783 = vpop.f32.mrf.mxu0
    %3784 = vmatprep.mubr.f32.mxu0 0.0
    %3785 = vmatmul.mubr.f32.gmra.mxu0 %v3647
    %v3786 = vpop.f32.mrf.mxu0
    %v3787 = vadd.f32 %v3606, %v3786
    %v3788 = vpop.f32.mrf.mxu0
    %3789 = vmatprep.mubr.f32.mxu0 0.0
    %3790 = vmatmul.mubr.f32.gmra.mxu0 %v3650
    %v3791 = vpop.f32.mrf.mxu0
    %v3792 = vadd.f32 %v3606, %v3791
    %v3793 = vpop.f32.mrf.mxu0
    %3794 = vmatprep.mubr.f32.mxu0 0.0
    %3795 = vmatmul.mubr.f32.gmra.mxu0 %v3653
    %v3796 = vpop.f32.mrf.mxu0
    %v3797 = vadd.f32 %v3606, %v3796
    %v3798 = vpop.f32.mrf.mxu0
    %3799 = vdwg.mxu0
    %v3800 = vadd.f32 %v3722, %v3163
    %v3801 = vadd.f32 %v3727, %v3164
    %v3802 = vadd.f32 %v3732, %v3165
    %v3803 = vadd.f32 %v3737, %v3166
    %v3804 = vadd.f32 %v3742, %v3167
    %v3805 = vadd.f32 %v3747, %v3168
    %v3806 = vadd.f32 %v3752, %v3169
    %v3807 = vadd.f32 %v3757, %v3170
    %v3808 = vadd.f32 %v3762, %v3171
    %v3809 = vadd.f32 %v3767, %v3172
    %v3810 = vadd.f32 %v3772, %v3173
    %v3811 = vadd.f32 %v3777, %v3174
    %v3812 = vadd.f32 %v3782, %v3175
    %v3813 = vadd.f32 %v3787, %v3176
    %v3814 = vadd.f32 %v3792, %v3177
    %v3815 = vadd.f32 %v3797, %v3178
    %v3816 = vld [vmem:[#allocation5] sm:$0xf]
    %v3817 = vld [vmem:[#allocation5 + $0x4] sm:$0xf]
    %v3818 = vld [vmem:[#allocation5 + $0x8] sm:$0xf]
    %v3819 = vld [vmem:[#allocation5 + $0xc] sm:$0xf]
    %v3820 = vunpack.c.l.bf16 %v3816
    %v3821 = vunpack.c.l.bf16 %v3817
    %v3822 = vunpack.c.l.bf16 %v3818
    %v3823 = vunpack.c.l.bf16 %v3819
    %v3824 = vld [vmem:[#allocation7] sm:$0x1]
    %v3825 = vlaneseq
    %v3826 = vshrl.u32 %v3825, 7
    %v3827 = vsub.s32 0, %v3826
    %v3828 = vrot.slane %v3824, %v3827
    %3829 = vmatprep.subr.mxu0 0.0
    %3830 = vmatpush1.msra.mxu0 0.0
    %3831 = vmatprep.subr.mxu0 0.0
    %3832 = vmatpush1.msra.mxu0 0.0
    %3833 = vmatprep.subr.mxu0 0.0
    %3834 = vmatpush1.msra.mxu0 0.0
    %3835 = vmatprep.subr.mxu0 0.0
    %3836 = vmatpush1.msra.mxu0 0.0
    %3837 = vmatprep.subr.mxu0 0.0
    %3838 = vmatpush1.msra.mxu0 0.0
    %3839 = vmatprep.subr.mxu0 0.0
    %3840 = vmatpush1.msra.mxu0 0.0
    %3841 = vmatprep.subr.mxu0 0.0
    %3842 = vmatpush1.msra.mxu0 0.0
    %3843 = vmatprep.subr.mxu0 0.0
    %3844 = vmatpush1.msra.mxu0 0.0
    %3845 = vmatprep.subr.mxu0 0.0
    %3846 = vmatpush1.msra.mxu0 0.0
    %3847 = vmatprep.subr.mxu0 0.0
    %3848 = vmatpush1.msra.mxu0 0.0
    %3849 = vmatprep.subr.mxu0 0.0
    %3850 = vmatpush1.msra.mxu0 0.0
    %3851 = vmatprep.subr.mxu0 0.0
    %3852 = vmatpush1.msra.mxu0 0.0
    %3853 = vmatprep.subr.mxu0 0.0
    %3854 = vmatpush1.msra.mxu0 %v3823
    %3855 = vmatprep.subr.mxu0 0.0
    %3856 = vmatpush1.msra.mxu0 %v3822
    %3857 = vmatprep.subr.mxu0 0.0
    %3858 = vmatpush1.msra.mxu0 %v3821
    %3859 = vmatprep.subr.mxu0 0.0
    %3860 = vmatpush1.msra.mxu0 %v3820
    %3861 = vmatprep.subr.mxu0 0.0
    %3862 = vmatpush2.msra.mxu0 0.0
    %3863 = vmatprep.subr.mxu0 0.0
    %3864 = vmatpush2.msra.mxu0 0.0
    %3865 = vmatprep.subr.mxu0 0.0
    %3866 = vmatpush2.msra.mxu0 0.0
    %3867 = vmatprep.subr.mxu0 0.0
    %3868 = vmatpush2.msra.mxu0 0.0
    %3869 = vmatprep.subr.mxu0 0.0
    %3870 = vmatpush2.msra.mxu0 0.0
    %3871 = vmatprep.subr.mxu0 0.0
    %3872 = vmatpush2.msra.mxu0 0.0
    %3873 = vmatprep.subr.mxu0 0.0
    %3874 = vmatpush2.msra.mxu0 0.0
    %3875 = vmatprep.subr.mxu0 0.0
    %3876 = vmatpush2.msra.mxu0 0.0
    %3877 = vmatprep.subr.mxu0 0.0
    %3878 = vmatpush2.msra.mxu0 0.0
    %3879 = vmatprep.subr.mxu0 0.0
    %3880 = vmatpush2.msra.mxu0 0.0
    %3881 = vmatprep.subr.mxu0 0.0
    %3882 = vmatpush2.msra.mxu0 0.0
    %3883 = vmatprep.subr.mxu0 0.0
    %3884 = vmatpush2.msra.mxu0 0.0
    %3885 = vmatprep.subr.mxu0 0.0
    %3886 = vmatpush2.msra.mxu0 0.0
    %3887 = vmatprep.subr.mxu0 0.0
    %3888 = vmatpush2.msra.mxu0 0.0
    %3889 = vmatprep.subr.mxu0 0.0
    %3890 = vmatpush2.msra.mxu0 0.0
    %3891 = vmatprep.subr.mxu0 0.0
    %3892 = vmatpush2.msra.mxu0 0.0
    %3893 = vmatprep.mubr.f32.mxu0 0.0
    %3894 = vmatmul.mubr.f32.gmra.mxu0 %v88
    %v3895 = vpop.f32.mrf.mxu0
    %v3896 = vadd.f32 %v3828, %v3895
    %v3897 = vpop.f32.mrf.mxu0
    %3898 = vmatprep.mubr.f32.mxu0 0.0
    %3899 = vmatmul.mubr.f32.gmra.mxu0 %v91
    %v3900 = vpop.f32.mrf.mxu0
    %v3901 = vadd.f32 %v3828, %v3900
    %v3902 = vpop.f32.mrf.mxu0
    %3903 = vmatprep.mubr.f32.mxu0 0.0
    %3904 = vmatmul.mubr.f32.gmra.mxu0 %v94
    %v3905 = vpop.f32.mrf.mxu0
    %v3906 = vadd.f32 %v3828, %v3905
    %v3907 = vpop.f32.mrf.mxu0
    %3908 = vmatprep.mubr.f32.mxu0 0.0
    %3909 = vmatmul.mubr.f32.gmra.mxu0 %v97
    %v3910 = vpop.f32.mrf.mxu0
    %v3911 = vadd.f32 %v3828, %v3910
    %v3912 = vpop.f32.mrf.mxu0
    %3913 = vmatprep.mubr.f32.mxu0 0.0
    %3914 = vmatmul.mubr.f32.gmra.mxu0 %v100
    %v3915 = vpop.f32.mrf.mxu0
    %v3916 = vadd.f32 %v3828, %v3915
    %v3917 = vpop.f32.mrf.mxu0
    %3918 = vmatprep.mubr.f32.mxu0 0.0
    %3919 = vmatmul.mubr.f32.gmra.mxu0 %v103
    %v3920 = vpop.f32.mrf.mxu0
    %v3921 = vadd.f32 %v3828, %v3920
    %v3922 = vpop.f32.mrf.mxu0
    %3923 = vmatprep.mubr.f32.mxu0 0.0
    %3924 = vmatmul.mubr.f32.gmra.mxu0 %v106
    %v3925 = vpop.f32.mrf.mxu0
    %v3926 = vadd.f32 %v3828, %v3925
    %v3927 = vpop.f32.mrf.mxu0
    %3928 = vmatprep.mubr.f32.mxu0 0.0
    %3929 = vmatmul.mubr.f32.gmra.mxu0 %v109
    %v3930 = vpop.f32.mrf.mxu0
    %v3931 = vadd.f32 %v3828, %v3930
    %v3932 = vpop.f32.mrf.mxu0
    %3933 = vmatprep.mubr.f32.mxu0 0.0
    %3934 = vmatmul.mubr.f32.gmra.mxu0 %v112
    %v3935 = vpop.f32.mrf.mxu0
    %v3936 = vadd.f32 %v3828, %v3935
    %v3937 = vpop.f32.mrf.mxu0
    %3938 = vmatprep.mubr.f32.mxu0 0.0
    %3939 = vmatmul.mubr.f32.gmra.mxu0 %v115
    %v3940 = vpop.f32.mrf.mxu0
    %v3941 = vadd.f32 %v3828, %v3940
    %v3942 = vpop.f32.mrf.mxu0
    %3943 = vmatprep.mubr.f32.mxu0 0.0
    %3944 = vmatmul.mubr.f32.gmra.mxu0 %v118
    %v3945 = vpop.f32.mrf.mxu0
    %v3946 = vadd.f32 %v3828, %v3945
    %v3947 = vpop.f32.mrf.mxu0
    %3948 = vmatprep.mubr.f32.mxu0 0.0
    %3949 = vmatmul.mubr.f32.gmra.mxu0 %v121
    %v3950 = vpop.f32.mrf.mxu0
    %v3951 = vadd.f32 %v3828, %v3950
    %v3952 = vpop.f32.mrf.mxu0
    %3953 = vmatprep.mubr.f32.mxu0 0.0
    %3954 = vmatmul.mubr.f32.gmra.mxu0 %v124
    %v3955 = vpop.f32.mrf.mxu0
    %v3956 = vadd.f32 %v3828, %v3955
    %v3957 = vpop.f32.mrf.mxu0
    %3958 = vmatprep.mubr.f32.mxu0 0.0
    %3959 = vmatmul.mubr.f32.gmra.mxu0 %v127
    %v3960 = vpop.f32.mrf.mxu0
    %v3961 = vadd.f32 %v3828, %v3960
    %v3962 = vpop.f32.mrf.mxu0
    %3963 = vmatprep.mubr.f32.mxu0 0.0
    %3964 = vmatmul.mubr.f32.gmra.mxu0 %v130
    %v3965 = vpop.f32.mrf.mxu0
    %v3966 = vadd.f32 %v3828, %v3965
    %v3967 = vpop.f32.mrf.mxu0
    %3968 = vmatprep.mubr.f32.mxu0 0.0
    %3969 = vmatmul.mubr.f32.gmra.mxu0 %v133
    %v3970 = vpop.f32.mrf.mxu0
    %v3971 = vadd.f32 %v3828, %v3970
    %v3972 = vpop.f32.mrf.mxu0
    %3973 = vdwg.mxu0
    %v3974 = vtanh.pop %v3896
    %v3975 = vtanh.pop %v3901
    %v3976 = vtanh.pop %v3906
    %v3977 = vtanh.pop %v3911
    %v3978 = vtanh.pop %v3916
    %v3979 = vtanh.pop %v3921
    %v3980 = vtanh.pop %v3926
    %v3981 = vtanh.pop %v3931
    %v3982 = vtanh.pop %v3936
    %v3983 = vtanh.pop %v3941
    %v3984 = vtanh.pop %v3946
    %v3985 = vtanh.pop %v3951
    %v3986 = vtanh.pop %v3956
    %v3987 = vtanh.pop %v3961
    %v3988 = vtanh.pop %v3966
    %v3989 = vtanh.pop %v3971
    %s3990 = scalar_lea.vmem [#allocation5], 16
    %v3991 = vld [vmem:[%s3990] sm:$0xf]
    %v3992 = vld [vmem:[%s3990 + $0x4] sm:$0xf]
    %v3993 = vld [vmem:[%s3990 + $0x8] sm:$0xf]
    %v3994 = vld [vmem:[%s3990 + $0xc] sm:$0xf]
    %v3995 = vunpack.c.l.bf16 %v3991
    %v3996 = vunpack.c.l.bf16 %v3992
    %v3997 = vunpack.c.l.bf16 %v3993
    %v3998 = vunpack.c.l.bf16 %v3994
    %v3999 = vld [vmem:[#allocation7 + $0x1] sm:$0x1]
    %v4000 = vlaneseq
    %v4001 = vshrl.u32 %v4000, 7
    %v4002 = vsub.s32 0, %v4001
    %v4003 = vrot.slane %v3999, %v4002
    %v4005 = vsel %vm86, %v3974, 0
    %v4008 = vsel %vm86, %v3975, 0
    %v4011 = vsel %vm86, %v3976, 0
    %v4014 = vsel %vm86, %v3977, 0
    %v4017 = vsel %vm86, %v3978, 0
    %v4020 = vsel %vm86, %v3979, 0
    %v4023 = vsel %vm86, %v3980, 0
    %v4026 = vsel %vm86, %v3981, 0
    %v4029 = vsel %vm86, %v3982, 0
    %v4032 = vsel %vm86, %v3983, 0
    %v4035 = vsel %vm86, %v3984, 0
    %v4038 = vsel %vm86, %v3985, 0
    %v4041 = vsel %vm86, %v3986, 0
    %v4044 = vsel %vm86, %v3987, 0
    %v4047 = vsel %vm86, %v3988, 0
    %v4050 = vsel %vm86, %v3989, 0
    %4052 = vmatprep.subr.mxu0 0.0
    %4053 = vmatpush1.msra.mxu0 0.0
    %4054 = vmatprep.subr.mxu0 0.0
    %4055 = vmatpush1.msra.mxu0 0.0
    %4056 = vmatprep.subr.mxu0 0.0
    %4057 = vmatpush1.msra.mxu0 0.0
    %4058 = vmatprep.subr.mxu0 0.0
    %4059 = vmatpush1.msra.mxu0 0.0
    %4060 = vmatprep.subr.mxu0 0.0
    %4061 = vmatpush1.msra.mxu0 0.0
    %4062 = vmatprep.subr.mxu0 0.0
    %4063 = vmatpush1.msra.mxu0 0.0
    %4064 = vmatprep.subr.mxu0 0.0
    %4065 = vmatpush1.msra.mxu0 0.0
    %4066 = vmatprep.subr.mxu0 0.0
    %4067 = vmatpush1.msra.mxu0 0.0
    %4068 = vmatprep.subr.mxu0 0.0
    %4069 = vmatpush1.msra.mxu0 0.0
    %4070 = vmatprep.subr.mxu0 0.0
    %4071 = vmatpush1.msra.mxu0 0.0
    %4072 = vmatprep.subr.mxu0 0.0
    %4073 = vmatpush1.msra.mxu0 0.0
    %4074 = vmatprep.subr.mxu0 0.0
    %4075 = vmatpush1.msra.mxu0 0.0
    %4076 = vmatprep.subr.mxu0 0.0
    %4077 = vmatpush1.msra.mxu0 %v3998
    %4078 = vmatprep.subr.mxu0 0.0
    %4079 = vmatpush1.msra.mxu0 %v3997
    %4080 = vmatprep.subr.mxu0 0.0
    %4081 = vmatpush1.msra.mxu0 %v3996
    %4082 = vmatprep.subr.mxu0 0.0
    %4083 = vmatpush1.msra.mxu0 %v3995
    %4084 = vmatprep.subr.mxu0 0.0
    %4085 = vmatpush2.msra.mxu0 0.0
    %4086 = vmatprep.subr.mxu0 0.0
    %4087 = vmatpush2.msra.mxu0 0.0
    %4088 = vmatprep.subr.mxu0 0.0
    %4089 = vmatpush2.msra.mxu0 0.0
    %4090 = vmatprep.subr.mxu0 0.0
    %4091 = vmatpush2.msra.mxu0 0.0
    %4092 = vmatprep.subr.mxu0 0.0
    %4093 = vmatpush2.msra.mxu0 0.0
    %4094 = vmatprep.subr.mxu0 0.0
    %4095 = vmatpush2.msra.mxu0 0.0
    %4096 = vmatprep.subr.mxu0 0.0
    %4097 = vmatpush2.msra.mxu0 0.0
    %4098 = vmatprep.subr.mxu0 0.0
    %4099 = vmatpush2.msra.mxu0 0.0
    %4100 = vmatprep.subr.mxu0 0.0
    %4101 = vmatpush2.msra.mxu0 0.0
    %4102 = vmatprep.subr.mxu0 0.0
    %4103 = vmatpush2.msra.mxu0 0.0
    %4104 = vmatprep.subr.mxu0 0.0
    %4105 = vmatpush2.msra.mxu0 0.0
    %4106 = vmatprep.subr.mxu0 0.0
    %4107 = vmatpush2.msra.mxu0 0.0
    %4108 = vmatprep.subr.mxu0 0.0
    %4109 = vmatpush2.msra.mxu0 0.0
    %4110 = vmatprep.subr.mxu0 0.0
    %4111 = vmatpush2.msra.mxu0 0.0
    %4112 = vmatprep.subr.mxu0 0.0
    %4113 = vmatpush2.msra.mxu0 0.0
    %4114 = vmatprep.subr.mxu0 0.0
    %4115 = vmatpush2.msra.mxu0 0.0
    %4116 = vmatprep.mubr.f32.mxu0 0.0
    %4117 = vmatmul.mubr.f32.gmra.mxu0 %v4005
    %v4118 = vpop.f32.mrf.mxu0
    %v4119 = vadd.f32 %v4003, %v4118
    %v4120 = vpop.f32.mrf.mxu0
    %4121 = vmatprep.mubr.f32.mxu0 0.0
    %4122 = vmatmul.mubr.f32.gmra.mxu0 %v4008
    %v4123 = vpop.f32.mrf.mxu0
    %v4124 = vadd.f32 %v4003, %v4123
    %v4125 = vpop.f32.mrf.mxu0
    %4126 = vmatprep.mubr.f32.mxu0 0.0
    %4127 = vmatmul.mubr.f32.gmra.mxu0 %v4011
    %v4128 = vpop.f32.mrf.mxu0
    %v4129 = vadd.f32 %v4003, %v4128
    %v4130 = vpop.f32.mrf.mxu0
    %4131 = vmatprep.mubr.f32.mxu0 0.0
    %4132 = vmatmul.mubr.f32.gmra.mxu0 %v4014
    %v4133 = vpop.f32.mrf.mxu0
    %v4134 = vadd.f32 %v4003, %v4133
    %v4135 = vpop.f32.mrf.mxu0
    %4136 = vmatprep.mubr.f32.mxu0 0.0
    %4137 = vmatmul.mubr.f32.gmra.mxu0 %v4017
    %v4138 = vpop.f32.mrf.mxu0
    %v4139 = vadd.f32 %v4003, %v4138
    %v4140 = vpop.f32.mrf.mxu0
    %4141 = vmatprep.mubr.f32.mxu0 0.0
    %4142 = vmatmul.mubr.f32.gmra.mxu0 %v4020
    %v4143 = vpop.f32.mrf.mxu0
    %v4144 = vadd.f32 %v4003, %v4143
    %v4145 = vpop.f32.mrf.mxu0
    %4146 = vmatprep.mubr.f32.mxu0 0.0
    %4147 = vmatmul.mubr.f32.gmra.mxu0 %v4023
    %v4148 = vpop.f32.mrf.mxu0
    %v4149 = vadd.f32 %v4003, %v4148
    %v4150 = vpop.f32.mrf.mxu0
    %4151 = vmatprep.mubr.f32.mxu0 0.0
    %4152 = vmatmul.mubr.f32.gmra.mxu0 %v4026
    %v4153 = vpop.f32.mrf.mxu0
    %v4154 = vadd.f32 %v4003, %v4153
    %v4155 = vpop.f32.mrf.mxu0
    %4156 = vmatprep.mubr.f32.mxu0 0.0
    %4157 = vmatmul.mubr.f32.gmra.mxu0 %v4029
    %v4158 = vpop.f32.mrf.mxu0
    %v4159 = vadd.f32 %v4003, %v4158
    %v4160 = vpop.f32.mrf.mxu0
    %4161 = vmatprep.mubr.f32.mxu0 0.0
    %4162 = vmatmul.mubr.f32.gmra.mxu0 %v4032
    %v4163 = vpop.f32.mrf.mxu0
    %v4164 = vadd.f32 %v4003, %v4163
    %v4165 = vpop.f32.mrf.mxu0
    %4166 = vmatprep.mubr.f32.mxu0 0.0
    %4167 = vmatmul.mubr.f32.gmra.mxu0 %v4035
    %v4168 = vpop.f32.mrf.mxu0
    %v4169 = vadd.f32 %v4003, %v4168
    %v4170 = vpop.f32.mrf.mxu0
    %4171 = vmatprep.mubr.f32.mxu0 0.0
    %4172 = vmatmul.mubr.f32.gmra.mxu0 %v4038
    %v4173 = vpop.f32.mrf.mxu0
    %v4174 = vadd.f32 %v4003, %v4173
    %v4175 = vpop.f32.mrf.mxu0
    %4176 = vmatprep.mubr.f32.mxu0 0.0
    %4177 = vmatmul.mubr.f32.gmra.mxu0 %v4041
    %v4178 = vpop.f32.mrf.mxu0
    %v4179 = vadd.f32 %v4003, %v4178
    %v4180 = vpop.f32.mrf.mxu0
    %4181 = vmatprep.mubr.f32.mxu0 0.0
    %4182 = vmatmul.mubr.f32.gmra.mxu0 %v4044
    %v4183 = vpop.f32.mrf.mxu0
    %v4184 = vadd.f32 %v4003, %v4183
    %v4185 = vpop.f32.mrf.mxu0
    %4186 = vmatprep.mubr.f32.mxu0 0.0
    %4187 = vmatmul.mubr.f32.gmra.mxu0 %v4047
    %v4188 = vpop.f32.mrf.mxu0
    %v4189 = vadd.f32 %v4003, %v4188
    %v4190 = vpop.f32.mrf.mxu0
    %4191 = vmatprep.mubr.f32.mxu0 0.0
    %4192 = vmatmul.mubr.f32.gmra.mxu0 %v4050
    %v4193 = vpop.f32.mrf.mxu0
    %v4194 = vadd.f32 %v4003, %v4193
    %v4195 = vpop.f32.mrf.mxu0
    %4196 = vdwg.mxu0
    %v4197 = vadd.f32 %v4119, %v3800
    %v4198 = vadd.f32 %v4124, %v3801
    %v4199 = vadd.f32 %v4129, %v3802
    %v4200 = vadd.f32 %v4134, %v3803
    %v4201 = vadd.f32 %v4139, %v3804
    %v4202 = vadd.f32 %v4144, %v3805
    %v4203 = vadd.f32 %v4149, %v3806
    %v4204 = vadd.f32 %v4154, %v3807
    %v4205 = vadd.f32 %v4159, %v3808
    %v4206 = vadd.f32 %v4164, %v3809
    %v4207 = vadd.f32 %v4169, %v3810
    %v4208 = vadd.f32 %v4174, %v3811
    %v4209 = vadd.f32 %v4179, %v3812
    %v4210 = vadd.f32 %v4184, %v3813
    %v4211 = vadd.f32 %v4189, %v3814
    %v4212 = vadd.f32 %v4194, %v3815
    %4213 = vst [vmem:[#allocation8] sm:$0xff] %v4197
    %4214 = vst [vmem:[#allocation8 + $0x8] sm:$0xff] %v4198
    %4215 = vst [vmem:[#allocation8 + $0x10] sm:$0xff] %v4199
    %4216 = vst [vmem:[#allocation8 + $0x18] sm:$0xff] %v4200
    %4217 = vst [vmem:[#allocation8 + $0x20] sm:$0xff] %v4201
    %4218 = vst [vmem:[#allocation8 + $0x28] sm:$0xff] %v4202
    %4219 = vst [vmem:[#allocation8 + $0x30] sm:$0xff] %v4203
    %4220 = vst [vmem:[#allocation8 + $0x38] sm:$0xff] %v4204
    %4221 = vst [vmem:[#allocation8 + $0x40] sm:$0xff] %v4205
    %4222 = vst [vmem:[#allocation8 + $0x48] sm:$0xff] %v4206
    %4223 = vst [vmem:[#allocation8 + $0x50] sm:$0xff] %v4207
    %4224 = vst [vmem:[#allocation8 + $0x58] sm:$0xff] %v4208
    %4225 = vst [vmem:[#allocation8 + $0x60] sm:$0xff] %v4209
    %4226 = vst [vmem:[#allocation8 + $0x68] sm:$0xff] %v4210
    %4227 = vst [vmem:[#allocation8 + $0x70] sm:$0xff] %v4211
    %4228 = vst [vmem:[#allocation8 + $0x78] sm:$0xff] %v4212
    // Predicated region
    $region26: #{tpu_custom_call.1} parent=1 // pred_check
      _
    $region27: #{tpu_custom_call.1} parent=1 // pred_check_branch
      %4230 = sbr.rel (0) target = $region29
    $region28: #{tpu_custom_call.1} parent=1 // pred_region
      %s4232 = ssub.s32 2048, 2048
      %4233 = vsyncadd [#allocation4], %s4232
      %s4234 = sshll.u32 [#allocation8], 4
      %s4235 = int_to_ptr.vmem [resolvable:$true] %s4234
      %4240 = dma.vmem_to_hbm [thread:$0]  %s4235, 2048, %s3, [#allocation4], 128, 128, 8
    $region29: #{tpu_custom_call.1} parent=1 // pred_fallthru
      _
    // Predicated region
    $region30: #{tpu_custom_call.1} parent=1 // pred_check
      _
    $region31: #{tpu_custom_call.1} parent=1 // pred_check_branch
      %4242 = sbr.rel (0) target = $region33
    $region32: #{tpu_custom_call.1} parent=1 // pred_region
      %4243 = dma.done [#allocation4], 2048
    $region33: #{tpu_custom_call.1} parent=1 // pred_fallthru
      _
    %4244 = vsyncpa [#allocation3], 1
    %4245 = vsyncpa [#allocation6], 1
    %4246 = vsyncpa [#allocation4], 1

</llo_original>
